<compile_context>
chip_gen: v5e
topology: v5e:2x2
jax: 0.10.0
libtpu: 0.0.40
codegen_flags: <defaults>
</compile_context>

<pallas_src>
import numpy as np
import jax
import jax.numpy as jnp
from jax import image as jax_image
from jax.experimental import pallas as pl
from jax.experimental.pallas import tpu as pltpu


# ----------------------------------------------------------------------------
# Host-side constant construction (all folding in float64; cast once at the end)
# ----------------------------------------------------------------------------
def _upsample_matrix(L: int) -> np.ndarray:
    """U[p, h]: out[p] = sum_h U[p, h] * x[h] reproduces
    nn.Upsample(scale_factor=2, mode='bilinear', align_corners=False) along one axis."""
    U = np.zeros((2 * L, L), dtype=np.float64)
    for p in range(2 * L):
        src = (p + 0.5) * 0.5 - 0.5
        src = max(src, 0.0)                       # PyTorch clamps negative src coords
        i0 = min(int(np.floor(src)), L - 1)
        i1 = min(i0 + 1, L - 1)
        lam = src - i0
        U[p, i0] += 1.0 - lam
        U[p, i1] += lam
    return U


def _conv_right_ops(wgt: np.ndarray, Ws: int) -> np.ndarray:
    """R[dy, x'*Ci + c, x*Co + o] = sum_dx wgt[o, c, dy, dx] * [x' == x + dx - 1, in range].

    Acting on an (Hs, Ws*Ci) slab from the right, R[dy] applies the horizontal conv
    taps, the channel contraction and the horizontal zero padding for row-tap dy."""
    Co, Ci = wgt.shape[0], wgt.shape[1]
    R = np.zeros((3, Ws * Ci, Ws * Co), dtype=np.float64)
    for dy in range(3):
        for dx in range(3):
            wt = wgt[:, :, dy, dx].T              # (Ci, Co)
            for x in range(Ws):
                xp = x + dx - 1
                if 0 <= xp < Ws:
                    R[dy, xp * Ci:(xp + 1) * Ci, x * Co:(x + 1) * Co] += wt
    return R


def fold_operators(params, H: int, W: int):
    """Fold upsample + both convs into the constant operators consumed by the kernel.

    Returns float64 numpy operators; casting to the device compute dtype happens once
    in prepare_operators (never cast intermediates of the fold)."""
    w1 = np.asarray(params["w1"], np.float64)     # (O1, Cin, 3, 3)
    w2 = np.asarray(params["w2"], np.float64)     # (O2, O1, 3, 3)
    b1 = np.asarray(params["b1"], np.float64)
    a1 = np.asarray(params["a1"], np.float64)
    b2 = np.asarray(params["b2"], np.float64)
    a2 = np.asarray(params["a2"], np.float64)
    O1, Cin = w1.shape[0], w1.shape[1]
    O2 = w2.shape[0]
    Hs, Ws = 2 * H, 2 * W

    Uh = _upsample_matrix(H)                      # (Hs, H)  row-upsample
    Uw = _upsample_matrix(W)                      # (Ws, W)  width-upsample

    # width-upsample operator RU[w*Cin + c, q*Cin + c] = Uw[q, w]
    RU = np.zeros((W * Cin, Ws * Cin), dtype=np.float64)
    for w in range(W):
        for q in range(Ws):
            v = Uw[q, w]
            if v != 0.0:
                for c in range(Cin):
                    RU[w * Cin + c, q * Cin + c] = v

    # conv1 right operator with width-upsample folded in, dy-concatenated along K:
    # (3*W*Cin, Ws*O1); lane-block dy multiplies the row-(y+dy-1) tap in the kernel.
    R1dy = np.einsum("ab,dbc->dac", RU, _conv_right_ops(w1, Ws))   # (3, W*Cin, Ws*O1)
    R1 = np.concatenate([R1dy[0], R1dy[1], R1dy[2]], axis=0)
    # conv2 right operator, dy-concatenated: (3*Ws*O1, Ws*O2)
    R2dy = _conv_right_ops(w2, Ws)
    R2 = np.concatenate([R2dy[0], R2dy[1], R2dy[2]], axis=0)

    return {
        "Uh": Uh, "R1": R1, "R2": R2,
        # per-lane bias/alpha rows for the (Hs, Ws*C) layout: lane j = x*C + o -> b[o]
        "b1r": np.tile(b1, Ws)[None, :], "a1r": np.tile(a1, Ws)[None, :],
        "b2r": np.tile(b2, Ws)[None, :], "a2r": np.tile(a2, Ws)[None, :],
        "dims": (Cin, O1, O2, H, W),
    }


def prepare_operators(params, H: int, W: int, compute_dtype=jnp.bfloat16):
    f = fold_operators(params, H, W)
    return {
        "Uh": jnp.asarray(f["Uh"], compute_dtype),
        "R1": jnp.asarray(f["R1"], compute_dtype),
        "R2": jnp.asarray(f["R2"], compute_dtype),
        "b1r": jnp.asarray(f["b1r"], jnp.float32),
        "a1r": jnp.asarray(f["a1r"], jnp.float32),
        "b2r": jnp.asarray(f["b2r"], jnp.float32),
        "a2r": jnp.asarray(f["a2r"], jnp.float32),
        "dims": f["dims"],
    }


# ----------------------------------------------------------------------------
# Fused Pallas kernel: upsample2x -> conv3x3+PReLU -> conv3x3+PReLU (B images/step)
# ----------------------------------------------------------------------------
def _band_cat(a):
    """(Hs, K) -> (Hs, 3K): lane-blocks hold rows [y-1 | y | y+1], zero padded.

    Replaces the old 0/1 shift-band matmuls with cheap row shifts and concatenates the
    three vertical taps along the contraction axis, so each conv is ONE deep-K matmul."""
    zero = jnp.zeros((1, a.shape[1]), a.dtype)
    return jnp.concatenate(
        [jnp.concatenate([zero, a[:-1, :]], axis=0),   # tap dy=0 : row y-1
         a,                                            # tap dy=1 : row y
         jnp.concatenate([a[1:, :], zero], axis=0)],   # tap dy=2 : row y+1
        axis=1)


def _fused_kernel(x_ref, uh_ref, r1_ref, r2_ref,
                  b1_ref, a1_ref, b2_ref, a2_ref, o_ref):
    f32 = jnp.float32
    cdt = r1_ref.dtype                   # MXU compute dtype (bf16; f32 also works)
    B = x_ref.shape[0]
    Hs = uh_ref.shape[0]
    WO2 = b2_ref.shape[-1]

    uh = uh_ref[...]                                                  # (Hs, H)

    # Row-upsample once per image (single small left matmul); vertical conv taps are
    # produced by row shifts, not MXU work.  Static unroll over the B stacked images.
    cat1 = []
    for b in range(B):
        u = jnp.dot(uh, x_ref[b].astype(cdt),
                    preferred_element_type=f32)                       # (Hs, W*Cin)
        cat1.append(_band_cat(u))                                     # (Hs, 3*W*Cin)
    c1 = jnp.concatenate(cat1, axis=0).astype(cdt)                    # (B*Hs, 3*W*Cin)

    # conv1 (+ width-upsample folded into R1): one deep-K MXU matmul, f32 accumulate.
    z1 = jnp.dot(c1, r1_ref[...], preferred_element_type=f32)         # (B*Hs, Ws*O1)
    z1 = z1 + b1_ref[...]
    z1 = jnp.where(z1 > 0, z1, a1_ref[...] * z1)                      # PReLU (VPU)

    # conv2: taps via row shifts again, single deep-K matmul over batch-stacked rows.
    cat2 = [_band_cat(z1[b * Hs:(b + 1) * Hs, :]) for b in range(B)]
    c2 = jnp.concatenate(cat2, axis=0).astype(cdt)                    # (B*Hs, 3*Ws*O1)
    z2 = jnp.dot(c2, r2_ref[...], preferred_element_type=f32)         # (B*Hs, Ws*O2)
    z2 = z2 + b2_ref[...]
    z2 = jnp.where(z2 > 0, z2, a2_ref[...] * z2)

    o_ref[...] = z2.reshape(B, Hs, WO2).astype(o_ref.dtype)           # lane-dense store


def _pick_batch_block(N: int, Hs: int, target_rows: int = 256) -> int:
    """Largest divisor B of N with B*Hs <= target_rows (feed the 256-deep v6e/v7x MXU)."""
    best = 1
    for cand in range(1, N + 1):
        if N % cand == 0 and cand * Hs <= target_rows:
            best = cand
    return best


def _build_pallas_call(N, B, Cin, O1, O2, H, W, out_dtype, buffered_constants):
    Hs, Ws = 2 * H, 2 * W
    ckw = {"pipeline_mode": pl.Buffered(1)} if buffered_constants else {}

    def const(shape):
        return pl.BlockSpec(shape, lambda n: (0,) * len(shape), **ckw)

    in_specs = [
        pl.BlockSpec((B, H, W * Cin), lambda n: (n, 0, 0)),   # B stacked input slabs
        const((Hs, H)),                                        # Uh
        const((3 * W * Cin, Ws * O1)),                         # R1 (dy-concatenated)
        const((3 * Ws * O1, Ws * O2)),                         # R2 (dy-concatenated)
        const((1, Ws * O1)), const((1, Ws * O1)),              # b1r, a1r
        const((1, Ws * O2)), const((1, Ws * O2)),              # b2r, a2r
    ]
    return pl.pallas_call(
        _fused_kernel,
        out_shape=jax.ShapeDtypeStruct((N, Hs, Ws * O2), out_dtype),
        grid=(N // B,),
        in_specs=in_specs,
        out_specs=pl.BlockSpec((B, Hs, Ws * O2), lambda n: (n, 0, 0)),
        compiler_params=pltpu.CompilerParams(
            dimension_semantics=("parallel",),
            vmem_limit_bytes=32 * 1024 * 1024,
        ),
    )


def upsampling_block_forward(x_nchw, ops, nchw_out: bool = True):
    N, Cin, H, W = x_nchw.shape
    Cin_p, O1, O2, Hp, Wp = ops["dims"]
    assert (Cin, H, W) == (Cin_p, Hp, Wp), "operators built for different shapes"
    Hs, Ws = 2 * H, 2 * W
    B = _pick_batch_block(N, Hs)

    # NHWC-flat input slab (H, W*Cin) per image (tiny transpose of the small input).
    x2d = jnp.transpose(x_nchw, (0, 2, 3, 1)).reshape(N, H, W * Cin)
    args = (x2d, ops["Uh"], ops["R1"], ops["R2"],
            ops["b1r"], ops["a1r"], ops["b2r"], ops["a2r"])

    try:   # single-buffer the constants (constant index_map -> nothing to pipeline)
        out = jax.block_until_ready(
            _build_pallas_call(N, B, Cin, O1, O2, H, W, x_nchw.dtype, True)(*args))
    except Exception:
        # pipeline_mode=pl.Buffered(1) unsupported on this jax build; constants are
        # still DMA'd only once (block index never changes), just double-resident.
        out = jax.block_until_ready(
            _build_pallas_call(N, B, Cin, O1, O2, H, W, x_nchw.dtype, False)(*args))

    out4 = out.reshape(N, Hs, Ws, O2)          # free reshape of the lane-dense output
    if not nchw_out:
        return out4                            # NHWC: skips the final big transpose
    return jnp.transpose(out4, (0, 3, 1, 2))   # NCHW to match the nn.Module contract


# ----------------------------------------------------------------------------
# Host-side float64 references (direct conv spec + folded-operator check)
# ----------------------------------------------------------------------------
def _np_reference(x, params):
    """float64: Upsample(2x bilinear, align_corners=False) -> Conv3x3+PReLU -> Conv3x3+PReLU."""
    Uh = _upsample_matrix(x.shape[2])
    Uw = _upsample_matrix(x.shape[3])
    up = np.einsum("ph,nchw->ncpw", Uh, x)
    up = np.einsum("qw,ncpw->ncpq", Uw, up)

    def conv_prelu(z, w, b, a):
        n, c, h, ww = z.shape
        o = w.shape[0]
        zp = np.pad(z, ((0, 0), (0, 0), (1, 1), (1, 1)))
        out = np.zeros((n, o, h, ww), dtype=z.dtype)
        for dy in range(3):
            for dx in range(3):
                out += np.einsum("oc,nchw->nohw", w[:, :, dy, dx],
                                 zp[:, :, dy:dy + h, dx:dx + ww])
        out += b[None, :, None, None]
        return np.where(out > 0, out, a[None, :, None, None] * out)

    z1 = conv_prelu(up, np.asarray(params["w1"], np.float64),
                    np.asarray(params["b1"], np.float64), np.asarray(params["a1"], np.float64))
    return conv_prelu(z1, np.asarray(params["w2"], np.float64),
                      np.asarray(params["b2"], np.float64), np.asarray(params["a2"], np.float64))


def _np_band_cat(a):
    zero = np.zeros((1, a.shape[1]), a.dtype)
    return np.concatenate([np.concatenate([zero, a[:-1]], axis=0), a,
                           np.concatenate([a[1:], zero], axis=0)], axis=1)


def _np_folded_forward(x, fold):
    """float64 mirror of the kernel math using the folded operators (tight-tolerance check)."""
    Cin, O1, O2, H, W = fold["dims"]
    Hs, Ws = 2 * H, 2 * W
    N = x.shape[0]
    g = np.transpose(x, (0, 2, 3, 1)).reshape(N, H, W * Cin)
    out = np.zeros((N, Hs, Ws * O2), dtype=np.float64)
    for n in range(N):
        u = fold["Uh"] @ g[n]
        z1 = _np_band_cat(u) @ fold["R1"] + fold["b1r"]
        z1 = np.where(z1 > 0, z1, fold["a1r"] * z1)
        z2 = _np_band_cat(z1) @ fold["R2"] + fold["b2r"]
        z2 = np.where(z2 > 0, z2, fold["a2r"] * z2)
        out[n] = z2
    return np.transpose(out.reshape(N, Hs, Ws, O2), (0, 3, 1, 2))


# ----------------------------------------------------------------------------
if __name__ == "__main__":
    N, CIN, COUT, H, W = 2, 4, 8, 16, 16

    key = jax.random.PRNGKey(0)
    k_x, k_w1, k_b1, k_w2, k_b2 = jax.random.split(key, 5)

    x = jax.random.normal(k_x, (N, CIN, H, W), dtype=jnp.float32)
    params = {
        "w1": 0.1 * jax.random.normal(k_w1, (COUT, CIN, 3, 3), dtype=jnp.float32),
        "b1": 0.05 * jax.random.normal(k_b1, (COUT,), dtype=jnp.float32),
        "a1": jnp.full((COUT,), 0.25, dtype=jnp.float32),      # PReLU default init
        "w2": 0.1 * jax.random.normal(k_w2, (COUT, COUT, 3, 3), dtype=jnp.float32),
        "b2": 0.05 * jax.random.normal(k_b2, (COUT,), dtype=jnp.float32),
        "a2": jnp.full((COUT,), 0.25, dtype=jnp.float32),
    }

    # 1) bilinear matrix vs an independent implementation (align_corners=False semantics)
    uh_resize = np.asarray(jax_image.resize(jnp.eye(H, dtype=jnp.float32), (2 * H, H),
                                            method="bilinear"))
    assert np.allclose(_upsample_matrix(H).astype(np.float32), uh_resize, atol=1e-5), \
        "bilinear upsample matrix disagrees with jax.image.resize"

    # 2) tight host-side check of the operator folding (float64, catches band-offset bugs)
    x64 = np.asarray(x, np.float64)
    ref64 = _np_reference(x64, params)
    fold64 = _np_folded_forward(x64, fold_operators(params, H, W))
    assert np.allclose(fold64, ref64, atol=1e-9, rtol=1e-9), "operator folding mismatch"

    # 3) fused bf16 Pallas kernel vs the float64 reference (bf16 tolerance)
    ops = prepare_operators(params, H, W, compute_dtype=jnp.bfloat16)
    out = jax.block_until_ready(upsampling_block_forward(x, ops))
    assert out.shape == (N, COUT, 2 * H, 2 * W), out.shape
    assert np.allclose(np.asarray(out, np.float64), ref64, atol=2e-2, rtol=2e-2), \
        "Pallas kernel mismatch vs reference"

    print("KERNEL_OK")
</pallas_src>

<mosaic_0001>
module attributes {stable_mosaic.version = 11 : i64} {
  func.func @_fused_kernel(%arg0: i32, %arg1: memref<2x16x64xf32, #tpu.memory_space<vmem>>, %arg2: memref<32x16xbf16, #tpu.memory_space<vmem>>, %arg3: memref<192x256xbf16, #tpu.memory_space<vmem>>, %arg4: memref<768x256xbf16, #tpu.memory_space<vmem>>, %arg5: memref<1x256xf32, #tpu.memory_space<vmem>>, %arg6: memref<1x256xf32, #tpu.memory_space<vmem>>, %arg7: memref<1x256xf32, #tpu.memory_space<vmem>>, %arg8: memref<1x256xf32, #tpu.memory_space<vmem>>, %arg9: memref<2x32x256xf32, #tpu.memory_space<vmem>>) attributes {dimension_semantics = [#tpu.dimension_semantics<parallel>], iteration_bounds = array<i64: 1>, scalar_prefetch = 0 : i64, scratch_operands = 0 : i64, tpu.core_type = #tpu.core_type<tc>, window_params = [{transform_indices = @transform_0, window_bounds = array<i64: 2, 16, 64>}, {pipeline_mode = #tpu.pipeline_mode<synchronous>, transform_indices = @transform_1, window_bounds = array<i64: 32, 16>}, {pipeline_mode = #tpu.pipeline_mode<synchronous>, transform_indices = @transform_2, window_bounds = array<i64: 192, 256>}, {pipeline_mode = #tpu.pipeline_mode<synchronous>, transform_indices = @transform_3, window_bounds = array<i64: 768, 256>}, {pipeline_mode = #tpu.pipeline_mode<synchronous>, transform_indices = @transform_4, window_bounds = array<i64: 1, 256>}, {pipeline_mode = #tpu.pipeline_mode<synchronous>, transform_indices = @transform_5, window_bounds = array<i64: 1, 256>}, {pipeline_mode = #tpu.pipeline_mode<synchronous>, transform_indices = @transform_6, window_bounds = array<i64: 1, 256>}, {pipeline_mode = #tpu.pipeline_mode<synchronous>, transform_indices = @transform_7, window_bounds = array<i64: 1, 256>}, {transform_indices = @transform_8, window_bounds = array<i64: 2, 32, 256>}]} {
    %c0 = arith.constant 0 : index
    %c0_0 = arith.constant 0 : index
    %0 = vector.load %arg2[%c0, %c0_0] : memref<32x16xbf16, #tpu.memory_space<vmem>>, vector<32x16xbf16>
    %c0_1 = arith.constant 0 : index
    %c0_2 = arith.constant 0 : index
    %c0_3 = arith.constant 0 : index
    %1 = vector.load %arg1[%c0_1, %c0_2, %c0_3] : memref<2x16x64xf32, #tpu.memory_space<vmem>>, vector<1x16x64xf32>
    %2 = vector.shape_cast %1 : vector<1x16x64xf32> to vector<16x64xf32>
    %3 = arith.truncf %2 : vector<16x64xf32> to vector<16x64xbf16>
    %cst = arith.constant dense<0.000000e+00> : vector<32x64xf32>
    %4 = tpu.matmul %0, %3, %cst {dimension_numbers = #tpu.dot_dimension_numbers<[1], [0], [0], [1], [0, 0, 1, 1], [], []>} : vector<32x16xbf16>, vector<16x64xbf16>, vector<32x64xf32> -> vector<32x64xf32>
    %cst_4 = arith.constant 0.000000e+00 : f32
    %5 = vector.broadcast %cst_4 : f32 to vector<1x64xf32>
    %6 = vector.extract_strided_slice %4 {offsets = [0, 0], sizes = [31, 64], strides = [1, 1]} : vector<32x64xf32> to vector<31x64xf32>
    %7 = tpu.concatenate %5, %6 in 0 : vector<1x64xf32>, vector<31x64xf32> -> vector<32x64xf32>
    %8 = vector.extract_strided_slice %4 {offsets = [1, 0], sizes = [31, 64], strides = [1, 1]} : vector<32x64xf32> to vector<31x64xf32>
    %9 = tpu.concatenate %8, %5 in 0 : vector<31x64xf32>, vector<1x64xf32> -> vector<32x64xf32>
    %10 = tpu.concatenate %7, %4, %9 in 1 : vector<32x64xf32>, vector<32x64xf32>, vector<32x64xf32> -> vector<32x192xf32>
    %c1 = arith.constant 1 : index
    %c0_5 = arith.constant 0 : index
    %c0_6 = arith.constant 0 : index
    %11 = vector.load %arg1[%c1, %c0_5, %c0_6] : memref<2x16x64xf32, #tpu.memory_space<vmem>>, vector<1x16x64xf32>
    %12 = vector.shape_cast %11 : vector<1x16x64xf32> to vector<16x64xf32>
    %13 = arith.truncf %12 : vector<16x64xf32> to vector<16x64xbf16>
    %cst_7 = arith.constant dense<0.000000e+00> : vector<32x64xf32>
    %14 = tpu.matmul %0, %13, %cst_7 {dimension_numbers = #tpu.dot_dimension_numbers<[1], [0], [0], [1], [0, 0, 1, 1], [], []>} : vector<32x16xbf16>, vector<16x64xbf16>, vector<32x64xf32> -> vector<32x64xf32>
    %cst_8 = arith.constant 0.000000e+00 : f32
    %15 = vector.broadcast %cst_8 : f32 to vector<1x64xf32>
    %16 = vector.extract_strided_slice %14 {offsets = [0, 0], sizes = [31, 64], strides = [1, 1]} : vector<32x64xf32> to vector<31x64xf32>
    %17 = tpu.concatenate %15, %16 in 0 : vector<1x64xf32>, vector<31x64xf32> -> vector<32x64xf32>
    %18 = vector.extract_strided_slice %14 {offsets = [1, 0], sizes = [31, 64], strides = [1, 1]} : vector<32x64xf32> to vector<31x64xf32>
    %19 = tpu.concatenate %18, %15 in 0 : vector<31x64xf32>, vector<1x64xf32> -> vector<32x64xf32>
    %20 = tpu.concatenate %17, %14, %19 in 1 : vector<32x64xf32>, vector<32x64xf32>, vector<32x64xf32> -> vector<32x192xf32>
    %21 = tpu.concatenate %10, %20 in 0 : vector<32x192xf32>, vector<32x192xf32> -> vector<64x192xf32>
    %22 = arith.truncf %21 : vector<64x192xf32> to vector<64x192xbf16>
    %c0_9 = arith.constant 0 : index
    %c0_10 = arith.constant 0 : index
    %23 = vector.load %arg3[%c0_9, %c0_10] : memref<192x256xbf16, #tpu.memory_space<vmem>>, vector<192x256xbf16>
    %cst_11 = arith.constant dense<0.000000e+00> : vector<64x256xf32>
    %24 = tpu.matmul %22, %23, %cst_11 {dimension_numbers = #tpu.dot_dimension_numbers<[1], [0], [0], [1], [0, 0, 1, 1], [], []>} : vector<64x192xbf16>, vector<192x256xbf16>, vector<64x256xf32> -> vector<64x256xf32>
    %c0_12 = arith.constant 0 : index
    %c0_13 = arith.constant 0 : index
    %25 = vector.load %arg5[%c0_12, %c0_13] : memref<1x256xf32, #tpu.memory_space<vmem>>, vector<1x256xf32>
    %26 = vector.broadcast %25 : vector<1x256xf32> to vector<64x256xf32>
    %27 = arith.addf %24, %26 : vector<64x256xf32>
    %cst_14 = arith.constant 0.000000e+00 : f32
    %28 = vector.broadcast %cst_14 : f32 to vector<64x256xf32>
    %29 = arith.cmpf ogt, %27, %28 : vector<64x256xf32>
    %c0_15 = arith.constant 0 : index
    %c0_16 = arith.constant 0 : index
    %30 = vector.load %arg6[%c0_15, %c0_16] : memref<1x256xf32, #tpu.memory_space<vmem>>, vector<1x256xf32>
    %31 = vector.broadcast %30 : vector<1x256xf32> to vector<64x256xf32>
    %32 = arith.mulf %31, %27 : vector<64x256xf32>
    %33 = arith.select %29, %27, %32 : vector<64x256xi1>, vector<64x256xf32>
    %34 = vector.extract_strided_slice %33 {offsets = [0, 0], sizes = [32, 256], strides = [1, 1]} : vector<64x256xf32> to vector<32x256xf32>
    %cst_17 = arith.constant 0.000000e+00 : f32
    %35 = vector.broadcast %cst_17 : f32 to vector<1x256xf32>
    %36 = vector.extract_strided_slice %34 {offsets = [0, 0], sizes = [31, 256], strides = [1, 1]} : vector<32x256xf32> to vector<31x256xf32>
    %37 = tpu.concatenate %35, %36 in 0 : vector<1x256xf32>, vector<31x256xf32> -> vector<32x256xf32>
    %38 = vector.extract_strided_slice %34 {offsets = [1, 0], sizes = [31, 256], strides = [1, 1]} : vector<32x256xf32> to vector<31x256xf32>
    %39 = tpu.concatenate %38, %35 in 0 : vector<31x256xf32>, vector<1x256xf32> -> vector<32x256xf32>
    %40 = tpu.concatenate %37, %34, %39 in 1 : vector<32x256xf32>, vector<32x256xf32>, vector<32x256xf32> -> vector<32x768xf32>
    %41 = vector.extract_strided_slice %33 {offsets = [32, 0], sizes = [32, 256], strides = [1, 1]} : vector<64x256xf32> to vector<32x256xf32>
    %cst_18 = arith.constant 0.000000e+00 : f32
    %42 = vector.broadcast %cst_18 : f32 to vector<1x256xf32>
    %43 = vector.extract_strided_slice %41 {offsets = [0, 0], sizes = [31, 256], strides = [1, 1]} : vector<32x256xf32> to vector<31x256xf32>
    %44 = tpu.concatenate %42, %43 in 0 : vector<1x256xf32>, vector<31x256xf32> -> vector<32x256xf32>
    %45 = vector.extract_strided_slice %41 {offsets = [1, 0], sizes = [31, 256], strides = [1, 1]} : vector<32x256xf32> to vector<31x256xf32>
    %46 = tpu.concatenate %45, %42 in 0 : vector<31x256xf32>, vector<1x256xf32> -> vector<32x256xf32>
    %47 = tpu.concatenate %44, %41, %46 in 1 : vector<32x256xf32>, vector<32x256xf32>, vector<32x256xf32> -> vector<32x768xf32>
    %48 = tpu.concatenate %40, %47 in 0 : vector<32x768xf32>, vector<32x768xf32> -> vector<64x768xf32>
    %49 = arith.truncf %48 : vector<64x768xf32> to vector<64x768xbf16>
    %c0_19 = arith.constant 0 : index
    %c0_20 = arith.constant 0 : index
    %50 = vector.load %arg4[%c0_19, %c0_20] : memref<768x256xbf16, #tpu.memory_space<vmem>>, vector<768x256xbf16>
    %cst_21 = arith.constant dense<0.000000e+00> : vector<64x256xf32>
    %51 = tpu.matmul %49, %50, %cst_21 {dimension_numbers = #tpu.dot_dimension_numbers<[1], [0], [0], [1], [0, 0, 1, 1], [], []>} : vector<64x768xbf16>, vector<768x256xbf16>, vector<64x256xf32> -> vector<64x256xf32>
    %c0_22 = arith.constant 0 : index
    %c0_23 = arith.constant 0 : index
    %52 = vector.load %arg7[%c0_22, %c0_23] : memref<1x256xf32, #tpu.memory_space<vmem>>, vector<1x256xf32>
    %53 = vector.broadcast %52 : vector<1x256xf32> to vector<64x256xf32>
    %54 = arith.addf %51, %53 : vector<64x256xf32>
    %cst_24 = arith.constant 0.000000e+00 : f32
    %55 = vector.broadcast %cst_24 : f32 to vector<64x256xf32>
    %56 = arith.cmpf ogt, %54, %55 : vector<64x256xf32>
    %c0_25 = arith.constant 0 : index
    %c0_26 = arith.constant 0 : index
    %57 = vector.load %arg8[%c0_25, %c0_26] : memref<1x256xf32, #tpu.memory_space<vmem>>, vector<1x256xf32>
    %58 = vector.broadcast %57 : vector<1x256xf32> to vector<64x256xf32>
    %59 = arith.mulf %58, %54 : vector<64x256xf32>
    %60 = arith.select %56, %54, %59 : vector<64x256xi1>, vector<64x256xf32>
    %61 = vector.shape_cast %60 : vector<64x256xf32> to vector<2x32x256xf32>
    %c0_27 = arith.constant 0 : index
    %c0_28 = arith.constant 0 : index
    %c0_29 = arith.constant 0 : index
    %62 = vector.load %arg9[%c0_27, %c0_28, %c0_29] : memref<2x32x256xf32, #tpu.memory_space<vmem>>, vector<2x32x256xf32>
    tpu.vector_store %arg9[%c0_27, %c0_28, %c0_29], %61 {strides = array<i32>} : memref<2x32x256xf32, #tpu.memory_space<vmem>>, vector<2x32x256xf32>,
    return
  }
  func.func @transform_0(%arg0: i32) -> (i32, i32, i32) {
    %c0_i32 = arith.constant 0 : i32
    %c0_i32_0 = arith.constant 0 : i32
    %c0_i32_1 = arith.constant 0 : i32
    return %arg0, %c0_i32, %c0_i32_0 : i32, i32, i32
  }
  func.func @transform_1(%arg0: i32) -> (i32, i32) {
    %c0_i32 = arith.constant 0 : i32
    %c0_i32_0 = arith.constant 0 : i32
    %c0_i32_1 = arith.constant 0 : i32
    return %c0_i32, %c0_i32_0 : i32, i32
  }
  func.func @transform_2(%arg0: i32) -> (i32, i32) {
    %c0_i32 = arith.constant 0 : i32
    %c0_i32_0 = arith.constant 0 : i32
    %c0_i32_1 = arith.constant 0 : i32
    return %c0_i32, %c0_i32_0 : i32, i32
  }
  func.func @transform_3(%arg0: i32) -> (i32, i32) {
    %c0_i32 = arith.constant 0 : i32
    %c0_i32_0 = arith.constant 0 : i32
    %c0_i32_1 = arith.constant 0 : i32
    return %c0_i32, %c0_i32_0 : i32, i32
  }
  func.func @transform_4(%arg0: i32) -> (i32, i32) {
    %c0_i32 = arith.constant 0 : i32
    %c0_i32_0 = arith.constant 0 : i32
    %c0_i32_1 = arith.constant 0 : i32
    return %c0_i32, %c0_i32_0 : i32, i32
  }
  func.func @transform_5(%arg0: i32) -> (i32, i32) {
    %c0_i32 = arith.constant 0 : i32
    %c0_i32_0 = arith.constant 0 : i32
    %c0_i32_1 = arith.constant 0 : i32
    return %c0_i32, %c0_i32_0 : i32, i32
  }
  func.func @transform_6(%arg0: i32) -> (i32, i32) {
    %c0_i32 = arith.constant 0 : i32
    %c0_i32_0 = arith.constant 0 : i32
    %c0_i32_1 = arith.constant 0 : i32
    return %c0_i32, %c0_i32_0 : i32, i32
  }
  func.func @transform_7(%arg0: i32) -> (i32, i32) {
    %c0_i32 = arith.constant 0 : i32
    %c0_i32_0 = arith.constant 0 : i32
    %c0_i32_1 = arith.constant 0 : i32
    return %c0_i32, %c0_i32_0 : i32, i32
  }
  func.func @transform_8(%arg0: i32) -> (i32, i32, i32) {
    %c0_i32 = arith.constant 0 : i32
    %c0_i32_0 = arith.constant 0 : i32
    %c0_i32_1 = arith.constant 0 : i32
    return %arg0, %c0_i32, %c0_i32_0 : i32, i32, i32
  }
}

module attributes {stable_mosaic.version = 11 : i64} {
  func.func @_fused_kernel(%arg0: i32, %arg1: memref<2x16x64xf32, #tpu.memory_space<vmem>>, %arg2: memref<32x16xbf16, #tpu.memory_space<vmem>>, %arg3: memref<192x256xbf16, #tpu.memory_space<vmem>>, %arg4: memref<768x256xbf16, #tpu.memory_space<vmem>>, %arg5: memref<1x256xf32, #tpu.memory_space<vmem>>, %arg6: memref<1x256xf32, #tpu.memory_space<vmem>>, %arg7: memref<1x256xf32, #tpu.memory_space<vmem>>, %arg8: memref<1x256xf32, #tpu.memory_space<vmem>>, %arg9: memref<2x32x256xf32, #tpu.memory_space<vmem>>) attributes {dimension_semantics = [#tpu.dimension_semantics<parallel>], iteration_bounds = array<i64: 1>, scalar_prefetch = 0 : i64, scratch_operands = 0 : i64, tpu.core_type = #tpu.core_type<tc>, window_params = [{transform_indices = @transform_0, window_bounds = array<i64: 2, 16, 64>}, {pipeline_mode = #tpu.pipeline_mode<synchronous>, transform_indices = @transform_1, window_bounds = array<i64: 32, 16>}, {pipeline_mode = #tpu.pipeline_mode<synchronous>, transform_indices = @transform_2, window_bounds = array<i64: 192, 256>}, {pipeline_mode = #tpu.pipeline_mode<synchronous>, transform_indices = @transform_3, window_bounds = array<i64: 768, 256>}, {pipeline_mode = #tpu.pipeline_mode<synchronous>, transform_indices = @transform_4, window_bounds = array<i64: 1, 256>}, {pipeline_mode = #tpu.pipeline_mode<synchronous>, transform_indices = @transform_5, window_bounds = array<i64: 1, 256>}, {pipeline_mode = #tpu.pipeline_mode<synchronous>, transform_indices = @transform_6, window_bounds = array<i64: 1, 256>}, {pipeline_mode = #tpu.pipeline_mode<synchronous>, transform_indices = @transform_7, window_bounds = array<i64: 1, 256>}, {transform_indices = @transform_8, window_bounds = array<i64: 2, 32, 256>}]} {
    %c0 = arith.constant 0 : index
    %c0_0 = arith.constant 0 : index
    %0 = vector.load %arg2[%c0, %c0_0] : memref<32x16xbf16, #tpu.memory_space<vmem>>, vector<32x16xbf16>
    %c0_1 = arith.constant 0 : index
    %c0_2 = arith.constant 0 : index
    %c0_3 = arith.constant 0 : index
    %1 = vector.load %arg1[%c0_1, %c0_2, %c0_3] : memref<2x16x64xf32, #tpu.memory_space<vmem>>, vector<1x16x64xf32>
    %2 = vector.shape_cast %1 : vector<1x16x64xf32> to vector<16x64xf32>
    %3 = arith.truncf %2 : vector<16x64xf32> to vector<16x64xbf16>
    %cst = arith.constant dense<0.000000e+00> : vector<32x64xf32>
    %4 = tpu.matmul %0, %3, %cst {dimension_numbers = #tpu.dot_dimension_numbers<[1], [0], [0], [1], [0, 0, 1, 1], [], []>} : vector<32x16xbf16>, vector<16x64xbf16>, vector<32x64xf32> -> vector<32x64xf32>
    %cst_4 = arith.constant 0.000000e+00 : f32
    %5 = vector.broadcast %cst_4 : f32 to vector<1x64xf32>
    %6 = vector.extract_strided_slice %4 {offsets = [0, 0], sizes = [31, 64], strides = [1, 1]} : vector<32x64xf32> to vector<31x64xf32>
    %7 = tpu.concatenate %5, %6 in 0 : vector<1x64xf32>, vector<31x64xf32> -> vector<32x64xf32>
    %8 = vector.extract_strided_slice %4 {offsets = [1, 0], sizes = [31, 64], strides = [1, 1]} : vector<32x64xf32> to vector<31x64xf32>
    %9 = tpu.concatenate %8, %5 in 0 : vector<31x64xf32>, vector<1x64xf32> -> vector<32x64xf32>
    %10 = tpu.concatenate %7, %4, %9 in 1 : vector<32x64xf32>, vector<32x64xf32>, vector<32x64xf32> -> vector<32x192xf32>
    %c1 = arith.constant 1 : index
    %c0_5 = arith.constant 0 : index
    %c0_6 = arith.constant 0 : index
    %11 = vector.load %arg1[%c1, %c0_5, %c0_6] : memref<2x16x64xf32, #tpu.memory_space<vmem>>, vector<1x16x64xf32>
    %12 = vector.shape_cast %11 : vector<1x16x64xf32> to vector<16x64xf32>
    %13 = arith.truncf %12 : vector<16x64xf32> to vector<16x64xbf16>
    %cst_7 = arith.constant dense<0.000000e+00> : vector<32x64xf32>
    %14 = tpu.matmul %0, %13, %cst_7 {dimension_numbers = #tpu.dot_dimension_numbers<[1], [0], [0], [1], [0, 0, 1, 1], [], []>} : vector<32x16xbf16>, vector<16x64xbf16>, vector<32x64xf32> -> vector<32x64xf32>
    %cst_8 = arith.constant 0.000000e+00 : f32
    %15 = vector.broadcast %cst_8 : f32 to vector<1x64xf32>
    %16 = vector.extract_strided_slice %14 {offsets = [0, 0], sizes = [31, 64], strides = [1, 1]} : vector<32x64xf32> to vector<31x64xf32>
    %17 = tpu.concatenate %15, %16 in 0 : vector<1x64xf32>, vector<31x64xf32> -> vector<32x64xf32>
    %18 = vector.extract_strided_slice %14 {offsets = [1, 0], sizes = [31, 64], strides = [1, 1]} : vector<32x64xf32> to vector<31x64xf32>
    %19 = tpu.concatenate %18, %15 in 0 : vector<31x64xf32>, vector<1x64xf32> -> vector<32x64xf32>
    %20 = tpu.concatenate %17, %14, %19 in 1 : vector<32x64xf32>, vector<32x64xf32>, vector<32x64xf32> -> vector<32x192xf32>
    %21 = tpu.concatenate %10, %20 in 0 : vector<32x192xf32>, vector<32x192xf32> -> vector<64x192xf32>
    %22 = arith.truncf %21 : vector<64x192xf32> to vector<64x192xbf16>
    %c0_9 = arith.constant 0 : index
    %c0_10 = arith.constant 0 : index
    %23 = vector.load %arg3[%c0_9, %c0_10] : memref<192x256xbf16, #tpu.memory_space<vmem>>, vector<192x256xbf16>
    %cst_11 = arith.constant dense<0.000000e+00> : vector<64x256xf32>
    %24 = tpu.matmul %22, %23, %cst_11 {dimension_numbers = #tpu.dot_dimension_numbers<[1], [0], [0], [1], [0, 0, 1, 1], [], []>} : vector<64x192xbf16>, vector<192x256xbf16>, vector<64x256xf32> -> vector<64x256xf32>
    %c0_12 = arith.constant 0 : index
    %c0_13 = arith.constant 0 : index
    %25 = vector.load %arg5[%c0_12, %c0_13] : memref<1x256xf32, #tpu.memory_space<vmem>>, vector<1x256xf32>
    %26 = vector.broadcast %25 : vector<1x256xf32> to vector<64x256xf32>
    %27 = arith.addf %24, %26 : vector<64x256xf32>
    %cst_14 = arith.constant 0.000000e+00 : f32
    %28 = vector.broadcast %cst_14 : f32 to vector<64x256xf32>
    %29 = arith.cmpf ogt, %27, %28 : vector<64x256xf32>
    %c0_15 = arith.constant 0 : index
    %c0_16 = arith.constant 0 : index
    %30 = vector.load %arg6[%c0_15, %c0_16] : memref<1x256xf32, #tpu.memory_space<vmem>>, vector<1x256xf32>
    %31 = vector.broadcast %30 : vector<1x256xf32> to vector<64x256xf32>
    %32 = arith.mulf %31, %27 : vector<64x256xf32>
    %33 = arith.select %29, %27, %32 : vector<64x256xi1>, vector<64x256xf32>
    %34 = vector.extract_strided_slice %33 {offsets = [0, 0], sizes = [32, 256], strides = [1, 1]} : vector<64x256xf32> to vector<32x256xf32>
    %cst_17 = arith.constant 0.000000e+00 : f32
    %35 = vector.broadcast %cst_17 : f32 to vector<1x256xf32>
    %36 = vector.extract_strided_slice %34 {offsets = [0, 0], sizes = [31, 256], strides = [1, 1]} : vector<32x256xf32> to vector<31x256xf32>
    %37 = tpu.concatenate %35, %36 in 0 : vector<1x256xf32>, vector<31x256xf32> -> vector<32x256xf32>
    %38 = vector.extract_strided_slice %34 {offsets = [1, 0], sizes = [31, 256], strides = [1, 1]} : vector<32x256xf32> to vector<31x256xf32>
    %39 = tpu.concatenate %38, %35 in 0 : vector<31x256xf32>, vector<1x256xf32> -> vector<32x256xf32>
    %40 = tpu.concatenate %37, %34, %39 in 1 : vector<32x256xf32>, vector<32x256xf32>, vector<32x256xf32> -> vector<32x768xf32>
    %41 = vector.extract_strided_slice %33 {offsets = [32, 0], sizes = [32, 256], strides = [1, 1]} : vector<64x256xf32> to vector<32x256xf32>
    %cst_18 = arith.constant 0.000000e+00 : f32
    %42 = vector.broadcast %cst_18 : f32 to vector<1x256xf32>
    %43 = vector.extract_strided_slice %41 {offsets = [0, 0], sizes = [31, 256], strides = [1, 1]} : vector<32x256xf32> to vector<31x256xf32>
    %44 = tpu.concatenate %42, %43 in 0 : vector<1x256xf32>, vector<31x256xf32> -> vector<32x256xf32>
    %45 = vector.extract_strided_slice %41 {offsets = [1, 0], sizes = [31, 256], strides = [1, 1]} : vector<32x256xf32> to vector<31x256xf32>
    %46 = tpu.concatenate %45, %42 in 0 : vector<31x256xf32>, vector<1x256xf32> -> vector<32x256xf32>
    %47 = tpu.concatenate %44, %41, %46 in 1 : vector<32x256xf32>, vector<32x256xf32>, vector<32x256xf32> -> vector<32x768xf32>
    %48 = tpu.concatenate %40, %47 in 0 : vector<32x768xf32>, vector<32x768xf32> -> vector<64x768xf32>
    %49 = arith.truncf %48 : vector<64x768xf32> to vector<64x768xbf16>
    %c0_19 = arith.constant 0 : index
    %c0_20 = arith.constant 0 : index
    %50 = vector.load %arg4[%c0_19, %c0_20] : memref<768x256xbf16, #tpu.memory_space<vmem>>, vector<768x256xbf16>
    %cst_21 = arith.constant dense<0.000000e+00> : vector<64x256xf32>
    %51 = tpu.matmul %49, %50, %cst_21 {dimension_numbers = #tpu.dot_dimension_numbers<[1], [0], [0], [1], [0, 0, 1, 1], [], []>} : vector<64x768xbf16>, vector<768x256xbf16>, vector<64x256xf32> -> vector<64x256xf32>
    %c0_22 = arith.constant 0 : index
    %c0_23 = arith.constant 0 : index
    %52 = vector.load %arg7[%c0_22, %c0_23] : memref<1x256xf32, #tpu.memory_space<vmem>>, vector<1x256xf32>
    %53 = vector.broadcast %52 : vector<1x256xf32> to vector<64x256xf32>
    %54 = arith.addf %51, %53 : vector<64x256xf32>
    %cst_24 = arith.constant 0.000000e+00 : f32
    %55 = vector.broadcast %cst_24 : f32 to vector<64x256xf32>
    %56 = arith.cmpf ogt, %54, %55 : vector<64x256xf32>
    %c0_25 = arith.constant 0 : index
    %c0_26 = arith.constant 0 : index
    %57 = vector.load %arg8[%c0_25, %c0_26] : memref<1x256xf32, #tpu.memory_space<vmem>>, vector<1x256xf32>
    %58 = vector.broadcast %57 : vector<1x256xf32> to vector<64x256xf32>
    %59 = arith.mulf %58, %54 : vector<64x256xf32>
    %60 = arith.select %56, %54, %59 : vector<64x256xi1>, vector<64x256xf32>
    %61 = vector.shape_cast %60 : vector<64x256xf32> to vector<2x32x256xf32>
    %c0_27 = arith.constant 0 : index
    %c0_28 = arith.constant 0 : index
    %c0_29 = arith.constant 0 : index
    %62 = vector.load %arg9[%c0_27, %c0_28, %c0_29] : memref<2x32x256xf32, #tpu.memory_space<vmem>>, vector<2x32x256xf32>
    tpu.vector_store %arg9[%c0_27, %c0_28, %c0_29], %61 {strides = array<i32>} : memref<2x32x256xf32, #tpu.memory_space<vmem>>, vector<2x32x256xf32>,
    return
  }
  func.func @transform_0(%arg0: i32) -> (i32, i32, i32) {
    %c0_i32 = arith.constant 0 : i32
    %c0_i32_0 = arith.constant 0 : i32
    %c0_i32_1 = arith.constant 0 : i32
    return %arg0, %c0_i32, %c0_i32_0 : i32, i32, i32
  }
  func.func @transform_1(%arg0: i32) -> (i32, i32) {
    %c0_i32 = arith.constant 0 : i32
    %c0_i32_0 = arith.constant 0 : i32
    %c0_i32_1 = arith.constant 0 : i32
    return %c0_i32, %c0_i32_0 : i32, i32
  }
  func.func @transform_2(%arg0: i32) -> (i32, i32) {
    %c0_i32 = arith.constant 0 : i32
    %c0_i32_0 = arith.constant 0 : i32
    %c0_i32_1 = arith.constant 0 : i32
    return %c0_i32, %c0_i32_0 : i32, i32
  }
  func.func @transform_3(%arg0: i32) -> (i32, i32) {
    %c0_i32 = arith.constant 0 : i32
    %c0_i32_0 = arith.constant 0 : i32
    %c0_i32_1 = arith.constant 0 : i32
    return %c0_i32, %c0_i32_0 : i32, i32
  }
  func.func @transform_4(%arg0: i32) -> (i32, i32) {
    %c0_i32 = arith.constant 0 : i32
    %c0_i32_0 = arith.constant 0 : i32
    %c0_i32_1 = arith.constant 0 : i32
    return %c0_i32, %c0_i32_0 : i32, i32
  }
  func.func @transform_5(%arg0: i32) -> (i32, i32) {
    %c0_i32 = arith.constant 0 : i32
    %c0_i32_0 = arith.constant 0 : i32
    %c0_i32_1 = arith.constant 0 : i32
    return %c0_i32, %c0_i32_0 : i32, i32
  }
  func.func @transform_6(%arg0: i32) -> (i32, i32) {
    %c0_i32 = arith.constant 0 : i32
    %c0_i32_0 = arith.constant 0 : i32
    %c0_i32_1 = arith.constant 0 : i32
    return %c0_i32, %c0_i32_0 : i32, i32
  }
  func.func @transform_7(%arg0: i32) -> (i32, i32) {
    %c0_i32 = arith.constant 0 : i32
    %c0_i32_0 = arith.constant 0 : i32
    %c0_i32_1 = arith.constant 0 : i32
    return %c0_i32, %c0_i32_0 : i32, i32
  }
  func.func @transform_8(%arg0: i32) -> (i32, i32, i32) {
    %c0_i32 = arith.constant 0 : i32
    %c0_i32_0 = arith.constant 0 : i32
    %c0_i32_1 = arith.constant 0 : i32
    return %arg0, %c0_i32, %c0_i32_0 : i32, i32, i32
  }
}

</mosaic_0001>

<llo_original>
// kernel: tpu_custom_call.1
$region0: #{tpu_custom_call.1}
  #allocation0 [shape = 'u32[]', space=smem, size = 0x4, offset = 0x4, fixed_abs, tag = 'smem constant byte address 0x4 - core index']
  #allocation1 [shape = 'u32[72,128]{1,0:T(1,128)}', space=vmem, size = 0x9000, scoped, tag = 'internal scratch']
  %s0 = inlined_call_operand.hbm [shape: f32[2,16,64], index: 0, kind: input, shape index: {}]
  %s1 = inlined_call_operand.vmem [shape: bf16[32,16], index: 1, kind: input, shape index: {}]
  %s2 = inlined_call_operand.hbm [shape: bf16[192,256], index: 2, kind: input, shape index: {}]
  %s3 = inlined_call_operand.hbm [shape: bf16[768,256], index: 3, kind: input, shape index: {}]
  %s4 = inlined_call_operand.vmem [shape: f32[1,256], index: 4, kind: input, shape index: {}]
  %s5 = inlined_call_operand.vmem [shape: f32[1,256], index: 5, kind: input, shape index: {}]
  %s6 = inlined_call_operand.vmem [shape: f32[1,256], index: 6, kind: input, shape index: {}]
  %s7 = inlined_call_operand.vmem [shape: f32[1,256], index: 7, kind: input, shape index: {}]
  %s8 = inlined_call_operand.hbm [shape: f32[2,32,256], index: 8, kind: output, shape index: {}]
  %s9 = sld [smem:[#allocation0]]
  $region54: #{tpu_custom_call.1} parent=0
    _
  %s11 = ssub.s32 1, %s9
  %s12 = scalar_select 0, %s11, %s9
  $region1: #{tpu_custom_call.1} parent=0
    #allocation2 [shape = 'u8[16384]{0}', space=vmem, size = 0x4000, scoped, tag = 'input window, operand 0, single buffered']
    #allocation3 [shape = 's32[1]{0}', space=sflag, size = 0x4, scoped, tag = 'scoped memory for tpu_custom_call.1']
    #allocation4 [shape = 's32[1]{0}', space=sflag, size = 0x4, scoped, tag = 'scoped memory for tpu_custom_call.1']
    #allocation5 [shape = 'u8[98304]{0}', space=vmem, size = 0x18000, scoped, tag = 'input window, operand 2, single buffered']
    #allocation6 [shape = 's32[1]{0}', space=sflag, size = 0x4, scoped, tag = 'scoped memory for tpu_custom_call.1']
    #allocation7 [shape = 'u8[393216]{0}', space=vmem, size = 0x60000, scoped, tag = 'input window, operand 3, single buffered']
    #allocation8 [shape = 'u8[65536]{0}', space=vmem, size = 0x10000, scoped, tag = 'output window, operand 0, single buffered']
    %13 = vsyncpa [#allocation3], 0
    %14 = vsyncpa [#allocation6], 0
    %15 = vsyncpa [#allocation4], 0
    // Predicated region
    $region2: #{tpu_custom_call.1} parent=1 // pred_check
      _
    $region3: #{tpu_custom_call.1} parent=1 // pred_check_branch
      %17 = sbr.rel (0) target = $region5
    $region4: #{tpu_custom_call.1} parent=1 // pred_region
      %19 = vsyncadd [#allocation3], 0
      %s20 = sshll.u32 %s0, 4
      %s21 = int_to_ptr.hbm [resolvable:$true] %s20
      %s22 = sshll.u32 [#allocation2], 4
      %s23 = int_to_ptr.vmem [resolvable:$true] %s22
      %28 = dma.hbm_to_vmem [thread:$0]  %s21, 512, %s23, [#allocation3], 128, 128, 8
    $region5: #{tpu_custom_call.1} parent=1 // pred_fallthru
      _
    // Predicated region
    $region6: #{tpu_custom_call.1} parent=1 // pred_check
      _
    $region7: #{tpu_custom_call.1} parent=1 // pred_check_branch
      %30 = sbr.rel (0) target = $region9
    $region8: #{tpu_custom_call.1} parent=1 // pred_region
      _
    $region9: #{tpu_custom_call.1} parent=1 // pred_fallthru
      _
    // Predicated region
    $region10: #{tpu_custom_call.1} parent=1 // pred_check
      _
    $region11: #{tpu_custom_call.1} parent=1 // pred_check_branch
      %32 = sbr.rel (0) target = $region13
    $region12: #{tpu_custom_call.1} parent=1 // pred_region
      %34 = vsyncadd [#allocation6], 0
      %s35 = sshll.u32 %s2, 4
      %s36 = int_to_ptr.hbm [resolvable:$true] %s35
      %s37 = sshll.u32 [#allocation5], 4
      %s38 = int_to_ptr.vmem [resolvable:$true] %s37
      %43 = dma.hbm_to_vmem [thread:$0]  %s36, 3072, %s38, [#allocation6], 128, 128, 8
    $region13: #{tpu_custom_call.1} parent=1 // pred_fallthru
      _
    // Predicated region
    $region14: #{tpu_custom_call.1} parent=1 // pred_check
      _
    $region15: #{tpu_custom_call.1} parent=1 // pred_check_branch
      %45 = sbr.rel (0) target = $region17
    $region16: #{tpu_custom_call.1} parent=1 // pred_region
      %47 = vsyncadd [#allocation6], 0
      %s48 = sshll.u32 %s3, 4
      %s49 = int_to_ptr.hbm [resolvable:$true] %s48
      %s50 = sshll.u32 [#allocation7], 4
      %s51 = int_to_ptr.vmem [resolvable:$true] %s50
      %56 = dma.hbm_to_vmem [thread:$0]  %s49, 12288, %s51, [#allocation6], 128, 128, 8
    $region17: #{tpu_custom_call.1} parent=1 // pred_fallthru
      _
    // Predicated region
    $region18: #{tpu_custom_call.1} parent=1 // pred_check
      _
    $region19: #{tpu_custom_call.1} parent=1 // pred_check_branch
      %58 = sbr.rel (0) target = $region21
    $region20: #{tpu_custom_call.1} parent=1 // pred_region
      _
    $region21: #{tpu_custom_call.1} parent=1 // pred_fallthru
      _
    // Predicated region
    $region22: #{tpu_custom_call.1} parent=1 // pred_check
      _
    $region23: #{tpu_custom_call.1} parent=1 // pred_check_branch
      %60 = sbr.rel (0) target = $region25
    $region24: #{tpu_custom_call.1} parent=1 // pred_region
      _
    $region25: #{tpu_custom_call.1} parent=1 // pred_fallthru
      _
    // Predicated region
    $region26: #{tpu_custom_call.1} parent=1 // pred_check
      _
    $region27: #{tpu_custom_call.1} parent=1 // pred_check_branch
      %62 = sbr.rel (0) target = $region29
    $region28: #{tpu_custom_call.1} parent=1 // pred_region
      _
    $region29: #{tpu_custom_call.1} parent=1 // pred_fallthru
      _
    // Predicated region
    $region30: #{tpu_custom_call.1} parent=1 // pred_check
      _
    $region31: #{tpu_custom_call.1} parent=1 // pred_check_branch
      %64 = sbr.rel (0) target = $region33
    $region32: #{tpu_custom_call.1} parent=1 // pred_region
      _
    $region33: #{tpu_custom_call.1} parent=1 // pred_fallthru
      _
    // Predicated region
    $region34: #{tpu_custom_call.1} parent=1 // pred_check
      _
    $region35: #{tpu_custom_call.1} parent=1 // pred_check_branch
      %66 = sbr.rel (0) target = $region37
    $region36: #{tpu_custom_call.1} parent=1 // pred_region
      %68 = dma.done [#allocation3], 512
    $region37: #{tpu_custom_call.1} parent=1 // pred_fallthru
      _
    // Predicated region
    $region38: #{tpu_custom_call.1} parent=1 // pred_check
      _
    $region39: #{tpu_custom_call.1} parent=1 // pred_check_branch
      %70 = sbr.rel (0) target = $region41
    $region40: #{tpu_custom_call.1} parent=1 // pred_region
      %72 = dma.done [#allocation6], 3072
    $region41: #{tpu_custom_call.1} parent=1 // pred_fallthru
      _
    // Predicated region
    $region42: #{tpu_custom_call.1} parent=1 // pred_check
      _
    $region43: #{tpu_custom_call.1} parent=1 // pred_check_branch
      %74 = sbr.rel (0) target = $region45
    $region44: #{tpu_custom_call.1} parent=1 // pred_region
      %76 = dma.done [#allocation6], 12288
    $region45: #{tpu_custom_call.1} parent=1 // pred_fallthru
      _
    %v78 = vld [vmem:[%s1] sm:$0xf]
    %v79 = vld [vmem:[%s1 + $0x4] sm:$0xf]
    %v80 = vld [vmem:[%s1 + $0x8] sm:$0xf]
    %v81 = vld [vmem:[%s1 + $0xc] sm:$0xf]
    %v82 = vld [vmem:[#allocation2] sm:$0xff]
    %v83 = vld [vmem:[#allocation2 + $0x8] sm:$0xff]
    %v84 = vpack.c.bf16 %v83, %v82
    %v89 = vunpack.c.l.b16 %v78
    %v90 = vunpack.c.l.b16 %v79
    %v91 = vunpack.c.l.b16 %v80
    %v92 = vunpack.c.l.b16 %v81
    %v93 = vpack.c.b16 %v90, %v89
    %v94 = vpack.c.b16 %v92, %v91
    %vm95 = vcmask 130048
    %v97 = vsel %vm95, %v93, 0
    %v100 = vsel %vm95, %v94, 0
    %102 = vmatpush.bf16.msra.mxu0 0
    %103 = vmatpush.bf16.msra.mxu0 0
    %104 = vmatpush.bf16.msra.mxu0 0
    %105 = vmatpush.bf16.msra.mxu0 0
    %106 = vmatpush.bf16.msra.mxu0 0
    %107 = vmatpush.bf16.msra.mxu0 0
    %108 = vmatpush.bf16.msra.mxu0 0
    %109 = vmatpush.bf16.msra.mxu0 %v84
    %110 = vmatmul.bf16.gmra.mxu0 %v97
    %v111 = vpop.f32.mrf.mxu0
    %v112 = vadd.f32 0.0, %v111
    %v113 = vpop.f32.mrf.mxu0
    %v114 = vadd.f32 0.0, %v113
    %115 = vmatmul.bf16.gmra.mxu0 %v100
    %v116 = vpop.f32.mrf.mxu0
    %v117 = vadd.f32 0.0, %v116
    %v118 = vpop.f32.mrf.mxu0
    %v119 = vadd.f32 0.0, %v118
    %120 = vdwg.mxu0
    %vm125 = vcmask 1040384
    %v126 = vrot.slane %v112, 7
    %v127 = vrot.slane %v114, 7
    %v128 = vsel %vm125, %v126, %v127
    %v129 = vrot.slane %v117, 7
    %v130 = vsel %vm125, %v127, %v129
    %v131 = vrot.slane %v119, 7
    %v132 = vsel %vm125, %v129, %v131
    %v137 = vsel %vm125, 0.0, %v126
    %vm138 = vcmask 1046528
    %v139 = vrot.slane %v112, 1
    %v140 = vrot.slane %v114, 1
    %v141 = vsel %vm138, %v139, %v140
    %v142 = vrot.slane %v117, 1
    %v143 = vsel %vm138, %v140, %v142
    %v144 = vrot.slane %v119, 1
    %v145 = vsel %vm138, %v142, %v144
    %v150 = vsel %vm138, %v144, 0.0
    %151 = vrot.lane.b32.xlu0 %v112, 64
    %v152 = vpop.permute.xlu0 %151
    %153 = vrot.lane.b32.xlu0 %v114, 64
    %v154 = vpop.permute.xlu0 %153
    %155 = vrot.lane.b32.xlu0 %v117, 64
    %v156 = vpop.permute.xlu0 %155
    %157 = vrot.lane.b32.xlu0 %v119, 64
    %v158 = vpop.permute.xlu0 %157
    %vm163 = vcmask 523264
    %v164 = vsel %vm163, %v137, %v152
    %v165 = vsel %vm163, %v128, %v154
    %v166 = vsel %vm163, %v130, %v156
    %v167 = vsel %vm163, %v132, %v158
    %s168 = scalar_lea.vmem [#allocation2], 16
    %v169 = vld [vmem:[%s168] sm:$0xff]
    %v170 = vld [vmem:[%s168 + $0x8] sm:$0xff]
    %v171 = vpack.c.bf16 %v170, %v169
    %172 = vmatpush.bf16.msra.mxu0 0
    %173 = vmatpush.bf16.msra.mxu0 0
    %174 = vmatpush.bf16.msra.mxu0 0
    %175 = vmatpush.bf16.msra.mxu0 0
    %176 = vmatpush.bf16.msra.mxu0 0
    %177 = vmatpush.bf16.msra.mxu0 0
    %178 = vmatpush.bf16.msra.mxu0 0
    %179 = vmatpush.bf16.msra.mxu0 %v171
    %180 = vmatmul.bf16.gmra.mxu0 %v97
    %v181 = vpop.f32.mrf.mxu0
    %v182 = vadd.f32 0.0, %v181
    %v183 = vpop.f32.mrf.mxu0
    %v184 = vadd.f32 0.0, %v183
    %185 = vmatmul.bf16.gmra.mxu0 %v100
    %v186 = vpop.f32.mrf.mxu0
    %v187 = vadd.f32 0.0, %v186
    %v188 = vpop.f32.mrf.mxu0
    %v189 = vadd.f32 0.0, %v188
    %190 = vdwg.mxu0
    %v195 = vrot.slane %v182, 7
    %v196 = vrot.slane %v184, 7
    %v197 = vsel %vm125, %v195, %v196
    %v198 = vrot.slane %v187, 7
    %v199 = vsel %vm125, %v196, %v198
    %v200 = vrot.slane %v189, 7
    %v201 = vsel %vm125, %v198, %v200
    %v206 = vsel %vm125, 0.0, %v195
    %v207 = vrot.slane %v182, 1
    %v208 = vrot.slane %v184, 1
    %v209 = vsel %vm138, %v207, %v208
    %v210 = vrot.slane %v187, 1
    %v211 = vsel %vm138, %v208, %v210
    %v212 = vrot.slane %v189, 1
    %v213 = vsel %vm138, %v210, %v212
    %v218 = vsel %vm138, %v212, 0.0
    %219 = vrot.lane.b32.xlu0 %v182, 64
    %v220 = vpop.permute.xlu0 %219
    %221 = vrot.lane.b32.xlu0 %v184, 64
    %v222 = vpop.permute.xlu0 %221
    %223 = vrot.lane.b32.xlu0 %v187, 64
    %v224 = vpop.permute.xlu0 %223
    %225 = vrot.lane.b32.xlu0 %v189, 64
    %v226 = vpop.permute.xlu0 %225
    %v231 = vsel %vm163, %v206, %v220
    %v232 = vsel %vm163, %v197, %v222
    %v233 = vsel %vm163, %v199, %v224
    %v234 = vsel %vm163, %v201, %v226
    %v235 = vpack.c.bf16 %v165, %v164
    %v236 = vpack.c.bf16 %v143, %v141
    %v237 = vpack.c.bf16 %v167, %v166
    %v238 = vpack.c.bf16 %v150, %v145
    %v239 = vpack.c.bf16 %v232, %v231
    %v240 = vpack.c.bf16 %v211, %v209
    %v241 = vpack.c.bf16 %v234, %v233
    %v242 = vpack.c.bf16 %v218, %v213
    %v243 = vld [vmem:[#allocation5] sm:$0xff]
    %v244 = vld [vmem:[#allocation5 + $0x8] sm:$0xff]
    %v245 = vld [vmem:[#allocation5 + $0x10] sm:$0xff]
    %v246 = vld [vmem:[#allocation5 + $0x18] sm:$0xff]
    %v247 = vld [vmem:[#allocation5 + $0x20] sm:$0xff]
    %v248 = vld [vmem:[#allocation5 + $0x28] sm:$0xff]
    %v249 = vld [vmem:[#allocation5 + $0x30] sm:$0xff]
    %v250 = vld [vmem:[#allocation5 + $0x38] sm:$0xff]
    %v251 = vld [vmem:[#allocation5 + $0x40] sm:$0xff]
    %v252 = vld [vmem:[#allocation5 + $0x48] sm:$0xff]
    %v253 = vld [vmem:[#allocation5 + $0x50] sm:$0xff]
    %v254 = vld [vmem:[#allocation5 + $0x58] sm:$0xff]
    %v255 = vld [vmem:[#allocation5 + $0x60] sm:$0xff]
    %v256 = vld [vmem:[#allocation5 + $0x68] sm:$0xff]
    %v257 = vld [vmem:[#allocation5 + $0x70] sm:$0xff]
    %v258 = vld [vmem:[#allocation5 + $0x78] sm:$0xff]
    %v259 = vld [vmem:[#allocation5 + $0x80] sm:$0xff]
    %v260 = vld [vmem:[#allocation5 + $0x88] sm:$0xff]
    %v261 = vld [vmem:[#allocation5 + $0x90] sm:$0xff]
    %v262 = vld [vmem:[#allocation5 + $0x98] sm:$0xff]
    %v263 = vld [vmem:[#allocation5 + $0xa0] sm:$0xff]
    %v264 = vld [vmem:[#allocation5 + $0xa8] sm:$0xff]
    %v265 = vld [vmem:[#allocation5 + $0xb0] sm:$0xff]
    %v266 = vld [vmem:[#allocation5 + $0xb8] sm:$0xff]
    %v267 = vld [vmem:[%s4] sm:$0x3]
    %v269 = vperm.slane %v267, 0
    %v270 = vperm.slane %v267, 1
    %v297 = vunpack.c.l.b16 %v243
    %v298 = vunpack.c.h.b16 %v243
    %v299 = vunpack.c.l.b16 %v244
    %v300 = vunpack.c.h.b16 %v244
    %v301 = vunpack.c.l.b16 %v245
    %v302 = vunpack.c.h.b16 %v245
    %v303 = vunpack.c.l.b16 %v246
    %v304 = vunpack.c.h.b16 %v246
    %v305 = vunpack.c.l.b16 %v247
    %v306 = vunpack.c.h.b16 %v247
    %v307 = vunpack.c.l.b16 %v248
    %v308 = vunpack.c.h.b16 %v248
    %v309 = vunpack.c.l.b16 %v249
    %v310 = vunpack.c.h.b16 %v249
    %v311 = vunpack.c.l.b16 %v250
    %v312 = vunpack.c.h.b16 %v250
    %v313 = vunpack.c.l.b16 %v251
    %v314 = vunpack.c.h.b16 %v251
    %v315 = vunpack.c.l.b16 %v252
    %v316 = vunpack.c.h.b16 %v252
    %v317 = vunpack.c.l.b16 %v253
    %v318 = vunpack.c.h.b16 %v253
    %v319 = vunpack.c.l.b16 %v254
    %v320 = vunpack.c.h.b16 %v254
    %v321 = vunpack.c.l.b16 %v255
    %v322 = vunpack.c.h.b16 %v255
    %v323 = vunpack.c.l.b16 %v256
    %v324 = vunpack.c.h.b16 %v256
    %v325 = vunpack.c.l.b16 %v257
    %v326 = vunpack.c.h.b16 %v257
    %v327 = vunpack.c.l.b16 %v258
    %v328 = vunpack.c.h.b16 %v258
    %v329 = vunpack.c.l.b16 %v259
    %v330 = vunpack.c.h.b16 %v259
    %v331 = vunpack.c.l.b16 %v260
    %v332 = vunpack.c.h.b16 %v260
    %v333 = vunpack.c.l.b16 %v261
    %v334 = vunpack.c.h.b16 %v261
    %v335 = vunpack.c.l.b16 %v262
    %v336 = vunpack.c.h.b16 %v262
    %v337 = vunpack.c.l.b16 %v263
    %v338 = vunpack.c.h.b16 %v263
    %v339 = vunpack.c.l.b16 %v264
    %v340 = vunpack.c.h.b16 %v264
    %v341 = vunpack.c.l.b16 %v265
    %v342 = vunpack.c.h.b16 %v265
    %v343 = vunpack.c.l.b16 %v266
    %v344 = vunpack.c.h.b16 %v266
    %v345 = vpack.c.b16 %v299, %v297
    %v346 = vpack.c.b16 %v300, %v298
    %v347 = vpack.c.b16 %v303, %v301
    %v348 = vpack.c.b16 %v304, %v302
    %v349 = vpack.c.b16 %v307, %v305
    %v350 = vpack.c.b16 %v308, %v306
    %v351 = vpack.c.b16 %v311, %v309
    %v352 = vpack.c.b16 %v312, %v310
    %v353 = vpack.c.b16 %v315, %v313
    %v354 = vpack.c.b16 %v316, %v314
    %v355 = vpack.c.b16 %v319, %v317
    %v356 = vpack.c.b16 %v320, %v318
    %v357 = vpack.c.b16 %v323, %v321
    %v358 = vpack.c.b16 %v324, %v322
    %v359 = vpack.c.b16 %v327, %v325
    %v360 = vpack.c.b16 %v328, %v326
    %v361 = vpack.c.b16 %v331, %v329
    %v362 = vpack.c.b16 %v332, %v330
    %v363 = vpack.c.b16 %v335, %v333
    %v364 = vpack.c.b16 %v336, %v334
    %v365 = vpack.c.b16 %v339, %v337
    %v366 = vpack.c.b16 %v340, %v338
    %v367 = vpack.c.b16 %v343, %v341
    %v368 = vpack.c.b16 %v344, %v342
    %v394 = vsel %vm163, %v236, 0
    %v397 = vsel %vm163, %v238, 0
    %v400 = vsel %vm163, %v240, 0
    %v403 = vsel %vm163, %v242, 0
    %405 = vmatpush.bf16.msra.mxu0 %v359
    %406 = vmatpush.bf16.msra.mxu0 %v357
    %407 = vmatpush.bf16.msra.mxu0 %v355
    %408 = vmatpush.bf16.msra.mxu0 %v353
    %409 = vmatpush.bf16.msra.mxu0 %v351
    %410 = vmatpush.bf16.msra.mxu0 %v349
    %411 = vmatpush.bf16.msra.mxu0 %v347
    %412 = vmatpush.bf16.msra.mxu0 %v345
    %413 = vmatmul.bf16.gmra.mxu0 %v235
    %v414 = vpop.f32.mrf.mxu0
    %v415 = vadd.f32 %v269, %v414
    %v416 = vpop.f32.mrf.mxu0
    %v417 = vadd.f32 %v269, %v416
    %418 = vmatmul.bf16.gmra.mxu0 %v237
    %v419 = vpop.f32.mrf.mxu0
    %v420 = vadd.f32 %v269, %v419
    %v421 = vpop.f32.mrf.mxu0
    %v422 = vadd.f32 %v269, %v421
    %423 = vmatmul.bf16.gmra.mxu0 %v239
    %v424 = vpop.f32.mrf.mxu0
    %v425 = vadd.f32 %v269, %v424
    %v426 = vpop.f32.mrf.mxu0
    %v427 = vadd.f32 %v269, %v426
    %428 = vmatmul.bf16.gmra.mxu0 %v241
    %v429 = vpop.f32.mrf.mxu0
    %v430 = vadd.f32 %v269, %v429
    %v431 = vpop.f32.mrf.mxu0
    %v432 = vadd.f32 %v269, %v431
    %433 = vdwg.mxu0
    %434 = vmatpush.bf16.msra.mxu0 0
    %435 = vmatpush.bf16.msra.mxu0 0
    %436 = vmatpush.bf16.msra.mxu0 0
    %437 = vmatpush.bf16.msra.mxu0 0
    %438 = vmatpush.bf16.msra.mxu0 %v367
    %439 = vmatpush.bf16.msra.mxu0 %v365
    %440 = vmatpush.bf16.msra.mxu0 %v363
    %441 = vmatpush.bf16.msra.mxu0 %v361
    %442 = vmatmul.bf16.gmra.mxu0 %v394
    %v443 = vpop.f32.mrf.mxu0
    %v444 = vadd.f32 %v415, %v443
    %v445 = vpop.f32.mrf.mxu0
    %v446 = vadd.f32 %v417, %v445
    %447 = vmatmul.bf16.gmra.mxu0 %v397
    %v448 = vpop.f32.mrf.mxu0
    %v449 = vadd.f32 %v420, %v448
    %v450 = vpop.f32.mrf.mxu0
    %v451 = vadd.f32 %v422, %v450
    %452 = vmatmul.bf16.gmra.mxu0 %v400
    %v453 = vpop.f32.mrf.mxu0
    %v454 = vadd.f32 %v425, %v453
    %v455 = vpop.f32.mrf.mxu0
    %v456 = vadd.f32 %v427, %v455
    %457 = vmatmul.bf16.gmra.mxu0 %v403
    %v458 = vpop.f32.mrf.mxu0
    %v459 = vadd.f32 %v430, %v458
    %v460 = vpop.f32.mrf.mxu0
    %v461 = vadd.f32 %v432, %v460
    %462 = vdwg.mxu0
    %463 = vmatpush.bf16.msra.mxu0 %v360
    %464 = vmatpush.bf16.msra.mxu0 %v358
    %465 = vmatpush.bf16.msra.mxu0 %v356
    %466 = vmatpush.bf16.msra.mxu0 %v354
    %467 = vmatpush.bf16.msra.mxu0 %v352
    %468 = vmatpush.bf16.msra.mxu0 %v350
    %469 = vmatpush.bf16.msra.mxu0 %v348
    %470 = vmatpush.bf16.msra.mxu0 %v346
    %471 = vmatmul.bf16.gmra.mxu0 %v235
    %v472 = vpop.f32.mrf.mxu0
    %v473 = vadd.f32 %v270, %v472
    %v474 = vpop.f32.mrf.mxu0
    %v475 = vadd.f32 %v270, %v474
    %476 = vmatmul.bf16.gmra.mxu0 %v237
    %v477 = vpop.f32.mrf.mxu0
    %v478 = vadd.f32 %v270, %v477
    %v479 = vpop.f32.mrf.mxu0
    %v480 = vadd.f32 %v270, %v479
    %481 = vmatmul.bf16.gmra.mxu0 %v239
    %v482 = vpop.f32.mrf.mxu0
    %v483 = vadd.f32 %v270, %v482
    %v484 = vpop.f32.mrf.mxu0
    %v485 = vadd.f32 %v270, %v484
    %486 = vmatmul.bf16.gmra.mxu0 %v241
    %v487 = vpop.f32.mrf.mxu0
    %v488 = vadd.f32 %v270, %v487
    %v489 = vpop.f32.mrf.mxu0
    %v490 = vadd.f32 %v270, %v489
    %491 = vdwg.mxu0
    %492 = vmatpush.bf16.msra.mxu0 0
    %493 = vmatpush.bf16.msra.mxu0 0
    %494 = vmatpush.bf16.msra.mxu0 0
    %495 = vmatpush.bf16.msra.mxu0 0
    %496 = vmatpush.bf16.msra.mxu0 %v368
    %497 = vmatpush.bf16.msra.mxu0 %v366
    %498 = vmatpush.bf16.msra.mxu0 %v364
    %499 = vmatpush.bf16.msra.mxu0 %v362
    %500 = vmatmul.bf16.gmra.mxu0 %v394
    %v501 = vpop.f32.mrf.mxu0
    %v502 = vadd.f32 %v473, %v501
    %v503 = vpop.f32.mrf.mxu0
    %v504 = vadd.f32 %v475, %v503
    %505 = vmatmul.bf16.gmra.mxu0 %v397
    %v506 = vpop.f32.mrf.mxu0
    %v507 = vadd.f32 %v478, %v506
    %v508 = vpop.f32.mrf.mxu0
    %v509 = vadd.f32 %v480, %v508
    %510 = vmatmul.bf16.gmra.mxu0 %v400
    %v511 = vpop.f32.mrf.mxu0
    %v512 = vadd.f32 %v483, %v511
    %v513 = vpop.f32.mrf.mxu0
    %v514 = vadd.f32 %v485, %v513
    %515 = vmatmul.bf16.gmra.mxu0 %v403
    %v516 = vpop.f32.mrf.mxu0
    %v517 = vadd.f32 %v488, %v516
    %v518 = vpop.f32.mrf.mxu0
    %v519 = vadd.f32 %v490, %v518
    %520 = vdwg.mxu0
    %vm521 = vcmp.gt.f32.partialorder %v444, 0.0
    %vm522 = vcmp.gt.f32.partialorder %v502, 0.0
    %vm523 = vcmp.gt.f32.partialorder %v446, 0.0
    %vm524 = vcmp.gt.f32.partialorder %v504, 0.0
    %vm525 = vcmp.gt.f32.partialorder %v449, 0.0
    %vm526 = vcmp.gt.f32.partialorder %v507, 0.0
    %vm527 = vcmp.gt.f32.partialorder %v451, 0.0
    %vm528 = vcmp.gt.f32.partialorder %v509, 0.0
    %vm529 = vcmp.gt.f32.partialorder %v454, 0.0
    %vm530 = vcmp.gt.f32.partialorder %v512, 0.0
    %vm531 = vcmp.gt.f32.partialorder %v456, 0.0
    %vm532 = vcmp.gt.f32.partialorder %v514, 0.0
    %vm533 = vcmp.gt.f32.partialorder %v459, 0.0
    %vm534 = vcmp.gt.f32.partialorder %v517, 0.0
    %vm535 = vcmp.gt.f32.partialorder %v461, 0.0
    %vm536 = vcmp.gt.f32.partialorder %v519, 0.0
    %v537 = vld [vmem:[%s5] sm:$0x3]
    %v539 = vperm.slane %v537, 0
    %v540 = vperm.slane %v537, 1
    %v543 = vmul.f32 %v539, %v444
    %v544 = vmul.f32 %v540, %v502
    %v545 = vmul.f32 %v539, %v446
    %v546 = vmul.f32 %v540, %v504
    %v547 = vmul.f32 %v539, %v449
    %v548 = vmul.f32 %v540, %v507
    %v549 = vmul.f32 %v539, %v451
    %v550 = vmul.f32 %v540, %v509
    %v551 = vmul.f32 %v539, %v454
    %v552 = vmul.f32 %v540, %v512
    %v553 = vmul.f32 %v539, %v456
    %v554 = vmul.f32 %v540, %v514
    %v555 = vmul.f32 %v539, %v459
    %v556 = vmul.f32 %v540, %v517
    %v557 = vmul.f32 %v539, %v461
    %v558 = vmul.f32 %v540, %v519
    %v559 = vsel %vm521, %v444, %v543
    %v560 = vsel %vm522, %v502, %v544
    %v561 = vsel %vm523, %v446, %v545
    %v562 = vsel %vm524, %v504, %v546
    %v563 = vsel %vm525, %v449, %v547
    %v564 = vsel %vm526, %v507, %v548
    %v565 = vsel %vm527, %v451, %v549
    %v566 = vsel %vm528, %v509, %v550
    %v567 = vsel %vm529, %v454, %v551
    %v568 = vsel %vm530, %v512, %v552
    %v569 = vsel %vm531, %v456, %v553
    %v570 = vsel %vm532, %v514, %v554
    %v571 = vsel %vm533, %v459, %v555
    %v572 = vsel %vm534, %v517, %v556
    %v573 = vsel %vm535, %v461, %v557
    %v574 = vsel %vm536, %v519, %v558
    %v583 = vrot.slane %v559, 7
    %v584 = vrot.slane %v560, 7
    %v585 = vrot.slane %v561, 7
    %v586 = vsel %vm125, %v583, %v585
    %v587 = vrot.slane %v562, 7
    %v588 = vsel %vm125, %v584, %v587
    %v589 = vrot.slane %v563, 7
    %v590 = vsel %vm125, %v585, %v589
    %v591 = vrot.slane %v564, 7
    %v592 = vsel %vm125, %v587, %v591
    %v593 = vrot.slane %v565, 7
    %v594 = vsel %vm125, %v589, %v593
    %v595 = vrot.slane %v566, 7
    %v596 = vsel %vm125, %v591, %v595
    %v605 = vsel %vm125, 0.0, %v583
    %v606 = vsel %vm125, 0.0, %v584
    %v607 = vrot.slane %v559, 1
    %v608 = vrot.slane %v561, 1
    %v609 = vsel %vm138, %v607, %v608
    %v610 = vrot.slane %v560, 1
    %v611 = vrot.slane %v562, 1
    %v612 = vsel %vm138, %v610, %v611
    %v613 = vrot.slane %v563, 1
    %v614 = vsel %vm138, %v608, %v613
    %v615 = vrot.slane %v564, 1
    %v616 = vsel %vm138, %v611, %v615
    %v617 = vrot.slane %v565, 1
    %v618 = vsel %vm138, %v613, %v617
    %v619 = vrot.slane %v566, 1
    %v620 = vsel %vm138, %v615, %v619
    %v629 = vsel %vm138, %v617, 0.0
    %v630 = vsel %vm138, %v619, 0.0
    %v639 = vrot.slane %v567, 7
    %v640 = vrot.slane %v568, 7
    %v641 = vrot.slane %v569, 7
    %v642 = vsel %vm125, %v639, %v641
    %v643 = vrot.slane %v570, 7
    %v644 = vsel %vm125, %v640, %v643
    %v645 = vrot.slane %v571, 7
    %v646 = vsel %vm125, %v641, %v645
    %v647 = vrot.slane %v572, 7
    %v648 = vsel %vm125, %v643, %v647
    %v649 = vrot.slane %v573, 7
    %v650 = vsel %vm125, %v645, %v649
    %v651 = vrot.slane %v574, 7
    %v652 = vsel %vm125, %v647, %v651
    %v661 = vsel %vm125, 0.0, %v639
    %v662 = vsel %vm125, 0.0, %v640
    %v663 = vrot.slane %v567, 1
    %v664 = vrot.slane %v569, 1
    %v665 = vsel %vm138, %v663, %v664
    %v666 = vrot.slane %v568, 1
    %v667 = vrot.slane %v570, 1
    %v668 = vsel %vm138, %v666, %v667
    %v669 = vrot.slane %v571, 1
    %v670 = vsel %vm138, %v664, %v669
    %v671 = vrot.slane %v572, 1
    %v672 = vsel %vm138, %v667, %v671
    %v673 = vrot.slane %v573, 1
    %v674 = vsel %vm138, %v669, %v673
    %v675 = vrot.slane %v574, 1
    %v676 = vsel %vm138, %v671, %v675
    %v685 = vsel %vm138, %v673, 0.0
    %v686 = vsel %vm138, %v675, 0.0
    %v687 = vpack.c.bf16 %v586, %v605
    %v688 = vpack.c.bf16 %v588, %v606
    %v689 = vpack.c.bf16 %v561, %v559
    %v690 = vpack.c.bf16 %v562, %v560
    %v691 = vpack.c.bf16 %v614, %v609
    %v692 = vpack.c.bf16 %v616, %v612
    %v693 = vpack.c.bf16 %v594, %v590
    %v694 = vpack.c.bf16 %v596, %v592
    %v695 = vpack.c.bf16 %v565, %v563
    %v696 = vpack.c.bf16 %v566, %v564
    %v697 = vpack.c.bf16 %v629, %v618
    %v698 = vpack.c.bf16 %v630, %v620
    %v699 = vpack.c.bf16 %v642, %v661
    %v700 = vpack.c.bf16 %v644, %v662
    %v701 = vpack.c.bf16 %v569, %v567
    %v702 = vpack.c.bf16 %v570, %v568
    %v703 = vpack.c.bf16 %v670, %v665
    %v704 = vpack.c.bf16 %v672, %v668
    %v705 = vpack.c.bf16 %v650, %v646
    %v706 = vpack.c.bf16 %v652, %v648
    %v707 = vpack.c.bf16 %v573, %v571
    %v708 = vpack.c.bf16 %v574, %v572
    %v709 = vpack.c.bf16 %v685, %v674
    %v710 = vpack.c.bf16 %v686, %v676
    %v711 = vld [vmem:[#allocation7] sm:$0xff]
    %v712 = vld [vmem:[#allocation7 + $0x8] sm:$0xff]
    %v713 = vld [vmem:[#allocation7 + $0x10] sm:$0xff]
    %v714 = vld [vmem:[#allocation7 + $0x18] sm:$0xff]
    %v715 = vld [vmem:[#allocation7 + $0x20] sm:$0xff]
    %v716 = vld [vmem:[#allocation7 + $0x28] sm:$0xff]
    %v717 = vld [vmem:[#allocation7 + $0x30] sm:$0xff]
    %v718 = vld [vmem:[#allocation7 + $0x38] sm:$0xff]
    %v719 = vld [vmem:[#allocation7 + $0x40] sm:$0xff]
    %v720 = vld [vmem:[#allocation7 + $0x48] sm:$0xff]
    %v721 = vld [vmem:[#allocation7 + $0x50] sm:$0xff]
    %v722 = vld [vmem:[#allocation7 + $0x58] sm:$0xff]
    %v723 = vld [vmem:[#allocation7 + $0x60] sm:$0xff]
    %v724 = vld [vmem:[#allocation7 + $0x68] sm:$0xff]
    %v725 = vld [vmem:[#allocation7 + $0x70] sm:$0xff]
    %v726 = vld [vmem:[#allocation7 + $0x78] sm:$0xff]
    %v727 = vld [vmem:[#allocation7 + $0x80] sm:$0xff]
    %v728 = vld [vmem:[#allocation7 + $0x88] sm:$0xff]
    %v729 = vld [vmem:[#allocation7 + $0x90] sm:$0xff]
    %v730 = vld [vmem:[#allocation7 + $0x98] sm:$0xff]
    %v731 = vld [vmem:[#allocation7 + $0xa0] sm:$0xff]
    %v732 = vld [vmem:[#allocation7 + $0xa8] sm:$0xff]
    %v733 = vld [vmem:[#allocation7 + $0xb0] sm:$0xff]
    %v734 = vld [vmem:[#allocation7 + $0xb8] sm:$0xff]
    %v735 = vld [vmem:[#allocation7 + $0xc0] sm:$0xff]
    %v736 = vld [vmem:[#allocation7 + $0xc8] sm:$0xff]
    %v737 = vld [vmem:[#allocation7 + $0xd0] sm:$0xff]
    %v738 = vld [vmem:[#allocation7 + $0xd8] sm:$0xff]
    %v739 = vld [vmem:[#allocation7 + $0xe0] sm:$0xff]
    %v740 = vld [vmem:[#allocation7 + $0xe8] sm:$0xff]
    %v741 = vld [vmem:[#allocation7 + $0xf0] sm:$0xff]
    %v742 = vld [vmem:[#allocation7 + $0xf8] sm:$0xff]
    %v743 = vld [vmem:[#allocation7 + $0x100] sm:$0xff]
    %v744 = vld [vmem:[#allocation7 + $0x108] sm:$0xff]
    %v745 = vld [vmem:[#allocation7 + $0x110] sm:$0xff]
    %v746 = vld [vmem:[#allocation7 + $0x118] sm:$0xff]
    %v747 = vld [vmem:[#allocation7 + $0x120] sm:$0xff]
    %v748 = vld [vmem:[#allocation7 + $0x128] sm:$0xff]
    %v749 = vld [vmem:[#allocation7 + $0x130] sm:$0xff]
    %v750 = vld [vmem:[#allocation7 + $0x138] sm:$0xff]
    %v751 = vld [vmem:[#allocation7 + $0x140] sm:$0xff]
    %v752 = vld [vmem:[#allocation7 + $0x148] sm:$0xff]
    %v753 = vld [vmem:[#allocation7 + $0x150] sm:$0xff]
    %v754 = vld [vmem:[#allocation7 + $0x158] sm:$0xff]
    %v755 = vld [vmem:[#allocation7 + $0x160] sm:$0xff]
    %v756 = vld [vmem:[#allocation7 + $0x168] sm:$0xff]
    %v757 = vld [vmem:[#allocation7 + $0x170] sm:$0xff]
    %v758 = vld [vmem:[#allocation7 + $0x178] sm:$0xff]
    %v759 = vld [vmem:[#allocation7 + $0x180] sm:$0xff]
    %v760 = vld [vmem:[#allocation7 + $0x188] sm:$0xff]
    %v761 = vld [vmem:[#allocation7 + $0x190] sm:$0xff]
    %v762 = vld [vmem:[#allocation7 + $0x198] sm:$0xff]
    %v763 = vld [vmem:[#allocation7 + $0x1a0] sm:$0xff]
    %v764 = vld [vmem:[#allocation7 + $0x1a8] sm:$0xff]
    %v765 = vld [vmem:[#allocation7 + $0x1b0] sm:$0xff]
    %v766 = vld [vmem:[#allocation7 + $0x1b8] sm:$0xff]
    %v767 = vld [vmem:[#allocation7 + $0x1c0] sm:$0xff]
    %v768 = vld [vmem:[#allocation7 + $0x1c8] sm:$0xff]
    %v769 = vld [vmem:[#allocation7 + $0x1d0] sm:$0xff]
    %v770 = vld [vmem:[#allocation7 + $0x1d8] sm:$0xff]
    %v771 = vld [vmem:[#allocation7 + $0x1e0] sm:$0xff]
    %v772 = vld [vmem:[#allocation7 + $0x1e8] sm:$0xff]
    %v773 = vld [vmem:[#allocation7 + $0x1f0] sm:$0xff]
    %v774 = vld [vmem:[#allocation7 + $0x1f8] sm:$0xff]
    %v775 = vld [vmem:[#allocation7 + $0x200] sm:$0xff]
    %v776 = vld [vmem:[#allocation7 + $0x208] sm:$0xff]
    %v777 = vld [vmem:[#allocation7 + $0x210] sm:$0xff]
    %v778 = vld [vmem:[#allocation7 + $0x218] sm:$0xff]
    %v779 = vld [vmem:[#allocation7 + $0x220] sm:$0xff]
    %v780 = vld [vmem:[#allocation7 + $0x228] sm:$0xff]
    %v781 = vld [vmem:[#allocation7 + $0x230] sm:$0xff]
    %v782 = vld [vmem:[#allocation7 + $0x238] sm:$0xff]
    %v783 = vld [vmem:[#allocation7 + $0x240] sm:$0xff]
    %v784 = vld [vmem:[#allocation7 + $0x248] sm:$0xff]
    %v785 = vld [vmem:[#allocation7 + $0x250] sm:$0xff]
    %v786 = vld [vmem:[#allocation7 + $0x258] sm:$0xff]
    %v787 = vld [vmem:[#allocation7 + $0x260] sm:$0xff]
    %v788 = vld [vmem:[#allocation7 + $0x268] sm:$0xff]
    %v789 = vld [vmem:[#allocation7 + $0x270] sm:$0xff]
    %v790 = vld [vmem:[#allocation7 + $0x278] sm:$0xff]
    %v791 = vld [vmem:[#allocation7 + $0x280] sm:$0xff]
    %v792 = vld [vmem:[#allocation7 + $0x288] sm:$0xff]
    %v793 = vld [vmem:[#allocation7 + $0x290] sm:$0xff]
    %v794 = vld [vmem:[#allocation7 + $0x298] sm:$0xff]
    %v795 = vld [vmem:[#allocation7 + $0x2a0] sm:$0xff]
    %v796 = vld [vmem:[#allocation7 + $0x2a8] sm:$0xff]
    %v797 = vld [vmem:[#allocation7 + $0x2b0] sm:$0xff]
    %v798 = vld [vmem:[#allocation7 + $0x2b8] sm:$0xff]
    %v799 = vld [vmem:[#allocation7 + $0x2c0] sm:$0xff]
    %v800 = vld [vmem:[#allocation7 + $0x2c8] sm:$0xff]
    %v801 = vld [vmem:[#allocation7 + $0x2d0] sm:$0xff]
    %v802 = vld [vmem:[#allocation7 + $0x2d8] sm:$0xff]
    %v803 = vld [vmem:[#allocation7 + $0x2e0] sm:$0xff]
    %v804 = vld [vmem:[#allocation7 + $0x2e8] sm:$0xff]
    %v805 = vld [vmem:[#allocation7 + $0x2f0] sm:$0xff]
    %v806 = vld [vmem:[#allocation7 + $0x2f8] sm:$0xff]
    %v807 = vld [vmem:[%s6] sm:$0x3]
    %v809 = vperm.slane %v807, 0
    %v810 = vperm.slane %v807, 1
    %v909 = vunpack.c.l.b16 %v711
    %v910 = vunpack.c.h.b16 %v711
    %v911 = vunpack.c.l.b16 %v712
    %v912 = vunpack.c.h.b16 %v712
    %v913 = vunpack.c.l.b16 %v713
    %v914 = vunpack.c.h.b16 %v713
    %v915 = vunpack.c.l.b16 %v714
    %v916 = vunpack.c.h.b16 %v714
    %v917 = vunpack.c.l.b16 %v715
    %v918 = vunpack.c.h.b16 %v715
    %v919 = vunpack.c.l.b16 %v716
    %v920 = vunpack.c.h.b16 %v716
    %v921 = vunpack.c.l.b16 %v717
    %v922 = vunpack.c.h.b16 %v717
    %v923 = vunpack.c.l.b16 %v718
    %v924 = vunpack.c.h.b16 %v718
    %v925 = vunpack.c.l.b16 %v719
    %v926 = vunpack.c.h.b16 %v719
    %v927 = vunpack.c.l.b16 %v720
    %v928 = vunpack.c.h.b16 %v720
    %v929 = vunpack.c.l.b16 %v721
    %v930 = vunpack.c.h.b16 %v721
    %v931 = vunpack.c.l.b16 %v722
    %v932 = vunpack.c.h.b16 %v722
    %v933 = vunpack.c.l.b16 %v723
    %v934 = vunpack.c.h.b16 %v723
    %v935 = vunpack.c.l.b16 %v724
    %v936 = vunpack.c.h.b16 %v724
    %v937 = vunpack.c.l.b16 %v725
    %v938 = vunpack.c.h.b16 %v725
    %v939 = vunpack.c.l.b16 %v726
    %v940 = vunpack.c.h.b16 %v726
    %v941 = vunpack.c.l.b16 %v727
    %v942 = vunpack.c.h.b16 %v727
    %v943 = vunpack.c.l.b16 %v728
    %v944 = vunpack.c.h.b16 %v728
    %v945 = vunpack.c.l.b16 %v729
    %v946 = vunpack.c.h.b16 %v729
    %v947 = vunpack.c.l.b16 %v730
    %v948 = vunpack.c.h.b16 %v730
    %v949 = vunpack.c.l.b16 %v731
    %v950 = vunpack.c.h.b16 %v731
    %v951 = vunpack.c.l.b16 %v732
    %v952 = vunpack.c.h.b16 %v732
    %v953 = vunpack.c.l.b16 %v733
    %v954 = vunpack.c.h.b16 %v733
    %v955 = vunpack.c.l.b16 %v734
    %v956 = vunpack.c.h.b16 %v734
    %v957 = vunpack.c.l.b16 %v735
    %v958 = vunpack.c.h.b16 %v735
    %v959 = vunpack.c.l.b16 %v736
    %v960 = vunpack.c.h.b16 %v736
    %v961 = vunpack.c.l.b16 %v737
    %v962 = vunpack.c.h.b16 %v737
    %v963 = vunpack.c.l.b16 %v738
    %v964 = vunpack.c.h.b16 %v738
    %v965 = vunpack.c.l.b16 %v739
    %v966 = vunpack.c.h.b16 %v739
    %v967 = vunpack.c.l.b16 %v740
    %v968 = vunpack.c.h.b16 %v740
    %v969 = vunpack.c.l.b16 %v741
    %v970 = vunpack.c.h.b16 %v741
    %v971 = vunpack.c.l.b16 %v742
    %v972 = vunpack.c.h.b16 %v742
    %v973 = vunpack.c.l.b16 %v743
    %v974 = vunpack.c.h.b16 %v743
    %v975 = vunpack.c.l.b16 %v744
    %v976 = vunpack.c.h.b16 %v744
    %v977 = vunpack.c.l.b16 %v745
    %v978 = vunpack.c.h.b16 %v745
    %v979 = vunpack.c.l.b16 %v746
    %v980 = vunpack.c.h.b16 %v746
    %v981 = vunpack.c.l.b16 %v747
    %v982 = vunpack.c.h.b16 %v747
    %v983 = vunpack.c.l.b16 %v748
    %v984 = vunpack.c.h.b16 %v748
    %v985 = vunpack.c.l.b16 %v749
    %v986 = vunpack.c.h.b16 %v749
    %v987 = vunpack.c.l.b16 %v750
    %v988 = vunpack.c.h.b16 %v750
    %v989 = vunpack.c.l.b16 %v751
    %v990 = vunpack.c.h.b16 %v751
    %v991 = vunpack.c.l.b16 %v752
    %v992 = vunpack.c.h.b16 %v752
    %v993 = vunpack.c.l.b16 %v753
    %v994 = vunpack.c.h.b16 %v753
    %v995 = vunpack.c.l.b16 %v754
    %v996 = vunpack.c.h.b16 %v754
    %v997 = vunpack.c.l.b16 %v755
    %v998 = vunpack.c.h.b16 %v755
    %v999 = vunpack.c.l.b16 %v756
    %v1000 = vunpack.c.h.b16 %v756
    %v1001 = vunpack.c.l.b16 %v757
    %v1002 = vunpack.c.h.b16 %v757
    %v1003 = vunpack.c.l.b16 %v758
    %v1004 = vunpack.c.h.b16 %v758
    %v1005 = vunpack.c.l.b16 %v759
    %v1006 = vunpack.c.h.b16 %v759
    %v1007 = vunpack.c.l.b16 %v760
    %v1008 = vunpack.c.h.b16 %v760
    %v1009 = vunpack.c.l.b16 %v761
    %v1010 = vunpack.c.h.b16 %v761
    %v1011 = vunpack.c.l.b16 %v762
    %v1012 = vunpack.c.h.b16 %v762
    %v1013 = vunpack.c.l.b16 %v763
    %v1014 = vunpack.c.h.b16 %v763
    %v1015 = vunpack.c.l.b16 %v764
    %v1016 = vunpack.c.h.b16 %v764
    %v1017 = vunpack.c.l.b16 %v765
    %v1018 = vunpack.c.h.b16 %v765
    %v1019 = vunpack.c.l.b16 %v766
    %v1020 = vunpack.c.h.b16 %v766
    %v1021 = vunpack.c.l.b16 %v767
    %v1022 = vunpack.c.h.b16 %v767
    %v1023 = vunpack.c.l.b16 %v768
    %v1024 = vunpack.c.h.b16 %v768
    %v1025 = vunpack.c.l.b16 %v769
    %v1026 = vunpack.c.h.b16 %v769
    %v1027 = vunpack.c.l.b16 %v770
    %v1028 = vunpack.c.h.b16 %v770
    %v1029 = vunpack.c.l.b16 %v771
    %v1030 = vunpack.c.h.b16 %v771
    %v1031 = vunpack.c.l.b16 %v772
    %v1032 = vunpack.c.h.b16 %v772
    %v1033 = vunpack.c.l.b16 %v773
    %v1034 = vunpack.c.h.b16 %v773
    %v1035 = vunpack.c.l.b16 %v774
    %v1036 = vunpack.c.h.b16 %v774
    %v1037 = vunpack.c.l.b16 %v775
    %v1038 = vunpack.c.h.b16 %v775
    %v1039 = vunpack.c.l.b16 %v776
    %v1040 = vunpack.c.h.b16 %v776
    %v1041 = vunpack.c.l.b16 %v777
    %v1042 = vunpack.c.h.b16 %v777
    %v1043 = vunpack.c.l.b16 %v778
    %v1044 = vunpack.c.h.b16 %v778
    %v1045 = vunpack.c.l.b16 %v779
    %v1046 = vunpack.c.h.b16 %v779
    %v1047 = vunpack.c.l.b16 %v780
    %v1048 = vunpack.c.h.b16 %v780
    %v1049 = vunpack.c.l.b16 %v781
    %v1050 = vunpack.c.h.b16 %v781
    %v1051 = vunpack.c.l.b16 %v782
    %v1052 = vunpack.c.h.b16 %v782
    %v1053 = vunpack.c.l.b16 %v783
    %v1054 = vunpack.c.h.b16 %v783
    %v1055 = vunpack.c.l.b16 %v784
    %v1056 = vunpack.c.h.b16 %v784
    %v1057 = vunpack.c.l.b16 %v785
    %v1058 = vunpack.c.h.b16 %v785
    %v1059 = vunpack.c.l.b16 %v786
    %v1060 = vunpack.c.h.b16 %v786
    %v1061 = vunpack.c.l.b16 %v787
    %v1062 = vunpack.c.h.b16 %v787
    %v1063 = vunpack.c.l.b16 %v788
    %v1064 = vunpack.c.h.b16 %v788
    %v1065 = vunpack.c.l.b16 %v789
    %v1066 = vunpack.c.h.b16 %v789
    %v1067 = vunpack.c.l.b16 %v790
    %v1068 = vunpack.c.h.b16 %v790
    %v1069 = vunpack.c.l.b16 %v791
    %v1070 = vunpack.c.h.b16 %v791
    %v1071 = vunpack.c.l.b16 %v792
    %v1072 = vunpack.c.h.b16 %v792
    %v1073 = vunpack.c.l.b16 %v793
    %v1074 = vunpack.c.h.b16 %v793
    %v1075 = vunpack.c.l.b16 %v794
    %v1076 = vunpack.c.h.b16 %v794
    %v1077 = vunpack.c.l.b16 %v795
    %v1078 = vunpack.c.h.b16 %v795
    %v1079 = vunpack.c.l.b16 %v796
    %v1080 = vunpack.c.h.b16 %v796
    %v1081 = vunpack.c.l.b16 %v797
    %v1082 = vunpack.c.h.b16 %v797
    %v1083 = vunpack.c.l.b16 %v798
    %v1084 = vunpack.c.h.b16 %v798
    %v1085 = vunpack.c.l.b16 %v799
    %v1086 = vunpack.c.h.b16 %v799
    %v1087 = vunpack.c.l.b16 %v800
    %v1088 = vunpack.c.h.b16 %v800
    %v1089 = vunpack.c.l.b16 %v801
    %v1090 = vunpack.c.h.b16 %v801
    %v1091 = vunpack.c.l.b16 %v802
    %v1092 = vunpack.c.h.b16 %v802
    %v1093 = vunpack.c.l.b16 %v803
    %v1094 = vunpack.c.h.b16 %v803
    %v1095 = vunpack.c.l.b16 %v804
    %v1096 = vunpack.c.h.b16 %v804
    %v1097 = vunpack.c.l.b16 %v805
    %v1098 = vunpack.c.h.b16 %v805
    %v1099 = vunpack.c.l.b16 %v806
    %v1100 = vunpack.c.h.b16 %v806
    %v1101 = vpack.c.b16 %v911, %v909
    %v1102 = vpack.c.b16 %v912, %v910
    %v1103 = vpack.c.b16 %v915, %v913
    %v1104 = vpack.c.b16 %v916, %v914
    %v1105 = vpack.c.b16 %v919, %v917
    %v1106 = vpack.c.b16 %v920, %v918
    %v1107 = vpack.c.b16 %v923, %v921
    %v1108 = vpack.c.b16 %v924, %v922
    %v1109 = vpack.c.b16 %v927, %v925
    %v1110 = vpack.c.b16 %v928, %v926
    %v1111 = vpack.c.b16 %v931, %v929
    %v1112 = vpack.c.b16 %v932, %v930
    %v1113 = vpack.c.b16 %v935, %v933
    %v1114 = vpack.c.b16 %v936, %v934
    %v1115 = vpack.c.b16 %v939, %v937
    %v1116 = vpack.c.b16 %v940, %v938
    %v1117 = vpack.c.b16 %v943, %v941
    %v1118 = vpack.c.b16 %v944, %v942
    %v1119 = vpack.c.b16 %v947, %v945
    %v1120 = vpack.c.b16 %v948, %v946
    %v1121 = vpack.c.b16 %v951, %v949
    %v1122 = vpack.c.b16 %v952, %v950
    %v1123 = vpack.c.b16 %v955, %v953
    %v1124 = vpack.c.b16 %v956, %v954
    %v1125 = vpack.c.b16 %v959, %v957
    %v1126 = vpack.c.b16 %v960, %v958
    %v1127 = vpack.c.b16 %v963, %v961
    %v1128 = vpack.c.b16 %v964, %v962
    %v1129 = vpack.c.b16 %v967, %v965
    %v1130 = vpack.c.b16 %v968, %v966
    %v1131 = vpack.c.b16 %v971, %v969
    %v1132 = vpack.c.b16 %v972, %v970
    %v1133 = vpack.c.b16 %v975, %v973
    %v1134 = vpack.c.b16 %v976, %v974
    %v1135 = vpack.c.b16 %v979, %v977
    %v1136 = vpack.c.b16 %v980, %v978
    %v1137 = vpack.c.b16 %v983, %v981
    %v1138 = vpack.c.b16 %v984, %v982
    %v1139 = vpack.c.b16 %v987, %v985
    %v1140 = vpack.c.b16 %v988, %v986
    %v1141 = vpack.c.b16 %v991, %v989
    %v1142 = vpack.c.b16 %v992, %v990
    %v1143 = vpack.c.b16 %v995, %v993
    %v1144 = vpack.c.b16 %v996, %v994
    %v1145 = vpack.c.b16 %v999, %v997
    %v1146 = vpack.c.b16 %v1000, %v998
    %v1147 = vpack.c.b16 %v1003, %v1001
    %v1148 = vpack.c.b16 %v1004, %v1002
    %v1149 = vpack.c.b16 %v1007, %v1005
    %v1150 = vpack.c.b16 %v1008, %v1006
    %v1151 = vpack.c.b16 %v1011, %v1009
    %v1152 = vpack.c.b16 %v1012, %v1010
    %v1153 = vpack.c.b16 %v1015, %v1013
    %v1154 = vpack.c.b16 %v1016, %v1014
    %v1155 = vpack.c.b16 %v1019, %v1017
    %v1156 = vpack.c.b16 %v1020, %v1018
    %v1157 = vpack.c.b16 %v1023, %v1021
    %v1158 = vpack.c.b16 %v1024, %v1022
    %v1159 = vpack.c.b16 %v1027, %v1025
    %v1160 = vpack.c.b16 %v1028, %v1026
    %v1161 = vpack.c.b16 %v1031, %v1029
    %v1162 = vpack.c.b16 %v1032, %v1030
    %v1163 = vpack.c.b16 %v1035, %v1033
    %v1164 = vpack.c.b16 %v1036, %v1034
    %v1165 = vpack.c.b16 %v1039, %v1037
    %v1166 = vpack.c.b16 %v1040, %v1038
    %v1167 = vpack.c.b16 %v1043, %v1041
    %v1168 = vpack.c.b16 %v1044, %v1042
    %v1169 = vpack.c.b16 %v1047, %v1045
    %v1170 = vpack.c.b16 %v1048, %v1046
    %v1171 = vpack.c.b16 %v1051, %v1049
    %v1172 = vpack.c.b16 %v1052, %v1050
    %v1173 = vpack.c.b16 %v1055, %v1053
    %v1174 = vpack.c.b16 %v1056, %v1054
    %v1175 = vpack.c.b16 %v1059, %v1057
    %v1176 = vpack.c.b16 %v1060, %v1058
    %v1177 = vpack.c.b16 %v1063, %v1061
    %v1178 = vpack.c.b16 %v1064, %v1062
    %v1179 = vpack.c.b16 %v1067, %v1065
    %v1180 = vpack.c.b16 %v1068, %v1066
    %v1181 = vpack.c.b16 %v1071, %v1069
    %v1182 = vpack.c.b16 %v1072, %v1070
    %v1183 = vpack.c.b16 %v1075, %v1073
    %v1184 = vpack.c.b16 %v1076, %v1074
    %v1185 = vpack.c.b16 %v1079, %v1077
    %v1186 = vpack.c.b16 %v1080, %v1078
    %v1187 = vpack.c.b16 %v1083, %v1081
    %v1188 = vpack.c.b16 %v1084, %v1082
    %v1189 = vpack.c.b16 %v1087, %v1085
    %v1190 = vpack.c.b16 %v1088, %v1086
    %v1191 = vpack.c.b16 %v1091, %v1089
    %v1192 = vpack.c.b16 %v1092, %v1090
    %v1193 = vpack.c.b16 %v1095, %v1093
    %v1194 = vpack.c.b16 %v1096, %v1094
    %v1195 = vpack.c.b16 %v1099, %v1097
    %v1196 = vpack.c.b16 %v1100, %v1098
    %1293 = vmatpush.bf16.msra.mxu0 %v1115
    %1294 = vmatpush.bf16.msra.mxu0 %v1113
    %1295 = vmatpush.bf16.msra.mxu0 %v1111
    %1296 = vmatpush.bf16.msra.mxu0 %v1109
    %1297 = vmatpush.bf16.msra.mxu0 %v1107
    %1298 = vmatpush.bf16.msra.mxu0 %v1105
    %1299 = vmatpush.bf16.msra.mxu0 %v1103
    %1300 = vmatpush.bf16.msra.mxu0 %v1101
    %1301 = vmatmul.bf16.gmra.mxu0 %v687
    %v1302 = vpop.f32.mrf.mxu0
    %v1303 = vadd.f32 %v809, %v1302
    %v1304 = vpop.f32.mrf.mxu0
    %v1305 = vadd.f32 %v809, %v1304
    %1306 = vmatmul.bf16.gmra.mxu0 %v693
    %v1307 = vpop.f32.mrf.mxu0
    %v1308 = vadd.f32 %v809, %v1307
    %v1309 = vpop.f32.mrf.mxu0
    %v1310 = vadd.f32 %v809, %v1309
    %1311 = vmatmul.bf16.gmra.mxu0 %v699
    %v1312 = vpop.f32.mrf.mxu0
    %v1313 = vadd.f32 %v809, %v1312
    %v1314 = vpop.f32.mrf.mxu0
    %v1315 = vadd.f32 %v809, %v1314
    %1316 = vmatmul.bf16.gmra.mxu0 %v705
    %v1317 = vpop.f32.mrf.mxu0
    %v1318 = vadd.f32 %v809, %v1317
    %v1319 = vpop.f32.mrf.mxu0
    %v1320 = vadd.f32 %v809, %v1319
    %1321 = vdwg.mxu0
    %1322 = vmatpush.bf16.msra.mxu0 %v1131
    %1323 = vmatpush.bf16.msra.mxu0 %v1129
    %1324 = vmatpush.bf16.msra.mxu0 %v1127
    %1325 = vmatpush.bf16.msra.mxu0 %v1125
    %1326 = vmatpush.bf16.msra.mxu0 %v1123
    %1327 = vmatpush.bf16.msra.mxu0 %v1121
    %1328 = vmatpush.bf16.msra.mxu0 %v1119
    %1329 = vmatpush.bf16.msra.mxu0 %v1117
    %1330 = vmatmul.bf16.gmra.mxu0 %v688
    %v1331 = vpop.f32.mrf.mxu0
    %v1332 = vadd.f32 %v1303, %v1331
    %v1333 = vpop.f32.mrf.mxu0
    %v1334 = vadd.f32 %v1305, %v1333
    %1335 = vmatmul.bf16.gmra.mxu0 %v694
    %v1336 = vpop.f32.mrf.mxu0
    %v1337 = vadd.f32 %v1308, %v1336
    %v1338 = vpop.f32.mrf.mxu0
    %v1339 = vadd.f32 %v1310, %v1338
    %1340 = vmatmul.bf16.gmra.mxu0 %v700
    %v1341 = vpop.f32.mrf.mxu0
    %v1342 = vadd.f32 %v1313, %v1341
    %v1343 = vpop.f32.mrf.mxu0
    %v1344 = vadd.f32 %v1315, %v1343
    %1345 = vmatmul.bf16.gmra.mxu0 %v706
    %v1346 = vpop.f32.mrf.mxu0
    %v1347 = vadd.f32 %v1318, %v1346
    %v1348 = vpop.f32.mrf.mxu0
    %v1349 = vadd.f32 %v1320, %v1348
    %1350 = vdwg.mxu0
    %1351 = vmatpush.bf16.msra.mxu0 %v1147
    %1352 = vmatpush.bf16.msra.mxu0 %v1145
    %1353 = vmatpush.bf16.msra.mxu0 %v1143
    %1354 = vmatpush.bf16.msra.mxu0 %v1141
    %1355 = vmatpush.bf16.msra.mxu0 %v1139
    %1356 = vmatpush.bf16.msra.mxu0 %v1137
    %1357 = vmatpush.bf16.msra.mxu0 %v1135
    %1358 = vmatpush.bf16.msra.mxu0 %v1133
    %1359 = vmatmul.bf16.gmra.mxu0 %v689
    %v1360 = vpop.f32.mrf.mxu0
    %v1361 = vadd.f32 %v1332, %v1360
    %v1362 = vpop.f32.mrf.mxu0
    %v1363 = vadd.f32 %v1334, %v1362
    %1364 = vmatmul.bf16.gmra.mxu0 %v695
    %v1365 = vpop.f32.mrf.mxu0
    %v1366 = vadd.f32 %v1337, %v1365
    %v1367 = vpop.f32.mrf.mxu0
    %v1368 = vadd.f32 %v1339, %v1367
    %1369 = vmatmul.bf16.gmra.mxu0 %v701
    %v1370 = vpop.f32.mrf.mxu0
    %v1371 = vadd.f32 %v1342, %v1370
    %v1372 = vpop.f32.mrf.mxu0
    %v1373 = vadd.f32 %v1344, %v1372
    %1374 = vmatmul.bf16.gmra.mxu0 %v707
    %v1375 = vpop.f32.mrf.mxu0
    %v1376 = vadd.f32 %v1347, %v1375
    %v1377 = vpop.f32.mrf.mxu0
    %v1378 = vadd.f32 %v1349, %v1377
    %1379 = vdwg.mxu0
    %1380 = vmatpush.bf16.msra.mxu0 %v1163
    %1381 = vmatpush.bf16.msra.mxu0 %v1161
    %1382 = vmatpush.bf16.msra.mxu0 %v1159
    %1383 = vmatpush.bf16.msra.mxu0 %v1157
    %1384 = vmatpush.bf16.msra.mxu0 %v1155
    %1385 = vmatpush.bf16.msra.mxu0 %v1153
    %1386 = vmatpush.bf16.msra.mxu0 %v1151
    %1387 = vmatpush.bf16.msra.mxu0 %v1149
    %1388 = vmatmul.bf16.gmra.mxu0 %v690
    %v1389 = vpop.f32.mrf.mxu0
    %v1390 = vadd.f32 %v1361, %v1389
    %v1391 = vpop.f32.mrf.mxu0
    %v1392 = vadd.f32 %v1363, %v1391
    %1393 = vmatmul.bf16.gmra.mxu0 %v696
    %v1394 = vpop.f32.mrf.mxu0
    %v1395 = vadd.f32 %v1366, %v1394
    %v1396 = vpop.f32.mrf.mxu0
    %v1397 = vadd.f32 %v1368, %v1396
    %1398 = vmatmul.bf16.gmra.mxu0 %v702
    %v1399 = vpop.f32.mrf.mxu0
    %v1400 = vadd.f32 %v1371, %v1399
    %v1401 = vpop.f32.mrf.mxu0
    %v1402 = vadd.f32 %v1373, %v1401
    %1403 = vmatmul.bf16.gmra.mxu0 %v708
    %v1404 = vpop.f32.mrf.mxu0
    %v1405 = vadd.f32 %v1376, %v1404
    %v1406 = vpop.f32.mrf.mxu0
    %v1407 = vadd.f32 %v1378, %v1406
    %1408 = vdwg.mxu0
    %1409 = vmatpush.bf16.msra.mxu0 %v1179
    %1410 = vmatpush.bf16.msra.mxu0 %v1177
    %1411 = vmatpush.bf16.msra.mxu0 %v1175
    %1412 = vmatpush.bf16.msra.mxu0 %v1173
    %1413 = vmatpush.bf16.msra.mxu0 %v1171
    %1414 = vmatpush.bf16.msra.mxu0 %v1169
    %1415 = vmatpush.bf16.msra.mxu0 %v1167
    %1416 = vmatpush.bf16.msra.mxu0 %v1165
    %1417 = vmatmul.bf16.gmra.mxu0 %v691
    %v1418 = vpop.f32.mrf.mxu0
    %v1419 = vadd.f32 %v1390, %v1418
    %v1420 = vpop.f32.mrf.mxu0
    %v1421 = vadd.f32 %v1392, %v1420
    %1422 = vmatmul.bf16.gmra.mxu0 %v697
    %v1423 = vpop.f32.mrf.mxu0
    %v1424 = vadd.f32 %v1395, %v1423
    %v1425 = vpop.f32.mrf.mxu0
    %v1426 = vadd.f32 %v1397, %v1425
    %1427 = vmatmul.bf16.gmra.mxu0 %v703
    %v1428 = vpop.f32.mrf.mxu0
    %v1429 = vadd.f32 %v1400, %v1428
    %v1430 = vpop.f32.mrf.mxu0
    %v1431 = vadd.f32 %v1402, %v1430
    %1432 = vmatmul.bf16.gmra.mxu0 %v709
    %v1433 = vpop.f32.mrf.mxu0
    %v1434 = vadd.f32 %v1405, %v1433
    %v1435 = vpop.f32.mrf.mxu0
    %v1436 = vadd.f32 %v1407, %v1435
    %1437 = vdwg.mxu0
    %1438 = vmatpush.bf16.msra.mxu0 %v1195
    %1439 = vmatpush.bf16.msra.mxu0 %v1193
    %1440 = vmatpush.bf16.msra.mxu0 %v1191
    %1441 = vmatpush.bf16.msra.mxu0 %v1189
    %1442 = vmatpush.bf16.msra.mxu0 %v1187
    %1443 = vmatpush.bf16.msra.mxu0 %v1185
    %1444 = vmatpush.bf16.msra.mxu0 %v1183
    %1445 = vmatpush.bf16.msra.mxu0 %v1181
    %1446 = vmatmul.bf16.gmra.mxu0 %v692
    %v1447 = vpop.f32.mrf.mxu0
    %v1448 = vadd.f32 %v1419, %v1447
    %v1449 = vpop.f32.mrf.mxu0
    %v1450 = vadd.f32 %v1421, %v1449
    %1451 = vmatmul.bf16.gmra.mxu0 %v698
    %v1452 = vpop.f32.mrf.mxu0
    %v1453 = vadd.f32 %v1424, %v1452
    %v1454 = vpop.f32.mrf.mxu0
    %v1455 = vadd.f32 %v1426, %v1454
    %1456 = vmatmul.bf16.gmra.mxu0 %v704
    %v1457 = vpop.f32.mrf.mxu0
    %v1458 = vadd.f32 %v1429, %v1457
    %v1459 = vpop.f32.mrf.mxu0
    %v1460 = vadd.f32 %v1431, %v1459
    %1461 = vmatmul.bf16.gmra.mxu0 %v710
    %v1462 = vpop.f32.mrf.mxu0
    %v1463 = vadd.f32 %v1434, %v1462
    %v1464 = vpop.f32.mrf.mxu0
    %v1465 = vadd.f32 %v1436, %v1464
    %1466 = vdwg.mxu0
    %1467 = vmatpush.bf16.msra.mxu0 %v1116
    %1468 = vmatpush.bf16.msra.mxu0 %v1114
    %1469 = vmatpush.bf16.msra.mxu0 %v1112
    %1470 = vmatpush.bf16.msra.mxu0 %v1110
    %1471 = vmatpush.bf16.msra.mxu0 %v1108
    %1472 = vmatpush.bf16.msra.mxu0 %v1106
    %1473 = vmatpush.bf16.msra.mxu0 %v1104
    %1474 = vmatpush.bf16.msra.mxu0 %v1102
    %1475 = vmatmul.bf16.gmra.mxu0 %v687
    %v1476 = vpop.f32.mrf.mxu0
    %v1477 = vadd.f32 %v810, %v1476
    %v1478 = vpop.f32.mrf.mxu0
    %v1479 = vadd.f32 %v810, %v1478
    %1480 = vmatmul.bf16.gmra.mxu0 %v693
    %v1481 = vpop.f32.mrf.mxu0
    %v1482 = vadd.f32 %v810, %v1481
    %v1483 = vpop.f32.mrf.mxu0
    %v1484 = vadd.f32 %v810, %v1483
    %1485 = vmatmul.bf16.gmra.mxu0 %v699
    %v1486 = vpop.f32.mrf.mxu0
    %v1487 = vadd.f32 %v810, %v1486
    %v1488 = vpop.f32.mrf.mxu0
    %v1489 = vadd.f32 %v810, %v1488
    %1490 = vmatmul.bf16.gmra.mxu0 %v705
    %v1491 = vpop.f32.mrf.mxu0
    %v1492 = vadd.f32 %v810, %v1491
    %v1493 = vpop.f32.mrf.mxu0
    %v1494 = vadd.f32 %v810, %v1493
    %1495 = vdwg.mxu0
    %1496 = vmatpush.bf16.msra.mxu0 %v1132
    %1497 = vmatpush.bf16.msra.mxu0 %v1130
    %1498 = vmatpush.bf16.msra.mxu0 %v1128
    %1499 = vmatpush.bf16.msra.mxu0 %v1126
    %1500 = vmatpush.bf16.msra.mxu0 %v1124
    %1501 = vmatpush.bf16.msra.mxu0 %v1122
    %1502 = vmatpush.bf16.msra.mxu0 %v1120
    %1503 = vmatpush.bf16.msra.mxu0 %v1118
    %1504 = vmatmul.bf16.gmra.mxu0 %v688
    %v1505 = vpop.f32.mrf.mxu0
    %v1506 = vadd.f32 %v1477, %v1505
    %v1507 = vpop.f32.mrf.mxu0
    %v1508 = vadd.f32 %v1479, %v1507
    %1509 = vmatmul.bf16.gmra.mxu0 %v694
    %v1510 = vpop.f32.mrf.mxu0
    %v1511 = vadd.f32 %v1482, %v1510
    %v1512 = vpop.f32.mrf.mxu0
    %v1513 = vadd.f32 %v1484, %v1512
    %1514 = vmatmul.bf16.gmra.mxu0 %v700
    %v1515 = vpop.f32.mrf.mxu0
    %v1516 = vadd.f32 %v1487, %v1515
    %v1517 = vpop.f32.mrf.mxu0
    %v1518 = vadd.f32 %v1489, %v1517
    %1519 = vmatmul.bf16.gmra.mxu0 %v706
    %v1520 = vpop.f32.mrf.mxu0
    %v1521 = vadd.f32 %v1492, %v1520
    %v1522 = vpop.f32.mrf.mxu0
    %v1523 = vadd.f32 %v1494, %v1522
    %1524 = vdwg.mxu0
    %1525 = vmatpush.bf16.msra.mxu0 %v1148
    %1526 = vmatpush.bf16.msra.mxu0 %v1146
    %1527 = vmatpush.bf16.msra.mxu0 %v1144
    %1528 = vmatpush.bf16.msra.mxu0 %v1142
    %1529 = vmatpush.bf16.msra.mxu0 %v1140
    %1530 = vmatpush.bf16.msra.mxu0 %v1138
    %1531 = vmatpush.bf16.msra.mxu0 %v1136
    %1532 = vmatpush.bf16.msra.mxu0 %v1134
    %1533 = vmatmul.bf16.gmra.mxu0 %v689
    %v1534 = vpop.f32.mrf.mxu0
    %v1535 = vadd.f32 %v1506, %v1534
    %v1536 = vpop.f32.mrf.mxu0
    %v1537 = vadd.f32 %v1508, %v1536
    %1538 = vmatmul.bf16.gmra.mxu0 %v695
    %v1539 = vpop.f32.mrf.mxu0
    %v1540 = vadd.f32 %v1511, %v1539
    %v1541 = vpop.f32.mrf.mxu0
    %v1542 = vadd.f32 %v1513, %v1541
    %1543 = vmatmul.bf16.gmra.mxu0 %v701
    %v1544 = vpop.f32.mrf.mxu0
    %v1545 = vadd.f32 %v1516, %v1544
    %v1546 = vpop.f32.mrf.mxu0
    %v1547 = vadd.f32 %v1518, %v1546
    %1548 = vmatmul.bf16.gmra.mxu0 %v707
    %v1549 = vpop.f32.mrf.mxu0
    %v1550 = vadd.f32 %v1521, %v1549
    %v1551 = vpop.f32.mrf.mxu0
    %v1552 = vadd.f32 %v1523, %v1551
    %1553 = vdwg.mxu0
    %1554 = vmatpush.bf16.msra.mxu0 %v1164
    %1555 = vmatpush.bf16.msra.mxu0 %v1162
    %1556 = vmatpush.bf16.msra.mxu0 %v1160
    %1557 = vmatpush.bf16.msra.mxu0 %v1158
    %1558 = vmatpush.bf16.msra.mxu0 %v1156
    %1559 = vmatpush.bf16.msra.mxu0 %v1154
    %1560 = vmatpush.bf16.msra.mxu0 %v1152
    %1561 = vmatpush.bf16.msra.mxu0 %v1150
    %1562 = vmatmul.bf16.gmra.mxu0 %v690
    %v1563 = vpop.f32.mrf.mxu0
    %v1564 = vadd.f32 %v1535, %v1563
    %v1565 = vpop.f32.mrf.mxu0
    %v1566 = vadd.f32 %v1537, %v1565
    %1567 = vmatmul.bf16.gmra.mxu0 %v696
    %v1568 = vpop.f32.mrf.mxu0
    %v1569 = vadd.f32 %v1540, %v1568
    %v1570 = vpop.f32.mrf.mxu0
    %v1571 = vadd.f32 %v1542, %v1570
    %1572 = vmatmul.bf16.gmra.mxu0 %v702
    %v1573 = vpop.f32.mrf.mxu0
    %v1574 = vadd.f32 %v1545, %v1573
    %v1575 = vpop.f32.mrf.mxu0
    %v1576 = vadd.f32 %v1547, %v1575
    %1577 = vmatmul.bf16.gmra.mxu0 %v708
    %v1578 = vpop.f32.mrf.mxu0
    %v1579 = vadd.f32 %v1550, %v1578
    %v1580 = vpop.f32.mrf.mxu0
    %v1581 = vadd.f32 %v1552, %v1580
    %1582 = vdwg.mxu0
    %1583 = vmatpush.bf16.msra.mxu0 %v1180
    %1584 = vmatpush.bf16.msra.mxu0 %v1178
    %1585 = vmatpush.bf16.msra.mxu0 %v1176
    %1586 = vmatpush.bf16.msra.mxu0 %v1174
    %1587 = vmatpush.bf16.msra.mxu0 %v1172
    %1588 = vmatpush.bf16.msra.mxu0 %v1170
    %1589 = vmatpush.bf16.msra.mxu0 %v1168
    %1590 = vmatpush.bf16.msra.mxu0 %v1166
    %1591 = vmatmul.bf16.gmra.mxu0 %v691
    %v1592 = vpop.f32.mrf.mxu0
    %v1593 = vadd.f32 %v1564, %v1592
    %v1594 = vpop.f32.mrf.mxu0
    %v1595 = vadd.f32 %v1566, %v1594
    %1596 = vmatmul.bf16.gmra.mxu0 %v697
    %v1597 = vpop.f32.mrf.mxu0
    %v1598 = vadd.f32 %v1569, %v1597
    %v1599 = vpop.f32.mrf.mxu0
    %v1600 = vadd.f32 %v1571, %v1599
    %1601 = vmatmul.bf16.gmra.mxu0 %v703
    %v1602 = vpop.f32.mrf.mxu0
    %v1603 = vadd.f32 %v1574, %v1602
    %v1604 = vpop.f32.mrf.mxu0
    %v1605 = vadd.f32 %v1576, %v1604
    %1606 = vmatmul.bf16.gmra.mxu0 %v709
    %v1607 = vpop.f32.mrf.mxu0
    %v1608 = vadd.f32 %v1579, %v1607
    %v1609 = vpop.f32.mrf.mxu0
    %v1610 = vadd.f32 %v1581, %v1609
    %1611 = vdwg.mxu0
    %1612 = vmatpush.bf16.msra.mxu0 %v1196
    %1613 = vmatpush.bf16.msra.mxu0 %v1194
    %1614 = vmatpush.bf16.msra.mxu0 %v1192
    %1615 = vmatpush.bf16.msra.mxu0 %v1190
    %1616 = vmatpush.bf16.msra.mxu0 %v1188
    %1617 = vmatpush.bf16.msra.mxu0 %v1186
    %1618 = vmatpush.bf16.msra.mxu0 %v1184
    %1619 = vmatpush.bf16.msra.mxu0 %v1182
    %1620 = vmatmul.bf16.gmra.mxu0 %v692
    %v1621 = vpop.f32.mrf.mxu0
    %v1622 = vadd.f32 %v1593, %v1621
    %v1623 = vpop.f32.mrf.mxu0
    %v1624 = vadd.f32 %v1595, %v1623
    %1625 = vmatmul.bf16.gmra.mxu0 %v698
    %v1626 = vpop.f32.mrf.mxu0
    %v1627 = vadd.f32 %v1598, %v1626
    %v1628 = vpop.f32.mrf.mxu0
    %v1629 = vadd.f32 %v1600, %v1628
    %1630 = vmatmul.bf16.gmra.mxu0 %v704
    %v1631 = vpop.f32.mrf.mxu0
    %v1632 = vadd.f32 %v1603, %v1631
    %v1633 = vpop.f32.mrf.mxu0
    %v1634 = vadd.f32 %v1605, %v1633
    %1635 = vmatmul.bf16.gmra.mxu0 %v710
    %v1636 = vpop.f32.mrf.mxu0
    %v1637 = vadd.f32 %v1608, %v1636
    %v1638 = vpop.f32.mrf.mxu0
    %v1639 = vadd.f32 %v1610, %v1638
    %1640 = vdwg.mxu0
    %vm1641 = vcmp.gt.f32.partialorder %v1448, 0.0
    %vm1642 = vcmp.gt.f32.partialorder %v1622, 0.0
    %vm1643 = vcmp.gt.f32.partialorder %v1450, 0.0
    %vm1644 = vcmp.gt.f32.partialorder %v1624, 0.0
    %vm1645 = vcmp.gt.f32.partialorder %v1453, 0.0
    %vm1646 = vcmp.gt.f32.partialorder %v1627, 0.0
    %vm1647 = vcmp.gt.f32.partialorder %v1455, 0.0
    %vm1648 = vcmp.gt.f32.partialorder %v1629, 0.0
    %vm1649 = vcmp.gt.f32.partialorder %v1458, 0.0
    %vm1650 = vcmp.gt.f32.partialorder %v1632, 0.0
    %vm1651 = vcmp.gt.f32.partialorder %v1460, 0.0
    %vm1652 = vcmp.gt.f32.partialorder %v1634, 0.0
    %vm1653 = vcmp.gt.f32.partialorder %v1463, 0.0
    %vm1654 = vcmp.gt.f32.partialorder %v1637, 0.0
    %vm1655 = vcmp.gt.f32.partialorder %v1465, 0.0
    %vm1656 = vcmp.gt.f32.partialorder %v1639, 0.0
    %v1657 = vld [vmem:[%s7] sm:$0x3]
    %v1659 = vperm.slane %v1657, 0
    %v1660 = vperm.slane %v1657, 1
    %v1663 = vmul.f32 %v1659, %v1448
    %v1664 = vmul.f32 %v1660, %v1622
    %v1665 = vmul.f32 %v1659, %v1450
    %v1666 = vmul.f32 %v1660, %v1624
    %v1667 = vmul.f32 %v1659, %v1453
    %v1668 = vmul.f32 %v1660, %v1627
    %v1669 = vmul.f32 %v1659, %v1455
    %v1670 = vmul.f32 %v1660, %v1629
    %v1671 = vmul.f32 %v1659, %v1458
    %v1672 = vmul.f32 %v1660, %v1632
    %v1673 = vmul.f32 %v1659, %v1460
    %v1674 = vmul.f32 %v1660, %v1634
    %v1675 = vmul.f32 %v1659, %v1463
    %v1676 = vmul.f32 %v1660, %v1637
    %v1677 = vmul.f32 %v1659, %v1465
    %v1678 = vmul.f32 %v1660, %v1639
    %v1679 = vsel %vm1641, %v1448, %v1663
    %v1680 = vsel %vm1642, %v1622, %v1664
    %v1681 = vsel %vm1643, %v1450, %v1665
    %v1682 = vsel %vm1644, %v1624, %v1666
    %v1683 = vsel %vm1645, %v1453, %v1667
    %v1684 = vsel %vm1646, %v1627, %v1668
    %v1685 = vsel %vm1647, %v1455, %v1669
    %v1686 = vsel %vm1648, %v1629, %v1670
    %v1687 = vsel %vm1649, %v1458, %v1671
    %v1688 = vsel %vm1650, %v1632, %v1672
    %v1689 = vsel %vm1651, %v1460, %v1673
    %v1690 = vsel %vm1652, %v1634, %v1674
    %v1691 = vsel %vm1653, %v1463, %v1675
    %v1692 = vsel %vm1654, %v1637, %v1676
    %v1693 = vsel %vm1655, %v1465, %v1677
    %v1694 = vsel %vm1656, %v1639, %v1678
    %1695 = vst [vmem:[#allocation8] sm:$0xff] %v1679
    %1696 = vst [vmem:[#allocation8 + $0x8] sm:$0xff] %v1680
    %1697 = vst [vmem:[#allocation8 + $0x10] sm:$0xff] %v1681
    %1698 = vst [vmem:[#allocation8 + $0x18] sm:$0xff] %v1682
    %1699 = vst [vmem:[#allocation8 + $0x20] sm:$0xff] %v1683
    %1700 = vst [vmem:[#allocation8 + $0x28] sm:$0xff] %v1684
    %1701 = vst [vmem:[#allocation8 + $0x30] sm:$0xff] %v1685
    %1702 = vst [vmem:[#allocation8 + $0x38] sm:$0xff] %v1686
    %1703 = vst [vmem:[#allocation8 + $0x40] sm:$0xff] %v1687
    %1704 = vst [vmem:[#allocation8 + $0x48] sm:$0xff] %v1688
    %1705 = vst [vmem:[#allocation8 + $0x50] sm:$0xff] %v1689
    %1706 = vst [vmem:[#allocation8 + $0x58] sm:$0xff] %v1690
    %1707 = vst [vmem:[#allocation8 + $0x60] sm:$0xff] %v1691
    %1708 = vst [vmem:[#allocation8 + $0x68] sm:$0xff] %v1692
    %1709 = vst [vmem:[#allocation8 + $0x70] sm:$0xff] %v1693
    %1710 = vst [vmem:[#allocation8 + $0x78] sm:$0xff] %v1694
    // Predicated region
    $region46: #{tpu_custom_call.1} parent=1 // pred_check
      _
    $region47: #{tpu_custom_call.1} parent=1 // pred_check_branch
      %1712 = sbr.rel (0) target = $region49
    $region48: #{tpu_custom_call.1} parent=1 // pred_region
      %1714 = vsyncadd [#allocation4], 0
      %s1715 = sshll.u32 [#allocation8], 4
      %s1716 = int_to_ptr.vmem [resolvable:$true] %s1715
      %s1717 = sshll.u32 %s8, 4
      %s1718 = int_to_ptr.hbm [resolvable:$true] %s1717
      %1723 = dma.vmem_to_hbm [thread:$0]  %s1716, 2048, %s1718, [#allocation4], 256, 256, 16
    $region49: #{tpu_custom_call.1} parent=1 // pred_fallthru
      _
    // Predicated region
    $region50: #{tpu_custom_call.1} parent=1 // pred_check
      _
    $region51: #{tpu_custom_call.1} parent=1 // pred_check_branch
      %1725 = sbr.rel (0) target = $region53
    $region52: #{tpu_custom_call.1} parent=1 // pred_region
      %1727 = dma.done [#allocation4], 2048
    $region53: #{tpu_custom_call.1} parent=1 // pred_fallthru
      _
    %1728 = vsyncpa [#allocation3], 1
    %1729 = vsyncpa [#allocation6], 1
    %1730 = vsyncpa [#allocation4], 1

// kernel: tpu_custom_call.1
$region0: #{tpu_custom_call.1}
  #allocation0 [shape = 'u32[]', space=smem, size = 0x4, offset = 0x4, fixed_abs, tag = 'smem constant byte address 0x4 - core index']
  #allocation1 [shape = 'u32[72,128]{1,0:T(1,128)}', space=vmem, size = 0x9000, scoped, tag = 'internal scratch']
  %s0 = inlined_call_operand.hbm [shape: f32[2,16,64], index: 0, kind: input, shape index: {}]
  %s1 = inlined_call_operand.vmem [shape: bf16[32,16], index: 1, kind: input, shape index: {}]
  %s2 = inlined_call_operand.hbm [shape: bf16[192,256], index: 2, kind: input, shape index: {}]
  %s3 = inlined_call_operand.hbm [shape: bf16[768,256], index: 3, kind: input, shape index: {}]
  %s4 = inlined_call_operand.vmem [shape: f32[1,256], index: 4, kind: input, shape index: {}]
  %s5 = inlined_call_operand.vmem [shape: f32[1,256], index: 5, kind: input, shape index: {}]
  %s6 = inlined_call_operand.vmem [shape: f32[1,256], index: 6, kind: input, shape index: {}]
  %s7 = inlined_call_operand.vmem [shape: f32[1,256], index: 7, kind: input, shape index: {}]
  %s8 = inlined_call_operand.hbm [shape: f32[2,32,256], index: 8, kind: output, shape index: {}]
  %s9 = sld [smem:[#allocation0]]
  $region54: #{tpu_custom_call.1} parent=0
    _
  %s11 = ssub.s32 1, %s9
  %s12 = scalar_select 0, %s11, %s9
  $region1: #{tpu_custom_call.1} parent=0
    #allocation2 [shape = 'u8[16384]{0}', space=vmem, size = 0x4000, scoped, tag = 'input window, operand 0, single buffered']
    #allocation3 [shape = 's32[1]{0}', space=sflag, size = 0x4, scoped, tag = 'scoped memory for tpu_custom_call.1']
    #allocation4 [shape = 's32[1]{0}', space=sflag, size = 0x4, scoped, tag = 'scoped memory for tpu_custom_call.1']
    #allocation5 [shape = 'u8[98304]{0}', space=vmem, size = 0x18000, scoped, tag = 'input window, operand 2, single buffered']
    #allocation6 [shape = 's32[1]{0}', space=sflag, size = 0x4, scoped, tag = 'scoped memory for tpu_custom_call.1']
    #allocation7 [shape = 'u8[393216]{0}', space=vmem, size = 0x60000, scoped, tag = 'input window, operand 3, single buffered']
    #allocation8 [shape = 'u8[65536]{0}', space=vmem, size = 0x10000, scoped, tag = 'output window, operand 0, single buffered']
    %13 = vsyncpa [#allocation3], 0
    %14 = vsyncpa [#allocation6], 0
    %15 = vsyncpa [#allocation4], 0
    // Predicated region
    $region2: #{tpu_custom_call.1} parent=1 // pred_check
      _
    $region3: #{tpu_custom_call.1} parent=1 // pred_check_branch
      %17 = sbr.rel (0) target = $region5
    $region4: #{tpu_custom_call.1} parent=1 // pred_region
      %19 = vsyncadd [#allocation3], 0
      %s20 = sshll.u32 %s0, 4
      %s21 = int_to_ptr.hbm [resolvable:$true] %s20
      %s22 = sshll.u32 [#allocation2], 4
      %s23 = int_to_ptr.vmem [resolvable:$true] %s22
      %28 = dma.hbm_to_vmem [thread:$0]  %s21, 512, %s23, [#allocation3], 128, 128, 8
    $region5: #{tpu_custom_call.1} parent=1 // pred_fallthru
      _
    // Predicated region
    $region6: #{tpu_custom_call.1} parent=1 // pred_check
      _
    $region7: #{tpu_custom_call.1} parent=1 // pred_check_branch
      %30 = sbr.rel (0) target = $region9
    $region8: #{tpu_custom_call.1} parent=1 // pred_region
      _
    $region9: #{tpu_custom_call.1} parent=1 // pred_fallthru
      _
    // Predicated region
    $region10: #{tpu_custom_call.1} parent=1 // pred_check
      _
    $region11: #{tpu_custom_call.1} parent=1 // pred_check_branch
      %32 = sbr.rel (0) target = $region13
    $region12: #{tpu_custom_call.1} parent=1 // pred_region
      %34 = vsyncadd [#allocation6], 0
      %s35 = sshll.u32 %s2, 4
      %s36 = int_to_ptr.hbm [resolvable:$true] %s35
      %s37 = sshll.u32 [#allocation5], 4
      %s38 = int_to_ptr.vmem [resolvable:$true] %s37
      %43 = dma.hbm_to_vmem [thread:$0]  %s36, 3072, %s38, [#allocation6], 128, 128, 8
    $region13: #{tpu_custom_call.1} parent=1 // pred_fallthru
      _
    // Predicated region
    $region14: #{tpu_custom_call.1} parent=1 // pred_check
      _
    $region15: #{tpu_custom_call.1} parent=1 // pred_check_branch
      %45 = sbr.rel (0) target = $region17
    $region16: #{tpu_custom_call.1} parent=1 // pred_region
      %47 = vsyncadd [#allocation6], 0
      %s48 = sshll.u32 %s3, 4
      %s49 = int_to_ptr.hbm [resolvable:$true] %s48
      %s50 = sshll.u32 [#allocation7], 4
      %s51 = int_to_ptr.vmem [resolvable:$true] %s50
      %56 = dma.hbm_to_vmem [thread:$0]  %s49, 12288, %s51, [#allocation6], 128, 128, 8
    $region17: #{tpu_custom_call.1} parent=1 // pred_fallthru
      _
    // Predicated region
    $region18: #{tpu_custom_call.1} parent=1 // pred_check
      _
    $region19: #{tpu_custom_call.1} parent=1 // pred_check_branch
      %58 = sbr.rel (0) target = $region21
    $region20: #{tpu_custom_call.1} parent=1 // pred_region
      _
    $region21: #{tpu_custom_call.1} parent=1 // pred_fallthru
      _
    // Predicated region
    $region22: #{tpu_custom_call.1} parent=1 // pred_check
      _
    $region23: #{tpu_custom_call.1} parent=1 // pred_check_branch
      %60 = sbr.rel (0) target = $region25
    $region24: #{tpu_custom_call.1} parent=1 // pred_region
      _
    $region25: #{tpu_custom_call.1} parent=1 // pred_fallthru
      _
    // Predicated region
    $region26: #{tpu_custom_call.1} parent=1 // pred_check
      _
    $region27: #{tpu_custom_call.1} parent=1 // pred_check_branch
      %62 = sbr.rel (0) target = $region29
    $region28: #{tpu_custom_call.1} parent=1 // pred_region
      _
    $region29: #{tpu_custom_call.1} parent=1 // pred_fallthru
      _
    // Predicated region
    $region30: #{tpu_custom_call.1} parent=1 // pred_check
      _
    $region31: #{tpu_custom_call.1} parent=1 // pred_check_branch
      %64 = sbr.rel (0) target = $region33
    $region32: #{tpu_custom_call.1} parent=1 // pred_region
      _
    $region33: #{tpu_custom_call.1} parent=1 // pred_fallthru
      _
    // Predicated region
    $region34: #{tpu_custom_call.1} parent=1 // pred_check
      _
    $region35: #{tpu_custom_call.1} parent=1 // pred_check_branch
      %66 = sbr.rel (0) target = $region37
    $region36: #{tpu_custom_call.1} parent=1 // pred_region
      %68 = dma.done [#allocation3], 512
    $region37: #{tpu_custom_call.1} parent=1 // pred_fallthru
      _
    // Predicated region
    $region38: #{tpu_custom_call.1} parent=1 // pred_check
      _
    $region39: #{tpu_custom_call.1} parent=1 // pred_check_branch
      %70 = sbr.rel (0) target = $region41
    $region40: #{tpu_custom_call.1} parent=1 // pred_region
      %72 = dma.done [#allocation6], 3072
    $region41: #{tpu_custom_call.1} parent=1 // pred_fallthru
      _
    // Predicated region
    $region42: #{tpu_custom_call.1} parent=1 // pred_check
      _
    $region43: #{tpu_custom_call.1} parent=1 // pred_check_branch
      %74 = sbr.rel (0) target = $region45
    $region44: #{tpu_custom_call.1} parent=1 // pred_region
      %76 = dma.done [#allocation6], 12288
    $region45: #{tpu_custom_call.1} parent=1 // pred_fallthru
      _
    %v78 = vld [vmem:[%s1] sm:$0xf]
    %v79 = vld [vmem:[%s1 + $0x4] sm:$0xf]
    %v80 = vld [vmem:[%s1 + $0x8] sm:$0xf]
    %v81 = vld [vmem:[%s1 + $0xc] sm:$0xf]
    %v82 = vld [vmem:[#allocation2] sm:$0xff]
    %v83 = vld [vmem:[#allocation2 + $0x8] sm:$0xff]
    %v84 = vpack.c.bf16 %v83, %v82
    %v89 = vunpack.c.l.b16 %v78
    %v90 = vunpack.c.l.b16 %v79
    %v91 = vunpack.c.l.b16 %v80
    %v92 = vunpack.c.l.b16 %v81
    %v93 = vpack.c.b16 %v90, %v89
    %v94 = vpack.c.b16 %v92, %v91
    %vm95 = vcmask 130048
    %v97 = vsel %vm95, %v93, 0
    %v100 = vsel %vm95, %v94, 0
    %102 = vmatpush.bf16.msra.mxu0 0
    %103 = vmatpush.bf16.msra.mxu0 0
    %104 = vmatpush.bf16.msra.mxu0 0
    %105 = vmatpush.bf16.msra.mxu0 0
    %106 = vmatpush.bf16.msra.mxu0 0
    %107 = vmatpush.bf16.msra.mxu0 0
    %108 = vmatpush.bf16.msra.mxu0 0
    %109 = vmatpush.bf16.msra.mxu0 %v84
    %110 = vmatmul.bf16.gmra.mxu0 %v97
    %v111 = vpop.f32.mrf.mxu0
    %v112 = vadd.f32 0.0, %v111
    %v113 = vpop.f32.mrf.mxu0
    %v114 = vadd.f32 0.0, %v113
    %115 = vmatmul.bf16.gmra.mxu0 %v100
    %v116 = vpop.f32.mrf.mxu0
    %v117 = vadd.f32 0.0, %v116
    %v118 = vpop.f32.mrf.mxu0
    %v119 = vadd.f32 0.0, %v118
    %120 = vdwg.mxu0
    %vm125 = vcmask 1040384
    %v126 = vrot.slane %v112, 7
    %v127 = vrot.slane %v114, 7
    %v128 = vsel %vm125, %v126, %v127
    %v129 = vrot.slane %v117, 7
    %v130 = vsel %vm125, %v127, %v129
    %v131 = vrot.slane %v119, 7
    %v132 = vsel %vm125, %v129, %v131
    %v137 = vsel %vm125, 0.0, %v126
    %vm138 = vcmask 1046528
    %v139 = vrot.slane %v112, 1
    %v140 = vrot.slane %v114, 1
    %v141 = vsel %vm138, %v139, %v140
    %v142 = vrot.slane %v117, 1
    %v143 = vsel %vm138, %v140, %v142
    %v144 = vrot.slane %v119, 1
    %v145 = vsel %vm138, %v142, %v144
    %v150 = vsel %vm138, %v144, 0.0
    %151 = vrot.lane.b32.xlu0 %v112, 64
    %v152 = vpop.permute.xlu0 %151
    %153 = vrot.lane.b32.xlu0 %v114, 64
    %v154 = vpop.permute.xlu0 %153
    %155 = vrot.lane.b32.xlu0 %v117, 64
    %v156 = vpop.permute.xlu0 %155
    %157 = vrot.lane.b32.xlu0 %v119, 64
    %v158 = vpop.permute.xlu0 %157
    %vm163 = vcmask 523264
    %v164 = vsel %vm163, %v137, %v152
    %v165 = vsel %vm163, %v128, %v154
    %v166 = vsel %vm163, %v130, %v156
    %v167 = vsel %vm163, %v132, %v158
    %s168 = scalar_lea.vmem [#allocation2], 16
    %v169 = vld [vmem:[%s168] sm:$0xff]
    %v170 = vld [vmem:[%s168 + $0x8] sm:$0xff]
    %v171 = vpack.c.bf16 %v170, %v169
    %172 = vmatpush.bf16.msra.mxu0 0
    %173 = vmatpush.bf16.msra.mxu0 0
    %174 = vmatpush.bf16.msra.mxu0 0
    %175 = vmatpush.bf16.msra.mxu0 0
    %176 = vmatpush.bf16.msra.mxu0 0
    %177 = vmatpush.bf16.msra.mxu0 0
    %178 = vmatpush.bf16.msra.mxu0 0
    %179 = vmatpush.bf16.msra.mxu0 %v171
    %180 = vmatmul.bf16.gmra.mxu0 %v97
    %v181 = vpop.f32.mrf.mxu0
    %v182 = vadd.f32 0.0, %v181
    %v183 = vpop.f32.mrf.mxu0
    %v184 = vadd.f32 0.0, %v183
    %185 = vmatmul.bf16.gmra.mxu0 %v100
    %v186 = vpop.f32.mrf.mxu0
    %v187 = vadd.f32 0.0, %v186
    %v188 = vpop.f32.mrf.mxu0
    %v189 = vadd.f32 0.0, %v188
    %190 = vdwg.mxu0
    %v195 = vrot.slane %v182, 7
    %v196 = vrot.slane %v184, 7
    %v197 = vsel %vm125, %v195, %v196
    %v198 = vrot.slane %v187, 7
    %v199 = vsel %vm125, %v196, %v198
    %v200 = vrot.slane %v189, 7
    %v201 = vsel %vm125, %v198, %v200
    %v206 = vsel %vm125, 0.0, %v195
    %v207 = vrot.slane %v182, 1
    %v208 = vrot.slane %v184, 1
    %v209 = vsel %vm138, %v207, %v208
    %v210 = vrot.slane %v187, 1
    %v211 = vsel %vm138, %v208, %v210
    %v212 = vrot.slane %v189, 1
    %v213 = vsel %vm138, %v210, %v212
    %v218 = vsel %vm138, %v212, 0.0
    %219 = vrot.lane.b32.xlu0 %v182, 64
    %v220 = vpop.permute.xlu0 %219
    %221 = vrot.lane.b32.xlu0 %v184, 64
    %v222 = vpop.permute.xlu0 %221
    %223 = vrot.lane.b32.xlu0 %v187, 64
    %v224 = vpop.permute.xlu0 %223
    %225 = vrot.lane.b32.xlu0 %v189, 64
    %v226 = vpop.permute.xlu0 %225
    %v231 = vsel %vm163, %v206, %v220
    %v232 = vsel %vm163, %v197, %v222
    %v233 = vsel %vm163, %v199, %v224
    %v234 = vsel %vm163, %v201, %v226
    %v235 = vpack.c.bf16 %v165, %v164
    %v236 = vpack.c.bf16 %v143, %v141
    %v237 = vpack.c.bf16 %v167, %v166
    %v238 = vpack.c.bf16 %v150, %v145
    %v239 = vpack.c.bf16 %v232, %v231
    %v240 = vpack.c.bf16 %v211, %v209
    %v241 = vpack.c.bf16 %v234, %v233
    %v242 = vpack.c.bf16 %v218, %v213
    %v243 = vld [vmem:[#allocation5] sm:$0xff]
    %v244 = vld [vmem:[#allocation5 + $0x8] sm:$0xff]
    %v245 = vld [vmem:[#allocation5 + $0x10] sm:$0xff]
    %v246 = vld [vmem:[#allocation5 + $0x18] sm:$0xff]
    %v247 = vld [vmem:[#allocation5 + $0x20] sm:$0xff]
    %v248 = vld [vmem:[#allocation5 + $0x28] sm:$0xff]
    %v249 = vld [vmem:[#allocation5 + $0x30] sm:$0xff]
    %v250 = vld [vmem:[#allocation5 + $0x38] sm:$0xff]
    %v251 = vld [vmem:[#allocation5 + $0x40] sm:$0xff]
    %v252 = vld [vmem:[#allocation5 + $0x48] sm:$0xff]
    %v253 = vld [vmem:[#allocation5 + $0x50] sm:$0xff]
    %v254 = vld [vmem:[#allocation5 + $0x58] sm:$0xff]
    %v255 = vld [vmem:[#allocation5 + $0x60] sm:$0xff]
    %v256 = vld [vmem:[#allocation5 + $0x68] sm:$0xff]
    %v257 = vld [vmem:[#allocation5 + $0x70] sm:$0xff]
    %v258 = vld [vmem:[#allocation5 + $0x78] sm:$0xff]
    %v259 = vld [vmem:[#allocation5 + $0x80] sm:$0xff]
    %v260 = vld [vmem:[#allocation5 + $0x88] sm:$0xff]
    %v261 = vld [vmem:[#allocation5 + $0x90] sm:$0xff]
    %v262 = vld [vmem:[#allocation5 + $0x98] sm:$0xff]
    %v263 = vld [vmem:[#allocation5 + $0xa0] sm:$0xff]
    %v264 = vld [vmem:[#allocation5 + $0xa8] sm:$0xff]
    %v265 = vld [vmem:[#allocation5 + $0xb0] sm:$0xff]
    %v266 = vld [vmem:[#allocation5 + $0xb8] sm:$0xff]
    %v267 = vld [vmem:[%s4] sm:$0x3]
    %v269 = vperm.slane %v267, 0
    %v270 = vperm.slane %v267, 1
    %v297 = vunpack.c.l.b16 %v243
    %v298 = vunpack.c.h.b16 %v243
    %v299 = vunpack.c.l.b16 %v244
    %v300 = vunpack.c.h.b16 %v244
    %v301 = vunpack.c.l.b16 %v245
    %v302 = vunpack.c.h.b16 %v245
    %v303 = vunpack.c.l.b16 %v246
    %v304 = vunpack.c.h.b16 %v246
    %v305 = vunpack.c.l.b16 %v247
    %v306 = vunpack.c.h.b16 %v247
    %v307 = vunpack.c.l.b16 %v248
    %v308 = vunpack.c.h.b16 %v248
    %v309 = vunpack.c.l.b16 %v249
    %v310 = vunpack.c.h.b16 %v249
    %v311 = vunpack.c.l.b16 %v250
    %v312 = vunpack.c.h.b16 %v250
    %v313 = vunpack.c.l.b16 %v251
    %v314 = vunpack.c.h.b16 %v251
    %v315 = vunpack.c.l.b16 %v252
    %v316 = vunpack.c.h.b16 %v252
    %v317 = vunpack.c.l.b16 %v253
    %v318 = vunpack.c.h.b16 %v253
    %v319 = vunpack.c.l.b16 %v254
    %v320 = vunpack.c.h.b16 %v254
    %v321 = vunpack.c.l.b16 %v255
    %v322 = vunpack.c.h.b16 %v255
    %v323 = vunpack.c.l.b16 %v256
    %v324 = vunpack.c.h.b16 %v256
    %v325 = vunpack.c.l.b16 %v257
    %v326 = vunpack.c.h.b16 %v257
    %v327 = vunpack.c.l.b16 %v258
    %v328 = vunpack.c.h.b16 %v258
    %v329 = vunpack.c.l.b16 %v259
    %v330 = vunpack.c.h.b16 %v259
    %v331 = vunpack.c.l.b16 %v260
    %v332 = vunpack.c.h.b16 %v260
    %v333 = vunpack.c.l.b16 %v261
    %v334 = vunpack.c.h.b16 %v261
    %v335 = vunpack.c.l.b16 %v262
    %v336 = vunpack.c.h.b16 %v262
    %v337 = vunpack.c.l.b16 %v263
    %v338 = vunpack.c.h.b16 %v263
    %v339 = vunpack.c.l.b16 %v264
    %v340 = vunpack.c.h.b16 %v264
    %v341 = vunpack.c.l.b16 %v265
    %v342 = vunpack.c.h.b16 %v265
    %v343 = vunpack.c.l.b16 %v266
    %v344 = vunpack.c.h.b16 %v266
    %v345 = vpack.c.b16 %v299, %v297
    %v346 = vpack.c.b16 %v300, %v298
    %v347 = vpack.c.b16 %v303, %v301
    %v348 = vpack.c.b16 %v304, %v302
    %v349 = vpack.c.b16 %v307, %v305
    %v350 = vpack.c.b16 %v308, %v306
    %v351 = vpack.c.b16 %v311, %v309
    %v352 = vpack.c.b16 %v312, %v310
    %v353 = vpack.c.b16 %v315, %v313
    %v354 = vpack.c.b16 %v316, %v314
    %v355 = vpack.c.b16 %v319, %v317
    %v356 = vpack.c.b16 %v320, %v318
    %v357 = vpack.c.b16 %v323, %v321
    %v358 = vpack.c.b16 %v324, %v322
    %v359 = vpack.c.b16 %v327, %v325
    %v360 = vpack.c.b16 %v328, %v326
    %v361 = vpack.c.b16 %v331, %v329
    %v362 = vpack.c.b16 %v332, %v330
    %v363 = vpack.c.b16 %v335, %v333
    %v364 = vpack.c.b16 %v336, %v334
    %v365 = vpack.c.b16 %v339, %v337
    %v366 = vpack.c.b16 %v340, %v338
    %v367 = vpack.c.b16 %v343, %v341
    %v368 = vpack.c.b16 %v344, %v342
    %v394 = vsel %vm163, %v236, 0
    %v397 = vsel %vm163, %v238, 0
    %v400 = vsel %vm163, %v240, 0
    %v403 = vsel %vm163, %v242, 0
    %405 = vmatpush.bf16.msra.mxu0 %v359
    %406 = vmatpush.bf16.msra.mxu0 %v357
    %407 = vmatpush.bf16.msra.mxu0 %v355
    %408 = vmatpush.bf16.msra.mxu0 %v353
    %409 = vmatpush.bf16.msra.mxu0 %v351
    %410 = vmatpush.bf16.msra.mxu0 %v349
    %411 = vmatpush.bf16.msra.mxu0 %v347
    %412 = vmatpush.bf16.msra.mxu0 %v345
    %413 = vmatmul.bf16.gmra.mxu0 %v235
    %v414 = vpop.f32.mrf.mxu0
    %v415 = vadd.f32 %v269, %v414
    %v416 = vpop.f32.mrf.mxu0
    %v417 = vadd.f32 %v269, %v416
    %418 = vmatmul.bf16.gmra.mxu0 %v237
    %v419 = vpop.f32.mrf.mxu0
    %v420 = vadd.f32 %v269, %v419
    %v421 = vpop.f32.mrf.mxu0
    %v422 = vadd.f32 %v269, %v421
    %423 = vmatmul.bf16.gmra.mxu0 %v239
    %v424 = vpop.f32.mrf.mxu0
    %v425 = vadd.f32 %v269, %v424
    %v426 = vpop.f32.mrf.mxu0
    %v427 = vadd.f32 %v269, %v426
    %428 = vmatmul.bf16.gmra.mxu0 %v241
    %v429 = vpop.f32.mrf.mxu0
    %v430 = vadd.f32 %v269, %v429
    %v431 = vpop.f32.mrf.mxu0
    %v432 = vadd.f32 %v269, %v431
    %433 = vdwg.mxu0
    %434 = vmatpush.bf16.msra.mxu0 0
    %435 = vmatpush.bf16.msra.mxu0 0
    %436 = vmatpush.bf16.msra.mxu0 0
    %437 = vmatpush.bf16.msra.mxu0 0
    %438 = vmatpush.bf16.msra.mxu0 %v367
    %439 = vmatpush.bf16.msra.mxu0 %v365
    %440 = vmatpush.bf16.msra.mxu0 %v363
    %441 = vmatpush.bf16.msra.mxu0 %v361
    %442 = vmatmul.bf16.gmra.mxu0 %v394
    %v443 = vpop.f32.mrf.mxu0
    %v444 = vadd.f32 %v415, %v443
    %v445 = vpop.f32.mrf.mxu0
    %v446 = vadd.f32 %v417, %v445
    %447 = vmatmul.bf16.gmra.mxu0 %v397
    %v448 = vpop.f32.mrf.mxu0
    %v449 = vadd.f32 %v420, %v448
    %v450 = vpop.f32.mrf.mxu0
    %v451 = vadd.f32 %v422, %v450
    %452 = vmatmul.bf16.gmra.mxu0 %v400
    %v453 = vpop.f32.mrf.mxu0
    %v454 = vadd.f32 %v425, %v453
    %v455 = vpop.f32.mrf.mxu0
    %v456 = vadd.f32 %v427, %v455
    %457 = vmatmul.bf16.gmra.mxu0 %v403
    %v458 = vpop.f32.mrf.mxu0
    %v459 = vadd.f32 %v430, %v458
    %v460 = vpop.f32.mrf.mxu0
    %v461 = vadd.f32 %v432, %v460
    %462 = vdwg.mxu0
    %463 = vmatpush.bf16.msra.mxu0 %v360
    %464 = vmatpush.bf16.msra.mxu0 %v358
    %465 = vmatpush.bf16.msra.mxu0 %v356
    %466 = vmatpush.bf16.msra.mxu0 %v354
    %467 = vmatpush.bf16.msra.mxu0 %v352
    %468 = vmatpush.bf16.msra.mxu0 %v350
    %469 = vmatpush.bf16.msra.mxu0 %v348
    %470 = vmatpush.bf16.msra.mxu0 %v346
    %471 = vmatmul.bf16.gmra.mxu0 %v235
    %v472 = vpop.f32.mrf.mxu0
    %v473 = vadd.f32 %v270, %v472
    %v474 = vpop.f32.mrf.mxu0
    %v475 = vadd.f32 %v270, %v474
    %476 = vmatmul.bf16.gmra.mxu0 %v237
    %v477 = vpop.f32.mrf.mxu0
    %v478 = vadd.f32 %v270, %v477
    %v479 = vpop.f32.mrf.mxu0
    %v480 = vadd.f32 %v270, %v479
    %481 = vmatmul.bf16.gmra.mxu0 %v239
    %v482 = vpop.f32.mrf.mxu0
    %v483 = vadd.f32 %v270, %v482
    %v484 = vpop.f32.mrf.mxu0
    %v485 = vadd.f32 %v270, %v484
    %486 = vmatmul.bf16.gmra.mxu0 %v241
    %v487 = vpop.f32.mrf.mxu0
    %v488 = vadd.f32 %v270, %v487
    %v489 = vpop.f32.mrf.mxu0
    %v490 = vadd.f32 %v270, %v489
    %491 = vdwg.mxu0
    %492 = vmatpush.bf16.msra.mxu0 0
    %493 = vmatpush.bf16.msra.mxu0 0
    %494 = vmatpush.bf16.msra.mxu0 0
    %495 = vmatpush.bf16.msra.mxu0 0
    %496 = vmatpush.bf16.msra.mxu0 %v368
    %497 = vmatpush.bf16.msra.mxu0 %v366
    %498 = vmatpush.bf16.msra.mxu0 %v364
    %499 = vmatpush.bf16.msra.mxu0 %v362
    %500 = vmatmul.bf16.gmra.mxu0 %v394
    %v501 = vpop.f32.mrf.mxu0
    %v502 = vadd.f32 %v473, %v501
    %v503 = vpop.f32.mrf.mxu0
    %v504 = vadd.f32 %v475, %v503
    %505 = vmatmul.bf16.gmra.mxu0 %v397
    %v506 = vpop.f32.mrf.mxu0
    %v507 = vadd.f32 %v478, %v506
    %v508 = vpop.f32.mrf.mxu0
    %v509 = vadd.f32 %v480, %v508
    %510 = vmatmul.bf16.gmra.mxu0 %v400
    %v511 = vpop.f32.mrf.mxu0
    %v512 = vadd.f32 %v483, %v511
    %v513 = vpop.f32.mrf.mxu0
    %v514 = vadd.f32 %v485, %v513
    %515 = vmatmul.bf16.gmra.mxu0 %v403
    %v516 = vpop.f32.mrf.mxu0
    %v517 = vadd.f32 %v488, %v516
    %v518 = vpop.f32.mrf.mxu0
    %v519 = vadd.f32 %v490, %v518
    %520 = vdwg.mxu0
    %vm521 = vcmp.gt.f32.partialorder %v444, 0.0
    %vm522 = vcmp.gt.f32.partialorder %v502, 0.0
    %vm523 = vcmp.gt.f32.partialorder %v446, 0.0
    %vm524 = vcmp.gt.f32.partialorder %v504, 0.0
    %vm525 = vcmp.gt.f32.partialorder %v449, 0.0
    %vm526 = vcmp.gt.f32.partialorder %v507, 0.0
    %vm527 = vcmp.gt.f32.partialorder %v451, 0.0
    %vm528 = vcmp.gt.f32.partialorder %v509, 0.0
    %vm529 = vcmp.gt.f32.partialorder %v454, 0.0
    %vm530 = vcmp.gt.f32.partialorder %v512, 0.0
    %vm531 = vcmp.gt.f32.partialorder %v456, 0.0
    %vm532 = vcmp.gt.f32.partialorder %v514, 0.0
    %vm533 = vcmp.gt.f32.partialorder %v459, 0.0
    %vm534 = vcmp.gt.f32.partialorder %v517, 0.0
    %vm535 = vcmp.gt.f32.partialorder %v461, 0.0
    %vm536 = vcmp.gt.f32.partialorder %v519, 0.0
    %v537 = vld [vmem:[%s5] sm:$0x3]
    %v539 = vperm.slane %v537, 0
    %v540 = vperm.slane %v537, 1
    %v543 = vmul.f32 %v539, %v444
    %v544 = vmul.f32 %v540, %v502
    %v545 = vmul.f32 %v539, %v446
    %v546 = vmul.f32 %v540, %v504
    %v547 = vmul.f32 %v539, %v449
    %v548 = vmul.f32 %v540, %v507
    %v549 = vmul.f32 %v539, %v451
    %v550 = vmul.f32 %v540, %v509
    %v551 = vmul.f32 %v539, %v454
    %v552 = vmul.f32 %v540, %v512
    %v553 = vmul.f32 %v539, %v456
    %v554 = vmul.f32 %v540, %v514
    %v555 = vmul.f32 %v539, %v459
    %v556 = vmul.f32 %v540, %v517
    %v557 = vmul.f32 %v539, %v461
    %v558 = vmul.f32 %v540, %v519
    %v559 = vsel %vm521, %v444, %v543
    %v560 = vsel %vm522, %v502, %v544
    %v561 = vsel %vm523, %v446, %v545
    %v562 = vsel %vm524, %v504, %v546
    %v563 = vsel %vm525, %v449, %v547
    %v564 = vsel %vm526, %v507, %v548
    %v565 = vsel %vm527, %v451, %v549
    %v566 = vsel %vm528, %v509, %v550
    %v567 = vsel %vm529, %v454, %v551
    %v568 = vsel %vm530, %v512, %v552
    %v569 = vsel %vm531, %v456, %v553
    %v570 = vsel %vm532, %v514, %v554
    %v571 = vsel %vm533, %v459, %v555
    %v572 = vsel %vm534, %v517, %v556
    %v573 = vsel %vm535, %v461, %v557
    %v574 = vsel %vm536, %v519, %v558
    %v583 = vrot.slane %v559, 7
    %v584 = vrot.slane %v560, 7
    %v585 = vrot.slane %v561, 7
    %v586 = vsel %vm125, %v583, %v585
    %v587 = vrot.slane %v562, 7
    %v588 = vsel %vm125, %v584, %v587
    %v589 = vrot.slane %v563, 7
    %v590 = vsel %vm125, %v585, %v589
    %v591 = vrot.slane %v564, 7
    %v592 = vsel %vm125, %v587, %v591
    %v593 = vrot.slane %v565, 7
    %v594 = vsel %vm125, %v589, %v593
    %v595 = vrot.slane %v566, 7
    %v596 = vsel %vm125, %v591, %v595
    %v605 = vsel %vm125, 0.0, %v583
    %v606 = vsel %vm125, 0.0, %v584
    %v607 = vrot.slane %v559, 1
    %v608 = vrot.slane %v561, 1
    %v609 = vsel %vm138, %v607, %v608
    %v610 = vrot.slane %v560, 1
    %v611 = vrot.slane %v562, 1
    %v612 = vsel %vm138, %v610, %v611
    %v613 = vrot.slane %v563, 1
    %v614 = vsel %vm138, %v608, %v613
    %v615 = vrot.slane %v564, 1
    %v616 = vsel %vm138, %v611, %v615
    %v617 = vrot.slane %v565, 1
    %v618 = vsel %vm138, %v613, %v617
    %v619 = vrot.slane %v566, 1
    %v620 = vsel %vm138, %v615, %v619
    %v629 = vsel %vm138, %v617, 0.0
    %v630 = vsel %vm138, %v619, 0.0
    %v639 = vrot.slane %v567, 7
    %v640 = vrot.slane %v568, 7
    %v641 = vrot.slane %v569, 7
    %v642 = vsel %vm125, %v639, %v641
    %v643 = vrot.slane %v570, 7
    %v644 = vsel %vm125, %v640, %v643
    %v645 = vrot.slane %v571, 7
    %v646 = vsel %vm125, %v641, %v645
    %v647 = vrot.slane %v572, 7
    %v648 = vsel %vm125, %v643, %v647
    %v649 = vrot.slane %v573, 7
    %v650 = vsel %vm125, %v645, %v649
    %v651 = vrot.slane %v574, 7
    %v652 = vsel %vm125, %v647, %v651
    %v661 = vsel %vm125, 0.0, %v639
    %v662 = vsel %vm125, 0.0, %v640
    %v663 = vrot.slane %v567, 1
    %v664 = vrot.slane %v569, 1
    %v665 = vsel %vm138, %v663, %v664
    %v666 = vrot.slane %v568, 1
    %v667 = vrot.slane %v570, 1
    %v668 = vsel %vm138, %v666, %v667
    %v669 = vrot.slane %v571, 1
    %v670 = vsel %vm138, %v664, %v669
    %v671 = vrot.slane %v572, 1
    %v672 = vsel %vm138, %v667, %v671
    %v673 = vrot.slane %v573, 1
    %v674 = vsel %vm138, %v669, %v673
    %v675 = vrot.slane %v574, 1
    %v676 = vsel %vm138, %v671, %v675
    %v685 = vsel %vm138, %v673, 0.0
    %v686 = vsel %vm138, %v675, 0.0
    %v687 = vpack.c.bf16 %v586, %v605
    %v688 = vpack.c.bf16 %v588, %v606
    %v689 = vpack.c.bf16 %v561, %v559
    %v690 = vpack.c.bf16 %v562, %v560
    %v691 = vpack.c.bf16 %v614, %v609
    %v692 = vpack.c.bf16 %v616, %v612
    %v693 = vpack.c.bf16 %v594, %v590
    %v694 = vpack.c.bf16 %v596, %v592
    %v695 = vpack.c.bf16 %v565, %v563
    %v696 = vpack.c.bf16 %v566, %v564
    %v697 = vpack.c.bf16 %v629, %v618
    %v698 = vpack.c.bf16 %v630, %v620
    %v699 = vpack.c.bf16 %v642, %v661
    %v700 = vpack.c.bf16 %v644, %v662
    %v701 = vpack.c.bf16 %v569, %v567
    %v702 = vpack.c.bf16 %v570, %v568
    %v703 = vpack.c.bf16 %v670, %v665
    %v704 = vpack.c.bf16 %v672, %v668
    %v705 = vpack.c.bf16 %v650, %v646
    %v706 = vpack.c.bf16 %v652, %v648
    %v707 = vpack.c.bf16 %v573, %v571
    %v708 = vpack.c.bf16 %v574, %v572
    %v709 = vpack.c.bf16 %v685, %v674
    %v710 = vpack.c.bf16 %v686, %v676
    %v711 = vld [vmem:[#allocation7] sm:$0xff]
    %v712 = vld [vmem:[#allocation7 + $0x8] sm:$0xff]
    %v713 = vld [vmem:[#allocation7 + $0x10] sm:$0xff]
    %v714 = vld [vmem:[#allocation7 + $0x18] sm:$0xff]
    %v715 = vld [vmem:[#allocation7 + $0x20] sm:$0xff]
    %v716 = vld [vmem:[#allocation7 + $0x28] sm:$0xff]
    %v717 = vld [vmem:[#allocation7 + $0x30] sm:$0xff]
    %v718 = vld [vmem:[#allocation7 + $0x38] sm:$0xff]
    %v719 = vld [vmem:[#allocation7 + $0x40] sm:$0xff]
    %v720 = vld [vmem:[#allocation7 + $0x48] sm:$0xff]
    %v721 = vld [vmem:[#allocation7 + $0x50] sm:$0xff]
    %v722 = vld [vmem:[#allocation7 + $0x58] sm:$0xff]
    %v723 = vld [vmem:[#allocation7 + $0x60] sm:$0xff]
    %v724 = vld [vmem:[#allocation7 + $0x68] sm:$0xff]
    %v725 = vld [vmem:[#allocation7 + $0x70] sm:$0xff]
    %v726 = vld [vmem:[#allocation7 + $0x78] sm:$0xff]
    %v727 = vld [vmem:[#allocation7 + $0x80] sm:$0xff]
    %v728 = vld [vmem:[#allocation7 + $0x88] sm:$0xff]
    %v729 = vld [vmem:[#allocation7 + $0x90] sm:$0xff]
    %v730 = vld [vmem:[#allocation7 + $0x98] sm:$0xff]
    %v731 = vld [vmem:[#allocation7 + $0xa0] sm:$0xff]
    %v732 = vld [vmem:[#allocation7 + $0xa8] sm:$0xff]
    %v733 = vld [vmem:[#allocation7 + $0xb0] sm:$0xff]
    %v734 = vld [vmem:[#allocation7 + $0xb8] sm:$0xff]
    %v735 = vld [vmem:[#allocation7 + $0xc0] sm:$0xff]
    %v736 = vld [vmem:[#allocation7 + $0xc8] sm:$0xff]
    %v737 = vld [vmem:[#allocation7 + $0xd0] sm:$0xff]
    %v738 = vld [vmem:[#allocation7 + $0xd8] sm:$0xff]
    %v739 = vld [vmem:[#allocation7 + $0xe0] sm:$0xff]
    %v740 = vld [vmem:[#allocation7 + $0xe8] sm:$0xff]
    %v741 = vld [vmem:[#allocation7 + $0xf0] sm:$0xff]
    %v742 = vld [vmem:[#allocation7 + $0xf8] sm:$0xff]
    %v743 = vld [vmem:[#allocation7 + $0x100] sm:$0xff]
    %v744 = vld [vmem:[#allocation7 + $0x108] sm:$0xff]
    %v745 = vld [vmem:[#allocation7 + $0x110] sm:$0xff]
    %v746 = vld [vmem:[#allocation7 + $0x118] sm:$0xff]
    %v747 = vld [vmem:[#allocation7 + $0x120] sm:$0xff]
    %v748 = vld [vmem:[#allocation7 + $0x128] sm:$0xff]
    %v749 = vld [vmem:[#allocation7 + $0x130] sm:$0xff]
    %v750 = vld [vmem:[#allocation7 + $0x138] sm:$0xff]
    %v751 = vld [vmem:[#allocation7 + $0x140] sm:$0xff]
    %v752 = vld [vmem:[#allocation7 + $0x148] sm:$0xff]
    %v753 = vld [vmem:[#allocation7 + $0x150] sm:$0xff]
    %v754 = vld [vmem:[#allocation7 + $0x158] sm:$0xff]
    %v755 = vld [vmem:[#allocation7 + $0x160] sm:$0xff]
    %v756 = vld [vmem:[#allocation7 + $0x168] sm:$0xff]
    %v757 = vld [vmem:[#allocation7 + $0x170] sm:$0xff]
    %v758 = vld [vmem:[#allocation7 + $0x178] sm:$0xff]
    %v759 = vld [vmem:[#allocation7 + $0x180] sm:$0xff]
    %v760 = vld [vmem:[#allocation7 + $0x188] sm:$0xff]
    %v761 = vld [vmem:[#allocation7 + $0x190] sm:$0xff]
    %v762 = vld [vmem:[#allocation7 + $0x198] sm:$0xff]
    %v763 = vld [vmem:[#allocation7 + $0x1a0] sm:$0xff]
    %v764 = vld [vmem:[#allocation7 + $0x1a8] sm:$0xff]
    %v765 = vld [vmem:[#allocation7 + $0x1b0] sm:$0xff]
    %v766 = vld [vmem:[#allocation7 + $0x1b8] sm:$0xff]
    %v767 = vld [vmem:[#allocation7 + $0x1c0] sm:$0xff]
    %v768 = vld [vmem:[#allocation7 + $0x1c8] sm:$0xff]
    %v769 = vld [vmem:[#allocation7 + $0x1d0] sm:$0xff]
    %v770 = vld [vmem:[#allocation7 + $0x1d8] sm:$0xff]
    %v771 = vld [vmem:[#allocation7 + $0x1e0] sm:$0xff]
    %v772 = vld [vmem:[#allocation7 + $0x1e8] sm:$0xff]
    %v773 = vld [vmem:[#allocation7 + $0x1f0] sm:$0xff]
    %v774 = vld [vmem:[#allocation7 + $0x1f8] sm:$0xff]
    %v775 = vld [vmem:[#allocation7 + $0x200] sm:$0xff]
    %v776 = vld [vmem:[#allocation7 + $0x208] sm:$0xff]
    %v777 = vld [vmem:[#allocation7 + $0x210] sm:$0xff]
    %v778 = vld [vmem:[#allocation7 + $0x218] sm:$0xff]
    %v779 = vld [vmem:[#allocation7 + $0x220] sm:$0xff]
    %v780 = vld [vmem:[#allocation7 + $0x228] sm:$0xff]
    %v781 = vld [vmem:[#allocation7 + $0x230] sm:$0xff]
    %v782 = vld [vmem:[#allocation7 + $0x238] sm:$0xff]
    %v783 = vld [vmem:[#allocation7 + $0x240] sm:$0xff]
    %v784 = vld [vmem:[#allocation7 + $0x248] sm:$0xff]
    %v785 = vld [vmem:[#allocation7 + $0x250] sm:$0xff]
    %v786 = vld [vmem:[#allocation7 + $0x258] sm:$0xff]
    %v787 = vld [vmem:[#allocation7 + $0x260] sm:$0xff]
    %v788 = vld [vmem:[#allocation7 + $0x268] sm:$0xff]
    %v789 = vld [vmem:[#allocation7 + $0x270] sm:$0xff]
    %v790 = vld [vmem:[#allocation7 + $0x278] sm:$0xff]
    %v791 = vld [vmem:[#allocation7 + $0x280] sm:$0xff]
    %v792 = vld [vmem:[#allocation7 + $0x288] sm:$0xff]
    %v793 = vld [vmem:[#allocation7 + $0x290] sm:$0xff]
    %v794 = vld [vmem:[#allocation7 + $0x298] sm:$0xff]
    %v795 = vld [vmem:[#allocation7 + $0x2a0] sm:$0xff]
    %v796 = vld [vmem:[#allocation7 + $0x2a8] sm:$0xff]
    %v797 = vld [vmem:[#allocation7 + $0x2b0] sm:$0xff]
    %v798 = vld [vmem:[#allocation7 + $0x2b8] sm:$0xff]
    %v799 = vld [vmem:[#allocation7 + $0x2c0] sm:$0xff]
    %v800 = vld [vmem:[#allocation7 + $0x2c8] sm:$0xff]
    %v801 = vld [vmem:[#allocation7 + $0x2d0] sm:$0xff]
    %v802 = vld [vmem:[#allocation7 + $0x2d8] sm:$0xff]
    %v803 = vld [vmem:[#allocation7 + $0x2e0] sm:$0xff]
    %v804 = vld [vmem:[#allocation7 + $0x2e8] sm:$0xff]
    %v805 = vld [vmem:[#allocation7 + $0x2f0] sm:$0xff]
    %v806 = vld [vmem:[#allocation7 + $0x2f8] sm:$0xff]
    %v807 = vld [vmem:[%s6] sm:$0x3]
    %v809 = vperm.slane %v807, 0
    %v810 = vperm.slane %v807, 1
    %v909 = vunpack.c.l.b16 %v711
    %v910 = vunpack.c.h.b16 %v711
    %v911 = vunpack.c.l.b16 %v712
    %v912 = vunpack.c.h.b16 %v712
    %v913 = vunpack.c.l.b16 %v713
    %v914 = vunpack.c.h.b16 %v713
    %v915 = vunpack.c.l.b16 %v714
    %v916 = vunpack.c.h.b16 %v714
    %v917 = vunpack.c.l.b16 %v715
    %v918 = vunpack.c.h.b16 %v715
    %v919 = vunpack.c.l.b16 %v716
    %v920 = vunpack.c.h.b16 %v716
    %v921 = vunpack.c.l.b16 %v717
    %v922 = vunpack.c.h.b16 %v717
    %v923 = vunpack.c.l.b16 %v718
    %v924 = vunpack.c.h.b16 %v718
    %v925 = vunpack.c.l.b16 %v719
    %v926 = vunpack.c.h.b16 %v719
    %v927 = vunpack.c.l.b16 %v720
    %v928 = vunpack.c.h.b16 %v720
    %v929 = vunpack.c.l.b16 %v721
    %v930 = vunpack.c.h.b16 %v721
    %v931 = vunpack.c.l.b16 %v722
    %v932 = vunpack.c.h.b16 %v722
    %v933 = vunpack.c.l.b16 %v723
    %v934 = vunpack.c.h.b16 %v723
    %v935 = vunpack.c.l.b16 %v724
    %v936 = vunpack.c.h.b16 %v724
    %v937 = vunpack.c.l.b16 %v725
    %v938 = vunpack.c.h.b16 %v725
    %v939 = vunpack.c.l.b16 %v726
    %v940 = vunpack.c.h.b16 %v726
    %v941 = vunpack.c.l.b16 %v727
    %v942 = vunpack.c.h.b16 %v727
    %v943 = vunpack.c.l.b16 %v728
    %v944 = vunpack.c.h.b16 %v728
    %v945 = vunpack.c.l.b16 %v729
    %v946 = vunpack.c.h.b16 %v729
    %v947 = vunpack.c.l.b16 %v730
    %v948 = vunpack.c.h.b16 %v730
    %v949 = vunpack.c.l.b16 %v731
    %v950 = vunpack.c.h.b16 %v731
    %v951 = vunpack.c.l.b16 %v732
    %v952 = vunpack.c.h.b16 %v732
    %v953 = vunpack.c.l.b16 %v733
    %v954 = vunpack.c.h.b16 %v733
    %v955 = vunpack.c.l.b16 %v734
    %v956 = vunpack.c.h.b16 %v734
    %v957 = vunpack.c.l.b16 %v735
    %v958 = vunpack.c.h.b16 %v735
    %v959 = vunpack.c.l.b16 %v736
    %v960 = vunpack.c.h.b16 %v736
    %v961 = vunpack.c.l.b16 %v737
    %v962 = vunpack.c.h.b16 %v737
    %v963 = vunpack.c.l.b16 %v738
    %v964 = vunpack.c.h.b16 %v738
    %v965 = vunpack.c.l.b16 %v739
    %v966 = vunpack.c.h.b16 %v739
    %v967 = vunpack.c.l.b16 %v740
    %v968 = vunpack.c.h.b16 %v740
    %v969 = vunpack.c.l.b16 %v741
    %v970 = vunpack.c.h.b16 %v741
    %v971 = vunpack.c.l.b16 %v742
    %v972 = vunpack.c.h.b16 %v742
    %v973 = vunpack.c.l.b16 %v743
    %v974 = vunpack.c.h.b16 %v743
    %v975 = vunpack.c.l.b16 %v744
    %v976 = vunpack.c.h.b16 %v744
    %v977 = vunpack.c.l.b16 %v745
    %v978 = vunpack.c.h.b16 %v745
    %v979 = vunpack.c.l.b16 %v746
    %v980 = vunpack.c.h.b16 %v746
    %v981 = vunpack.c.l.b16 %v747
    %v982 = vunpack.c.h.b16 %v747
    %v983 = vunpack.c.l.b16 %v748
    %v984 = vunpack.c.h.b16 %v748
    %v985 = vunpack.c.l.b16 %v749
    %v986 = vunpack.c.h.b16 %v749
    %v987 = vunpack.c.l.b16 %v750
    %v988 = vunpack.c.h.b16 %v750
    %v989 = vunpack.c.l.b16 %v751
    %v990 = vunpack.c.h.b16 %v751
    %v991 = vunpack.c.l.b16 %v752
    %v992 = vunpack.c.h.b16 %v752
    %v993 = vunpack.c.l.b16 %v753
    %v994 = vunpack.c.h.b16 %v753
    %v995 = vunpack.c.l.b16 %v754
    %v996 = vunpack.c.h.b16 %v754
    %v997 = vunpack.c.l.b16 %v755
    %v998 = vunpack.c.h.b16 %v755
    %v999 = vunpack.c.l.b16 %v756
    %v1000 = vunpack.c.h.b16 %v756
    %v1001 = vunpack.c.l.b16 %v757
    %v1002 = vunpack.c.h.b16 %v757
    %v1003 = vunpack.c.l.b16 %v758
    %v1004 = vunpack.c.h.b16 %v758
    %v1005 = vunpack.c.l.b16 %v759
    %v1006 = vunpack.c.h.b16 %v759
    %v1007 = vunpack.c.l.b16 %v760
    %v1008 = vunpack.c.h.b16 %v760
    %v1009 = vunpack.c.l.b16 %v761
    %v1010 = vunpack.c.h.b16 %v761
    %v1011 = vunpack.c.l.b16 %v762
    %v1012 = vunpack.c.h.b16 %v762
    %v1013 = vunpack.c.l.b16 %v763
    %v1014 = vunpack.c.h.b16 %v763
    %v1015 = vunpack.c.l.b16 %v764
    %v1016 = vunpack.c.h.b16 %v764
    %v1017 = vunpack.c.l.b16 %v765
    %v1018 = vunpack.c.h.b16 %v765
    %v1019 = vunpack.c.l.b16 %v766
    %v1020 = vunpack.c.h.b16 %v766
    %v1021 = vunpack.c.l.b16 %v767
    %v1022 = vunpack.c.h.b16 %v767
    %v1023 = vunpack.c.l.b16 %v768
    %v1024 = vunpack.c.h.b16 %v768
    %v1025 = vunpack.c.l.b16 %v769
    %v1026 = vunpack.c.h.b16 %v769
    %v1027 = vunpack.c.l.b16 %v770
    %v1028 = vunpack.c.h.b16 %v770
    %v1029 = vunpack.c.l.b16 %v771
    %v1030 = vunpack.c.h.b16 %v771
    %v1031 = vunpack.c.l.b16 %v772
    %v1032 = vunpack.c.h.b16 %v772
    %v1033 = vunpack.c.l.b16 %v773
    %v1034 = vunpack.c.h.b16 %v773
    %v1035 = vunpack.c.l.b16 %v774
    %v1036 = vunpack.c.h.b16 %v774
    %v1037 = vunpack.c.l.b16 %v775
    %v1038 = vunpack.c.h.b16 %v775
    %v1039 = vunpack.c.l.b16 %v776
    %v1040 = vunpack.c.h.b16 %v776
    %v1041 = vunpack.c.l.b16 %v777
    %v1042 = vunpack.c.h.b16 %v777
    %v1043 = vunpack.c.l.b16 %v778
    %v1044 = vunpack.c.h.b16 %v778
    %v1045 = vunpack.c.l.b16 %v779
    %v1046 = vunpack.c.h.b16 %v779
    %v1047 = vunpack.c.l.b16 %v780
    %v1048 = vunpack.c.h.b16 %v780
    %v1049 = vunpack.c.l.b16 %v781
    %v1050 = vunpack.c.h.b16 %v781
    %v1051 = vunpack.c.l.b16 %v782
    %v1052 = vunpack.c.h.b16 %v782
    %v1053 = vunpack.c.l.b16 %v783
    %v1054 = vunpack.c.h.b16 %v783
    %v1055 = vunpack.c.l.b16 %v784
    %v1056 = vunpack.c.h.b16 %v784
    %v1057 = vunpack.c.l.b16 %v785
    %v1058 = vunpack.c.h.b16 %v785
    %v1059 = vunpack.c.l.b16 %v786
    %v1060 = vunpack.c.h.b16 %v786
    %v1061 = vunpack.c.l.b16 %v787
    %v1062 = vunpack.c.h.b16 %v787
    %v1063 = vunpack.c.l.b16 %v788
    %v1064 = vunpack.c.h.b16 %v788
    %v1065 = vunpack.c.l.b16 %v789
    %v1066 = vunpack.c.h.b16 %v789
    %v1067 = vunpack.c.l.b16 %v790
    %v1068 = vunpack.c.h.b16 %v790
    %v1069 = vunpack.c.l.b16 %v791
    %v1070 = vunpack.c.h.b16 %v791
    %v1071 = vunpack.c.l.b16 %v792
    %v1072 = vunpack.c.h.b16 %v792
    %v1073 = vunpack.c.l.b16 %v793
    %v1074 = vunpack.c.h.b16 %v793
    %v1075 = vunpack.c.l.b16 %v794
    %v1076 = vunpack.c.h.b16 %v794
    %v1077 = vunpack.c.l.b16 %v795
    %v1078 = vunpack.c.h.b16 %v795
    %v1079 = vunpack.c.l.b16 %v796
    %v1080 = vunpack.c.h.b16 %v796
    %v1081 = vunpack.c.l.b16 %v797
    %v1082 = vunpack.c.h.b16 %v797
    %v1083 = vunpack.c.l.b16 %v798
    %v1084 = vunpack.c.h.b16 %v798
    %v1085 = vunpack.c.l.b16 %v799
    %v1086 = vunpack.c.h.b16 %v799
    %v1087 = vunpack.c.l.b16 %v800
    %v1088 = vunpack.c.h.b16 %v800
    %v1089 = vunpack.c.l.b16 %v801
    %v1090 = vunpack.c.h.b16 %v801
    %v1091 = vunpack.c.l.b16 %v802
    %v1092 = vunpack.c.h.b16 %v802
    %v1093 = vunpack.c.l.b16 %v803
    %v1094 = vunpack.c.h.b16 %v803
    %v1095 = vunpack.c.l.b16 %v804
    %v1096 = vunpack.c.h.b16 %v804
    %v1097 = vunpack.c.l.b16 %v805
    %v1098 = vunpack.c.h.b16 %v805
    %v1099 = vunpack.c.l.b16 %v806
    %v1100 = vunpack.c.h.b16 %v806
    %v1101 = vpack.c.b16 %v911, %v909
    %v1102 = vpack.c.b16 %v912, %v910
    %v1103 = vpack.c.b16 %v915, %v913
    %v1104 = vpack.c.b16 %v916, %v914
    %v1105 = vpack.c.b16 %v919, %v917
    %v1106 = vpack.c.b16 %v920, %v918
    %v1107 = vpack.c.b16 %v923, %v921
    %v1108 = vpack.c.b16 %v924, %v922
    %v1109 = vpack.c.b16 %v927, %v925
    %v1110 = vpack.c.b16 %v928, %v926
    %v1111 = vpack.c.b16 %v931, %v929
    %v1112 = vpack.c.b16 %v932, %v930
    %v1113 = vpack.c.b16 %v935, %v933
    %v1114 = vpack.c.b16 %v936, %v934
    %v1115 = vpack.c.b16 %v939, %v937
    %v1116 = vpack.c.b16 %v940, %v938
    %v1117 = vpack.c.b16 %v943, %v941
    %v1118 = vpack.c.b16 %v944, %v942
    %v1119 = vpack.c.b16 %v947, %v945
    %v1120 = vpack.c.b16 %v948, %v946
    %v1121 = vpack.c.b16 %v951, %v949
    %v1122 = vpack.c.b16 %v952, %v950
    %v1123 = vpack.c.b16 %v955, %v953
    %v1124 = vpack.c.b16 %v956, %v954
    %v1125 = vpack.c.b16 %v959, %v957
    %v1126 = vpack.c.b16 %v960, %v958
    %v1127 = vpack.c.b16 %v963, %v961
    %v1128 = vpack.c.b16 %v964, %v962
    %v1129 = vpack.c.b16 %v967, %v965
    %v1130 = vpack.c.b16 %v968, %v966
    %v1131 = vpack.c.b16 %v971, %v969
    %v1132 = vpack.c.b16 %v972, %v970
    %v1133 = vpack.c.b16 %v975, %v973
    %v1134 = vpack.c.b16 %v976, %v974
    %v1135 = vpack.c.b16 %v979, %v977
    %v1136 = vpack.c.b16 %v980, %v978
    %v1137 = vpack.c.b16 %v983, %v981
    %v1138 = vpack.c.b16 %v984, %v982
    %v1139 = vpack.c.b16 %v987, %v985
    %v1140 = vpack.c.b16 %v988, %v986
    %v1141 = vpack.c.b16 %v991, %v989
    %v1142 = vpack.c.b16 %v992, %v990
    %v1143 = vpack.c.b16 %v995, %v993
    %v1144 = vpack.c.b16 %v996, %v994
    %v1145 = vpack.c.b16 %v999, %v997
    %v1146 = vpack.c.b16 %v1000, %v998
    %v1147 = vpack.c.b16 %v1003, %v1001
    %v1148 = vpack.c.b16 %v1004, %v1002
    %v1149 = vpack.c.b16 %v1007, %v1005
    %v1150 = vpack.c.b16 %v1008, %v1006
    %v1151 = vpack.c.b16 %v1011, %v1009
    %v1152 = vpack.c.b16 %v1012, %v1010
    %v1153 = vpack.c.b16 %v1015, %v1013
    %v1154 = vpack.c.b16 %v1016, %v1014
    %v1155 = vpack.c.b16 %v1019, %v1017
    %v1156 = vpack.c.b16 %v1020, %v1018
    %v1157 = vpack.c.b16 %v1023, %v1021
    %v1158 = vpack.c.b16 %v1024, %v1022
    %v1159 = vpack.c.b16 %v1027, %v1025
    %v1160 = vpack.c.b16 %v1028, %v1026
    %v1161 = vpack.c.b16 %v1031, %v1029
    %v1162 = vpack.c.b16 %v1032, %v1030
    %v1163 = vpack.c.b16 %v1035, %v1033
    %v1164 = vpack.c.b16 %v1036, %v1034
    %v1165 = vpack.c.b16 %v1039, %v1037
    %v1166 = vpack.c.b16 %v1040, %v1038
    %v1167 = vpack.c.b16 %v1043, %v1041
    %v1168 = vpack.c.b16 %v1044, %v1042
    %v1169 = vpack.c.b16 %v1047, %v1045
    %v1170 = vpack.c.b16 %v1048, %v1046
    %v1171 = vpack.c.b16 %v1051, %v1049
    %v1172 = vpack.c.b16 %v1052, %v1050
    %v1173 = vpack.c.b16 %v1055, %v1053
    %v1174 = vpack.c.b16 %v1056, %v1054
    %v1175 = vpack.c.b16 %v1059, %v1057
    %v1176 = vpack.c.b16 %v1060, %v1058
    %v1177 = vpack.c.b16 %v1063, %v1061
    %v1178 = vpack.c.b16 %v1064, %v1062
    %v1179 = vpack.c.b16 %v1067, %v1065
    %v1180 = vpack.c.b16 %v1068, %v1066
    %v1181 = vpack.c.b16 %v1071, %v1069
    %v1182 = vpack.c.b16 %v1072, %v1070
    %v1183 = vpack.c.b16 %v1075, %v1073
    %v1184 = vpack.c.b16 %v1076, %v1074
    %v1185 = vpack.c.b16 %v1079, %v1077
    %v1186 = vpack.c.b16 %v1080, %v1078
    %v1187 = vpack.c.b16 %v1083, %v1081
    %v1188 = vpack.c.b16 %v1084, %v1082
    %v1189 = vpack.c.b16 %v1087, %v1085
    %v1190 = vpack.c.b16 %v1088, %v1086
    %v1191 = vpack.c.b16 %v1091, %v1089
    %v1192 = vpack.c.b16 %v1092, %v1090
    %v1193 = vpack.c.b16 %v1095, %v1093
    %v1194 = vpack.c.b16 %v1096, %v1094
    %v1195 = vpack.c.b16 %v1099, %v1097
    %v1196 = vpack.c.b16 %v1100, %v1098
    %1293 = vmatpush.bf16.msra.mxu0 %v1115
    %1294 = vmatpush.bf16.msra.mxu0 %v1113
    %1295 = vmatpush.bf16.msra.mxu0 %v1111
    %1296 = vmatpush.bf16.msra.mxu0 %v1109
    %1297 = vmatpush.bf16.msra.mxu0 %v1107
    %1298 = vmatpush.bf16.msra.mxu0 %v1105
    %1299 = vmatpush.bf16.msra.mxu0 %v1103
    %1300 = vmatpush.bf16.msra.mxu0 %v1101
    %1301 = vmatmul.bf16.gmra.mxu0 %v687
    %v1302 = vpop.f32.mrf.mxu0
    %v1303 = vadd.f32 %v809, %v1302
    %v1304 = vpop.f32.mrf.mxu0
    %v1305 = vadd.f32 %v809, %v1304
    %1306 = vmatmul.bf16.gmra.mxu0 %v693
    %v1307 = vpop.f32.mrf.mxu0
    %v1308 = vadd.f32 %v809, %v1307
    %v1309 = vpop.f32.mrf.mxu0
    %v1310 = vadd.f32 %v809, %v1309
    %1311 = vmatmul.bf16.gmra.mxu0 %v699
    %v1312 = vpop.f32.mrf.mxu0
    %v1313 = vadd.f32 %v809, %v1312
    %v1314 = vpop.f32.mrf.mxu0
    %v1315 = vadd.f32 %v809, %v1314
    %1316 = vmatmul.bf16.gmra.mxu0 %v705
    %v1317 = vpop.f32.mrf.mxu0
    %v1318 = vadd.f32 %v809, %v1317
    %v1319 = vpop.f32.mrf.mxu0
    %v1320 = vadd.f32 %v809, %v1319
    %1321 = vdwg.mxu0
    %1322 = vmatpush.bf16.msra.mxu0 %v1131
    %1323 = vmatpush.bf16.msra.mxu0 %v1129
    %1324 = vmatpush.bf16.msra.mxu0 %v1127
    %1325 = vmatpush.bf16.msra.mxu0 %v1125
    %1326 = vmatpush.bf16.msra.mxu0 %v1123
    %1327 = vmatpush.bf16.msra.mxu0 %v1121
    %1328 = vmatpush.bf16.msra.mxu0 %v1119
    %1329 = vmatpush.bf16.msra.mxu0 %v1117
    %1330 = vmatmul.bf16.gmra.mxu0 %v688
    %v1331 = vpop.f32.mrf.mxu0
    %v1332 = vadd.f32 %v1303, %v1331
    %v1333 = vpop.f32.mrf.mxu0
    %v1334 = vadd.f32 %v1305, %v1333
    %1335 = vmatmul.bf16.gmra.mxu0 %v694
    %v1336 = vpop.f32.mrf.mxu0
    %v1337 = vadd.f32 %v1308, %v1336
    %v1338 = vpop.f32.mrf.mxu0
    %v1339 = vadd.f32 %v1310, %v1338
    %1340 = vmatmul.bf16.gmra.mxu0 %v700
    %v1341 = vpop.f32.mrf.mxu0
    %v1342 = vadd.f32 %v1313, %v1341
    %v1343 = vpop.f32.mrf.mxu0
    %v1344 = vadd.f32 %v1315, %v1343
    %1345 = vmatmul.bf16.gmra.mxu0 %v706
    %v1346 = vpop.f32.mrf.mxu0
    %v1347 = vadd.f32 %v1318, %v1346
    %v1348 = vpop.f32.mrf.mxu0
    %v1349 = vadd.f32 %v1320, %v1348
    %1350 = vdwg.mxu0
    %1351 = vmatpush.bf16.msra.mxu0 %v1147
    %1352 = vmatpush.bf16.msra.mxu0 %v1145
    %1353 = vmatpush.bf16.msra.mxu0 %v1143
    %1354 = vmatpush.bf16.msra.mxu0 %v1141
    %1355 = vmatpush.bf16.msra.mxu0 %v1139
    %1356 = vmatpush.bf16.msra.mxu0 %v1137
    %1357 = vmatpush.bf16.msra.mxu0 %v1135
    %1358 = vmatpush.bf16.msra.mxu0 %v1133
    %1359 = vmatmul.bf16.gmra.mxu0 %v689
    %v1360 = vpop.f32.mrf.mxu0
    %v1361 = vadd.f32 %v1332, %v1360
    %v1362 = vpop.f32.mrf.mxu0
    %v1363 = vadd.f32 %v1334, %v1362
    %1364 = vmatmul.bf16.gmra.mxu0 %v695
    %v1365 = vpop.f32.mrf.mxu0
    %v1366 = vadd.f32 %v1337, %v1365
    %v1367 = vpop.f32.mrf.mxu0
    %v1368 = vadd.f32 %v1339, %v1367
    %1369 = vmatmul.bf16.gmra.mxu0 %v701
    %v1370 = vpop.f32.mrf.mxu0
    %v1371 = vadd.f32 %v1342, %v1370
    %v1372 = vpop.f32.mrf.mxu0
    %v1373 = vadd.f32 %v1344, %v1372
    %1374 = vmatmul.bf16.gmra.mxu0 %v707
    %v1375 = vpop.f32.mrf.mxu0
    %v1376 = vadd.f32 %v1347, %v1375
    %v1377 = vpop.f32.mrf.mxu0
    %v1378 = vadd.f32 %v1349, %v1377
    %1379 = vdwg.mxu0
    %1380 = vmatpush.bf16.msra.mxu0 %v1163
    %1381 = vmatpush.bf16.msra.mxu0 %v1161
    %1382 = vmatpush.bf16.msra.mxu0 %v1159
    %1383 = vmatpush.bf16.msra.mxu0 %v1157
    %1384 = vmatpush.bf16.msra.mxu0 %v1155
    %1385 = vmatpush.bf16.msra.mxu0 %v1153
    %1386 = vmatpush.bf16.msra.mxu0 %v1151
    %1387 = vmatpush.bf16.msra.mxu0 %v1149
    %1388 = vmatmul.bf16.gmra.mxu0 %v690
    %v1389 = vpop.f32.mrf.mxu0
    %v1390 = vadd.f32 %v1361, %v1389
    %v1391 = vpop.f32.mrf.mxu0
    %v1392 = vadd.f32 %v1363, %v1391
    %1393 = vmatmul.bf16.gmra.mxu0 %v696
    %v1394 = vpop.f32.mrf.mxu0
    %v1395 = vadd.f32 %v1366, %v1394
    %v1396 = vpop.f32.mrf.mxu0
    %v1397 = vadd.f32 %v1368, %v1396
    %1398 = vmatmul.bf16.gmra.mxu0 %v702
    %v1399 = vpop.f32.mrf.mxu0
    %v1400 = vadd.f32 %v1371, %v1399
    %v1401 = vpop.f32.mrf.mxu0
    %v1402 = vadd.f32 %v1373, %v1401
    %1403 = vmatmul.bf16.gmra.mxu0 %v708
    %v1404 = vpop.f32.mrf.mxu0
    %v1405 = vadd.f32 %v1376, %v1404
    %v1406 = vpop.f32.mrf.mxu0
    %v1407 = vadd.f32 %v1378, %v1406
    %1408 = vdwg.mxu0
    %1409 = vmatpush.bf16.msra.mxu0 %v1179
    %1410 = vmatpush.bf16.msra.mxu0 %v1177
    %1411 = vmatpush.bf16.msra.mxu0 %v1175
    %1412 = vmatpush.bf16.msra.mxu0 %v1173
    %1413 = vmatpush.bf16.msra.mxu0 %v1171
    %1414 = vmatpush.bf16.msra.mxu0 %v1169
    %1415 = vmatpush.bf16.msra.mxu0 %v1167
    %1416 = vmatpush.bf16.msra.mxu0 %v1165
    %1417 = vmatmul.bf16.gmra.mxu0 %v691
    %v1418 = vpop.f32.mrf.mxu0
    %v1419 = vadd.f32 %v1390, %v1418
    %v1420 = vpop.f32.mrf.mxu0
    %v1421 = vadd.f32 %v1392, %v1420
    %1422 = vmatmul.bf16.gmra.mxu0 %v697
    %v1423 = vpop.f32.mrf.mxu0
    %v1424 = vadd.f32 %v1395, %v1423
    %v1425 = vpop.f32.mrf.mxu0
    %v1426 = vadd.f32 %v1397, %v1425
    %1427 = vmatmul.bf16.gmra.mxu0 %v703
    %v1428 = vpop.f32.mrf.mxu0
    %v1429 = vadd.f32 %v1400, %v1428
    %v1430 = vpop.f32.mrf.mxu0
    %v1431 = vadd.f32 %v1402, %v1430
    %1432 = vmatmul.bf16.gmra.mxu0 %v709
    %v1433 = vpop.f32.mrf.mxu0
    %v1434 = vadd.f32 %v1405, %v1433
    %v1435 = vpop.f32.mrf.mxu0
    %v1436 = vadd.f32 %v1407, %v1435
    %1437 = vdwg.mxu0
    %1438 = vmatpush.bf16.msra.mxu0 %v1195
    %1439 = vmatpush.bf16.msra.mxu0 %v1193
    %1440 = vmatpush.bf16.msra.mxu0 %v1191
    %1441 = vmatpush.bf16.msra.mxu0 %v1189
    %1442 = vmatpush.bf16.msra.mxu0 %v1187
    %1443 = vmatpush.bf16.msra.mxu0 %v1185
    %1444 = vmatpush.bf16.msra.mxu0 %v1183
    %1445 = vmatpush.bf16.msra.mxu0 %v1181
    %1446 = vmatmul.bf16.gmra.mxu0 %v692
    %v1447 = vpop.f32.mrf.mxu0
    %v1448 = vadd.f32 %v1419, %v1447
    %v1449 = vpop.f32.mrf.mxu0
    %v1450 = vadd.f32 %v1421, %v1449
    %1451 = vmatmul.bf16.gmra.mxu0 %v698
    %v1452 = vpop.f32.mrf.mxu0
    %v1453 = vadd.f32 %v1424, %v1452
    %v1454 = vpop.f32.mrf.mxu0
    %v1455 = vadd.f32 %v1426, %v1454
    %1456 = vmatmul.bf16.gmra.mxu0 %v704
    %v1457 = vpop.f32.mrf.mxu0
    %v1458 = vadd.f32 %v1429, %v1457
    %v1459 = vpop.f32.mrf.mxu0
    %v1460 = vadd.f32 %v1431, %v1459
    %1461 = vmatmul.bf16.gmra.mxu0 %v710
    %v1462 = vpop.f32.mrf.mxu0
    %v1463 = vadd.f32 %v1434, %v1462
    %v1464 = vpop.f32.mrf.mxu0
    %v1465 = vadd.f32 %v1436, %v1464
    %1466 = vdwg.mxu0
    %1467 = vmatpush.bf16.msra.mxu0 %v1116
    %1468 = vmatpush.bf16.msra.mxu0 %v1114
    %1469 = vmatpush.bf16.msra.mxu0 %v1112
    %1470 = vmatpush.bf16.msra.mxu0 %v1110
    %1471 = vmatpush.bf16.msra.mxu0 %v1108
    %1472 = vmatpush.bf16.msra.mxu0 %v1106
    %1473 = vmatpush.bf16.msra.mxu0 %v1104
    %1474 = vmatpush.bf16.msra.mxu0 %v1102
    %1475 = vmatmul.bf16.gmra.mxu0 %v687
    %v1476 = vpop.f32.mrf.mxu0
    %v1477 = vadd.f32 %v810, %v1476
    %v1478 = vpop.f32.mrf.mxu0
    %v1479 = vadd.f32 %v810, %v1478
    %1480 = vmatmul.bf16.gmra.mxu0 %v693
    %v1481 = vpop.f32.mrf.mxu0
    %v1482 = vadd.f32 %v810, %v1481
    %v1483 = vpop.f32.mrf.mxu0
    %v1484 = vadd.f32 %v810, %v1483
    %1485 = vmatmul.bf16.gmra.mxu0 %v699
    %v1486 = vpop.f32.mrf.mxu0
    %v1487 = vadd.f32 %v810, %v1486
    %v1488 = vpop.f32.mrf.mxu0
    %v1489 = vadd.f32 %v810, %v1488
    %1490 = vmatmul.bf16.gmra.mxu0 %v705
    %v1491 = vpop.f32.mrf.mxu0
    %v1492 = vadd.f32 %v810, %v1491
    %v1493 = vpop.f32.mrf.mxu0
    %v1494 = vadd.f32 %v810, %v1493
    %1495 = vdwg.mxu0
    %1496 = vmatpush.bf16.msra.mxu0 %v1132
    %1497 = vmatpush.bf16.msra.mxu0 %v1130
    %1498 = vmatpush.bf16.msra.mxu0 %v1128
    %1499 = vmatpush.bf16.msra.mxu0 %v1126
    %1500 = vmatpush.bf16.msra.mxu0 %v1124
    %1501 = vmatpush.bf16.msra.mxu0 %v1122
    %1502 = vmatpush.bf16.msra.mxu0 %v1120
    %1503 = vmatpush.bf16.msra.mxu0 %v1118
    %1504 = vmatmul.bf16.gmra.mxu0 %v688
    %v1505 = vpop.f32.mrf.mxu0
    %v1506 = vadd.f32 %v1477, %v1505
    %v1507 = vpop.f32.mrf.mxu0
    %v1508 = vadd.f32 %v1479, %v1507
    %1509 = vmatmul.bf16.gmra.mxu0 %v694
    %v1510 = vpop.f32.mrf.mxu0
    %v1511 = vadd.f32 %v1482, %v1510
    %v1512 = vpop.f32.mrf.mxu0
    %v1513 = vadd.f32 %v1484, %v1512
    %1514 = vmatmul.bf16.gmra.mxu0 %v700
    %v1515 = vpop.f32.mrf.mxu0
    %v1516 = vadd.f32 %v1487, %v1515
    %v1517 = vpop.f32.mrf.mxu0
    %v1518 = vadd.f32 %v1489, %v1517
    %1519 = vmatmul.bf16.gmra.mxu0 %v706
    %v1520 = vpop.f32.mrf.mxu0
    %v1521 = vadd.f32 %v1492, %v1520
    %v1522 = vpop.f32.mrf.mxu0
    %v1523 = vadd.f32 %v1494, %v1522
    %1524 = vdwg.mxu0
    %1525 = vmatpush.bf16.msra.mxu0 %v1148
    %1526 = vmatpush.bf16.msra.mxu0 %v1146
    %1527 = vmatpush.bf16.msra.mxu0 %v1144
    %1528 = vmatpush.bf16.msra.mxu0 %v1142
    %1529 = vmatpush.bf16.msra.mxu0 %v1140
    %1530 = vmatpush.bf16.msra.mxu0 %v1138
    %1531 = vmatpush.bf16.msra.mxu0 %v1136
    %1532 = vmatpush.bf16.msra.mxu0 %v1134
    %1533 = vmatmul.bf16.gmra.mxu0 %v689
    %v1534 = vpop.f32.mrf.mxu0
    %v1535 = vadd.f32 %v1506, %v1534
    %v1536 = vpop.f32.mrf.mxu0
    %v1537 = vadd.f32 %v1508, %v1536
    %1538 = vmatmul.bf16.gmra.mxu0 %v695
    %v1539 = vpop.f32.mrf.mxu0
    %v1540 = vadd.f32 %v1511, %v1539
    %v1541 = vpop.f32.mrf.mxu0
    %v1542 = vadd.f32 %v1513, %v1541
    %1543 = vmatmul.bf16.gmra.mxu0 %v701
    %v1544 = vpop.f32.mrf.mxu0
    %v1545 = vadd.f32 %v1516, %v1544
    %v1546 = vpop.f32.mrf.mxu0
    %v1547 = vadd.f32 %v1518, %v1546
    %1548 = vmatmul.bf16.gmra.mxu0 %v707
    %v1549 = vpop.f32.mrf.mxu0
    %v1550 = vadd.f32 %v1521, %v1549
    %v1551 = vpop.f32.mrf.mxu0
    %v1552 = vadd.f32 %v1523, %v1551
    %1553 = vdwg.mxu0
    %1554 = vmatpush.bf16.msra.mxu0 %v1164
    %1555 = vmatpush.bf16.msra.mxu0 %v1162
    %1556 = vmatpush.bf16.msra.mxu0 %v1160
    %1557 = vmatpush.bf16.msra.mxu0 %v1158
    %1558 = vmatpush.bf16.msra.mxu0 %v1156
    %1559 = vmatpush.bf16.msra.mxu0 %v1154
    %1560 = vmatpush.bf16.msra.mxu0 %v1152
    %1561 = vmatpush.bf16.msra.mxu0 %v1150
    %1562 = vmatmul.bf16.gmra.mxu0 %v690
    %v1563 = vpop.f32.mrf.mxu0
    %v1564 = vadd.f32 %v1535, %v1563
    %v1565 = vpop.f32.mrf.mxu0
    %v1566 = vadd.f32 %v1537, %v1565
    %1567 = vmatmul.bf16.gmra.mxu0 %v696
    %v1568 = vpop.f32.mrf.mxu0
    %v1569 = vadd.f32 %v1540, %v1568
    %v1570 = vpop.f32.mrf.mxu0
    %v1571 = vadd.f32 %v1542, %v1570
    %1572 = vmatmul.bf16.gmra.mxu0 %v702
    %v1573 = vpop.f32.mrf.mxu0
    %v1574 = vadd.f32 %v1545, %v1573
    %v1575 = vpop.f32.mrf.mxu0
    %v1576 = vadd.f32 %v1547, %v1575
    %1577 = vmatmul.bf16.gmra.mxu0 %v708
    %v1578 = vpop.f32.mrf.mxu0
    %v1579 = vadd.f32 %v1550, %v1578
    %v1580 = vpop.f32.mrf.mxu0
    %v1581 = vadd.f32 %v1552, %v1580
    %1582 = vdwg.mxu0
    %1583 = vmatpush.bf16.msra.mxu0 %v1180
    %1584 = vmatpush.bf16.msra.mxu0 %v1178
    %1585 = vmatpush.bf16.msra.mxu0 %v1176
    %1586 = vmatpush.bf16.msra.mxu0 %v1174
    %1587 = vmatpush.bf16.msra.mxu0 %v1172
    %1588 = vmatpush.bf16.msra.mxu0 %v1170
    %1589 = vmatpush.bf16.msra.mxu0 %v1168
    %1590 = vmatpush.bf16.msra.mxu0 %v1166
    %1591 = vmatmul.bf16.gmra.mxu0 %v691
    %v1592 = vpop.f32.mrf.mxu0
    %v1593 = vadd.f32 %v1564, %v1592
    %v1594 = vpop.f32.mrf.mxu0
    %v1595 = vadd.f32 %v1566, %v1594
    %1596 = vmatmul.bf16.gmra.mxu0 %v697
    %v1597 = vpop.f32.mrf.mxu0
    %v1598 = vadd.f32 %v1569, %v1597
    %v1599 = vpop.f32.mrf.mxu0
    %v1600 = vadd.f32 %v1571, %v1599
    %1601 = vmatmul.bf16.gmra.mxu0 %v703
    %v1602 = vpop.f32.mrf.mxu0
    %v1603 = vadd.f32 %v1574, %v1602
    %v1604 = vpop.f32.mrf.mxu0
    %v1605 = vadd.f32 %v1576, %v1604
    %1606 = vmatmul.bf16.gmra.mxu0 %v709
    %v1607 = vpop.f32.mrf.mxu0
    %v1608 = vadd.f32 %v1579, %v1607
    %v1609 = vpop.f32.mrf.mxu0
    %v1610 = vadd.f32 %v1581, %v1609
    %1611 = vdwg.mxu0
    %1612 = vmatpush.bf16.msra.mxu0 %v1196
    %1613 = vmatpush.bf16.msra.mxu0 %v1194
    %1614 = vmatpush.bf16.msra.mxu0 %v1192
    %1615 = vmatpush.bf16.msra.mxu0 %v1190
    %1616 = vmatpush.bf16.msra.mxu0 %v1188
    %1617 = vmatpush.bf16.msra.mxu0 %v1186
    %1618 = vmatpush.bf16.msra.mxu0 %v1184
    %1619 = vmatpush.bf16.msra.mxu0 %v1182
    %1620 = vmatmul.bf16.gmra.mxu0 %v692
    %v1621 = vpop.f32.mrf.mxu0
    %v1622 = vadd.f32 %v1593, %v1621
    %v1623 = vpop.f32.mrf.mxu0
    %v1624 = vadd.f32 %v1595, %v1623
    %1625 = vmatmul.bf16.gmra.mxu0 %v698
    %v1626 = vpop.f32.mrf.mxu0
    %v1627 = vadd.f32 %v1598, %v1626
    %v1628 = vpop.f32.mrf.mxu0
    %v1629 = vadd.f32 %v1600, %v1628
    %1630 = vmatmul.bf16.gmra.mxu0 %v704
    %v1631 = vpop.f32.mrf.mxu0
    %v1632 = vadd.f32 %v1603, %v1631
    %v1633 = vpop.f32.mrf.mxu0
    %v1634 = vadd.f32 %v1605, %v1633
    %1635 = vmatmul.bf16.gmra.mxu0 %v710
    %v1636 = vpop.f32.mrf.mxu0
    %v1637 = vadd.f32 %v1608, %v1636
    %v1638 = vpop.f32.mrf.mxu0
    %v1639 = vadd.f32 %v1610, %v1638
    %1640 = vdwg.mxu0
    %vm1641 = vcmp.gt.f32.partialorder %v1448, 0.0
    %vm1642 = vcmp.gt.f32.partialorder %v1622, 0.0
    %vm1643 = vcmp.gt.f32.partialorder %v1450, 0.0
    %vm1644 = vcmp.gt.f32.partialorder %v1624, 0.0
    %vm1645 = vcmp.gt.f32.partialorder %v1453, 0.0
    %vm1646 = vcmp.gt.f32.partialorder %v1627, 0.0
    %vm1647 = vcmp.gt.f32.partialorder %v1455, 0.0
    %vm1648 = vcmp.gt.f32.partialorder %v1629, 0.0
    %vm1649 = vcmp.gt.f32.partialorder %v1458, 0.0
    %vm1650 = vcmp.gt.f32.partialorder %v1632, 0.0
    %vm1651 = vcmp.gt.f32.partialorder %v1460, 0.0
    %vm1652 = vcmp.gt.f32.partialorder %v1634, 0.0
    %vm1653 = vcmp.gt.f32.partialorder %v1463, 0.0
    %vm1654 = vcmp.gt.f32.partialorder %v1637, 0.0
    %vm1655 = vcmp.gt.f32.partialorder %v1465, 0.0
    %vm1656 = vcmp.gt.f32.partialorder %v1639, 0.0
    %v1657 = vld [vmem:[%s7] sm:$0x3]
    %v1659 = vperm.slane %v1657, 0
    %v1660 = vperm.slane %v1657, 1
    %v1663 = vmul.f32 %v1659, %v1448
    %v1664 = vmul.f32 %v1660, %v1622
    %v1665 = vmul.f32 %v1659, %v1450
    %v1666 = vmul.f32 %v1660, %v1624
    %v1667 = vmul.f32 %v1659, %v1453
    %v1668 = vmul.f32 %v1660, %v1627
    %v1669 = vmul.f32 %v1659, %v1455
    %v1670 = vmul.f32 %v1660, %v1629
    %v1671 = vmul.f32 %v1659, %v1458
    %v1672 = vmul.f32 %v1660, %v1632
    %v1673 = vmul.f32 %v1659, %v1460
    %v1674 = vmul.f32 %v1660, %v1634
    %v1675 = vmul.f32 %v1659, %v1463
    %v1676 = vmul.f32 %v1660, %v1637
    %v1677 = vmul.f32 %v1659, %v1465
    %v1678 = vmul.f32 %v1660, %v1639
    %v1679 = vsel %vm1641, %v1448, %v1663
    %v1680 = vsel %vm1642, %v1622, %v1664
    %v1681 = vsel %vm1643, %v1450, %v1665
    %v1682 = vsel %vm1644, %v1624, %v1666
    %v1683 = vsel %vm1645, %v1453, %v1667
    %v1684 = vsel %vm1646, %v1627, %v1668
    %v1685 = vsel %vm1647, %v1455, %v1669
    %v1686 = vsel %vm1648, %v1629, %v1670
    %v1687 = vsel %vm1649, %v1458, %v1671
    %v1688 = vsel %vm1650, %v1632, %v1672
    %v1689 = vsel %vm1651, %v1460, %v1673
    %v1690 = vsel %vm1652, %v1634, %v1674
    %v1691 = vsel %vm1653, %v1463, %v1675
    %v1692 = vsel %vm1654, %v1637, %v1676
    %v1693 = vsel %vm1655, %v1465, %v1677
    %v1694 = vsel %vm1656, %v1639, %v1678
    %1695 = vst [vmem:[#allocation8] sm:$0xff] %v1679
    %1696 = vst [vmem:[#allocation8 + $0x8] sm:$0xff] %v1680
    %1697 = vst [vmem:[#allocation8 + $0x10] sm:$0xff] %v1681
    %1698 = vst [vmem:[#allocation8 + $0x18] sm:$0xff] %v1682
    %1699 = vst [vmem:[#allocation8 + $0x20] sm:$0xff] %v1683
    %1700 = vst [vmem:[#allocation8 + $0x28] sm:$0xff] %v1684
    %1701 = vst [vmem:[#allocation8 + $0x30] sm:$0xff] %v1685
    %1702 = vst [vmem:[#allocation8 + $0x38] sm:$0xff] %v1686
    %1703 = vst [vmem:[#allocation8 + $0x40] sm:$0xff] %v1687
    %1704 = vst [vmem:[#allocation8 + $0x48] sm:$0xff] %v1688
    %1705 = vst [vmem:[#allocation8 + $0x50] sm:$0xff] %v1689
    %1706 = vst [vmem:[#allocation8 + $0x58] sm:$0xff] %v1690
    %1707 = vst [vmem:[#allocation8 + $0x60] sm:$0xff] %v1691
    %1708 = vst [vmem:[#allocation8 + $0x68] sm:$0xff] %v1692
    %1709 = vst [vmem:[#allocation8 + $0x70] sm:$0xff] %v1693
    %1710 = vst [vmem:[#allocation8 + $0x78] sm:$0xff] %v1694
    // Predicated region
    $region46: #{tpu_custom_call.1} parent=1 // pred_check
      _
    $region47: #{tpu_custom_call.1} parent=1 // pred_check_branch
      %1712 = sbr.rel (0) target = $region49
    $region48: #{tpu_custom_call.1} parent=1 // pred_region
      %1714 = vsyncadd [#allocation4], 0
      %s1715 = sshll.u32 [#allocation8], 4
      %s1716 = int_to_ptr.vmem [resolvable:$true] %s1715
      %s1717 = sshll.u32 %s8, 4
      %s1718 = int_to_ptr.hbm [resolvable:$true] %s1717
      %1723 = dma.vmem_to_hbm [thread:$0]  %s1716, 2048, %s1718, [#allocation4], 256, 256, 16
    $region49: #{tpu_custom_call.1} parent=1 // pred_fallthru
      _
    // Predicated region
    $region50: #{tpu_custom_call.1} parent=1 // pred_check
      _
    $region51: #{tpu_custom_call.1} parent=1 // pred_check_branch
      %1725 = sbr.rel (0) target = $region53
    $region52: #{tpu_custom_call.1} parent=1 // pred_region
      %1727 = dma.done [#allocation4], 2048
    $region53: #{tpu_custom_call.1} parent=1 // pred_fallthru
      _
    %1728 = vsyncpa [#allocation3], 1
    %1729 = vsyncpa [#allocation6], 1
    %1730 = vsyncpa [#allocation4], 1

</llo_original>
